<compile_context>
chip_gen: v7x
topology: tpu7x:2x2x1
jax: 0.10.0
libtpu: 0.0.40
codegen_flags: <defaults>
</compile_context>

<pallas_src>
import jax
import jax.numpy as jnp
from jax import lax
from jax.experimental import pallas as pl
from jax.experimental.pallas import tpu as pltpu

INPUT_SIZE = 468
HIDDEN_SIZE = 64
NUM_LAYERS = 2  # hard-coded as the two pipelined layers inside the kernel


def _lstm_kernel(x_ref,      # (B, T, D)    raw batch-first input
                 wih0_ref,   # (D, 8H)      layer-0 input proj, layer-1 cols = 0
                 bias_ref,   # (1, 8H)      [b0 | b1] interleaved per gate
                 wbig_ref,   # (2H, 8H)     fused [[Whh0, Wih1],[0, Whh1]]
                 wfc_ref,    # (H, 1)
                 bfc_ref,    # (1, 1)
                 out_ref,    # (B, 1)
                 gadd_ref):  # (B, T, 8H)   VMEM scratch: per-step additive gates
    B, T, D = x_ref.shape
    G8 = gadd_ref.shape[-1]
    H = G8 // 8
    H2 = 2 * H
    H6 = 6 * H

    # ---- prologue: input projection for all timesteps in ONE MXU matmul ----
    # gadd[b, t, :] = x[b, t, :] @ Wih0_big + bias_big
    #   layer-0 gate columns -> x_t @ Wih0 + b0 ; layer-1 gate columns -> b1.
    xf = x_ref[...].reshape(B * T, D)
    g_all = jnp.dot(xf, wih0_ref[...], preferred_element_type=jnp.float32)
    g_all = g_all + bias_ref[...]                       # broadcast (1,8H)
    gadd_ref[...] = g_all.reshape(B, T, G8)

    wbig = wbig_ref[...]                                # hoisted weight load

    def fused_cell(gates, ccat):
        # gates: (B, 8H) with column blocks [i0|i1|f0|f1|o0|o1|g0|g1]
        # ccat : (B, 2H) = [c_layer0 | c_layer1]
        sig = jax.nn.sigmoid(gates[:, :H6])             # i,f,o of both layers
        i_cat = sig[:, 0:H2]
        f_cat = sig[:, H2:2 * H2]
        o_cat = sig[:, 2 * H2:3 * H2]
        g_cat = jnp.tanh(gates[:, H6:])
        c_new = f_cat * ccat + i_cat * g_cat
        h_new = o_cat * jnp.tanh(c_new)
        return h_new, c_new                             # (B,2H) each

    # ---- t = 0: layer-0 cell only (h_{-1} = c_{-1} = 0) --------------------
    hcat, ccat = fused_cell(gadd_ref[:, 0, :], jnp.zeros((B, H2), jnp.float32))
    lane = lax.broadcasted_iota(jnp.int32, (B, H2), 1)
    keep0 = lane < H                                    # keep layer-0 half
    hcat = jnp.where(keep0, hcat, 0.0)                  # h1_{-1} = 0
    ccat = jnp.where(keep0, ccat, 0.0)                  # c1_{-1} = 0

    # ---- steps t = 0 .. T-2: one fused (B,2H)@(2H,8H) matmul per step ------
    # gates[:, layer-0 cols] = h0_t @ Whh0           + gx0[t+1]  -> g0_{t+1}
    # gates[:, layer-1 cols] = h0_t @ Wih1 + h1_{t-1} @ Whh1 + b1 -> g1_t
    for t in range(T - 1):
        gates = jnp.dot(hcat, wbig, preferred_element_type=jnp.float32)
        gates = gates + gadd_ref[:, t + 1, :]
        hcat, ccat = fused_cell(gates, ccat)
        # hcat = [h0_{t+1} | h1_t], ccat = [c0_{t+1} | c1_t]  (no concat needed)

    # ---- epilogue: finish layer-1 at t = T-1 (layer-0 half is discarded) ---
    gates = jnp.dot(hcat, wbig, preferred_element_type=jnp.float32)
    gates = gates + bias_ref[...]                       # layer-1 cols get b1
    hcat, _ = fused_cell(gates, ccat)
    h1_last = hcat[:, H:H2]                             # h1_{T-1}

    # ---- fc on the last timestep's top-layer hidden state ------------------
    out_ref[...] = (jnp.dot(h1_last, wfc_ref[...],
                            preferred_element_type=jnp.float32) + bfc_ref[...])


def lstm_model_forward(x_btd, p):
    """x_btd: (B, T, D) float32, PyTorch batch_first layout. Zero wrapper ops."""
    B, T, D = x_btd.shape
    G8 = p["wbig"].shape[1]

    vmem = pl.BlockSpec(memory_space=pltpu.MemorySpace.VMEM)
    kernel = pl.pallas_call(
        _lstm_kernel,
        out_shape=jax.ShapeDtypeStruct((B, 1), jnp.float32),
        in_specs=[vmem] * 6,
        out_specs=vmem,
        scratch_shapes=[pltpu.VMEM((B, T, G8), jnp.float32)],
    )
    return kernel(x_btd, p["wih0_big"], p["bias_big"], p["wbig"],
                  p["wfc"], p["bfc"])


# ---------------------------------------------------------------------------
# Parameter construction (PyTorch-layout weights + offline packing).
# ---------------------------------------------------------------------------

def init_torch_params(key, input_size, hidden_size):
    """PyTorch-style uniform(-1/sqrt(H), 1/sqrt(H)) params in torch layout."""
    H = hidden_size
    k = 1.0 / jnp.sqrt(jnp.float32(H))
    keys = jax.random.split(key, 10)

    def u(kk, shape):
        return jax.random.uniform(kk, shape, jnp.float32, -k, k)

    return {
        "w_ih_l0": u(keys[0], (4 * H, input_size)),
        "w_hh_l0": u(keys[1], (4 * H, H)),
        "b_ih_l0": u(keys[2], (4 * H,)),
        "b_hh_l0": u(keys[3], (4 * H,)),
        "w_ih_l1": u(keys[4], (4 * H, H)),
        "w_hh_l1": u(keys[5], (4 * H, H)),
        "b_ih_l1": u(keys[6], (4 * H,)),
        "b_hh_l1": u(keys[7], (4 * H,)),
        "w_fc":    u(keys[8], (1, H)),
        "b_fc":    u(keys[9], (1,)),
    }


def pack_params(tp, hidden_size):
    """Offline repack for the fused two-layer kernel.

    Column layout of the 8H gate axis (H-wide blocks):
        [ i0 | i1 | f0 | f1 | o0 | o1 | g0 | g1 ]
    (layer index interleaved per gate; sigmoid gates first, tanh gates last).
    """
    H = hidden_size
    D = tp["w_ih_l0"].shape[1]

    def gate_cols(w_t):   # w_t: (in, 4H), torch gate order (i, f, g, o)
        return (w_t[:, 0:H], w_t[:, H:2 * H], w_t[:, 2 * H:3 * H], w_t[:, 3 * H:4 * H])

    i0x, f0x, g0x, o0x = gate_cols(tp["w_ih_l0"].T)      # (D, H) each
    i0h, f0h, g0h, o0h = gate_cols(tp["w_hh_l0"].T)      # (H, H) each
    i1x, f1x, g1x, o1x = gate_cols(tp["w_ih_l1"].T)      # (H, H) each
    i1h, f1h, g1h, o1h = gate_cols(tp["w_hh_l1"].T)      # (H, H) each

    zD = jnp.zeros((D, H), jnp.float32)
    zH = jnp.zeros((H, H), jnp.float32)

    # Layer-0 input projection; layer-1 columns are zero (they only receive b1).
    wih0_big = jnp.concatenate([i0x, zD, f0x, zD, o0x, zD, g0x, zD], axis=1)   # (D, 8H)

    # Fused recurrent block matrix: rows [0:H] multiply h0_t, rows [H:2H] h1_{t-1}.
    wbig_top = jnp.concatenate([i0h, i1x, f0h, f1x, o0h, o1x, g0h, g1x], axis=1)
    wbig_bot = jnp.concatenate([zH,  i1h, zH,  f1h, zH,  o1h, zH,  g1h], axis=1)
    wbig = jnp.concatenate([wbig_top, wbig_bot], axis=0)                        # (2H, 8H)

    b0 = tp["b_ih_l0"] + tp["b_hh_l0"]
    b1 = tp["b_ih_l1"] + tp["b_hh_l1"]

    def gate_vec(b):
        return (b[0:H], b[H:2 * H], b[2 * H:3 * H], b[3 * H:4 * H])

    i0b, f0b, g0b, o0b = gate_vec(b0)
    i1b, f1b, g1b, o1b = gate_vec(b1)
    bias_big = jnp.concatenate(
        [i0b, i1b, f0b, f1b, o0b, o1b, g0b, g1b]).reshape(1, 8 * H)             # (1, 8H)

    return {
        "wih0_big": wih0_big, "bias_big": bias_big, "wbig": wbig,
        "wfc": tp["w_fc"].T, "bfc": tp["b_fc"].reshape(1, 1),
    }


# ---------------------------------------------------------------------------
# Pure-JAX reference (standard PyTorch gate order), for verification.
# ---------------------------------------------------------------------------

def _reference_forward(x_btd, tp, hidden_size):
    B, T, D = x_btd.shape
    H = hidden_size

    def cell(x_t, h, c, w_ih, w_hh, b_ih, b_hh):
        g = x_t @ w_ih.T + h @ w_hh.T + b_ih + b_hh
        i = jax.nn.sigmoid(g[:, 0 * H:1 * H])
        f = jax.nn.sigmoid(g[:, 1 * H:2 * H])
        gg = jnp.tanh(g[:, 2 * H:3 * H])
        o = jax.nn.sigmoid(g[:, 3 * H:4 * H])
        c = f * c + i * gg
        h = o * jnp.tanh(c)
        return h, c

    h0 = c0 = h1 = c1 = jnp.zeros((B, H), jnp.float32)
    for t in range(T):
        x_t = x_btd[:, t, :]
        h0, c0 = cell(x_t, h0, c0, tp["w_ih_l0"], tp["w_hh_l0"],
                      tp["b_ih_l0"], tp["b_hh_l0"])
        h1, c1 = cell(h0, h1, c1, tp["w_ih_l1"], tp["w_hh_l1"],
                      tp["b_ih_l1"], tp["b_hh_l1"])
    return h1 @ tp["w_fc"].T + tp["b_fc"]


if __name__ == "__main__":
    B, T = 8, 8
    key = jax.random.PRNGKey(0)
    k_x, k_p = jax.random.split(key)

    x = jax.random.normal(k_x, (B, T, INPUT_SIZE), jnp.float32)
    torch_params = init_torch_params(k_p, INPUT_SIZE, HIDDEN_SIZE)
    params = pack_params(torch_params, HIDDEN_SIZE)

    out = jax.block_until_ready(lstm_model_forward(x, params))
    assert out.shape == (B, 1)

    ref = _reference_forward(x, torch_params, HIDDEN_SIZE)
    assert jnp.allclose(out, ref, atol=1e-3, rtol=1e-3), (out, ref)

    print("KERNEL_OK")
</pallas_src>

<mosaic_0001>
module attributes {stable_mosaic.version = 11 : i64} {
  func.func @_lstm_kernel(%arg0: memref<8x8x468xf32, #tpu.memory_space<vmem>>, %arg1: memref<468x512xf32, #tpu.memory_space<vmem>>, %arg2: memref<1x512xf32, #tpu.memory_space<vmem>>, %arg3: memref<128x512xf32, #tpu.memory_space<vmem>>, %arg4: memref<64x1xf32, #tpu.memory_space<vmem>>, %arg5: memref<1x1xf32, #tpu.memory_space<vmem>>, %arg6: memref<8x1xf32, #tpu.memory_space<vmem>>, %arg7: memref<8x8x512xf32, #tpu.memory_space<vmem>>) attributes {dimension_semantics = [], scalar_prefetch = 0 : i64, scratch_operands = 1 : i64, tpu.core_type = #tpu.core_type<tc>} {
    %c0 = arith.constant 0 : index
    %c0_0 = arith.constant 0 : index
    %c0_1 = arith.constant 0 : index
    %0 = vector.load %arg0[%c0, %c0_0, %c0_1] : memref<8x8x468xf32, #tpu.memory_space<vmem>>, vector<8x8x468xf32>
    %1 = vector.shape_cast %0 : vector<8x8x468xf32> to vector<64x468xf32>
    %c0_2 = arith.constant 0 : index
    %c0_3 = arith.constant 0 : index
    %2 = vector.load %arg1[%c0_2, %c0_3] : memref<468x512xf32, #tpu.memory_space<vmem>>, vector<468x512xf32>
    %cst = arith.constant dense<0.000000e+00> : vector<64x512xf32>
    %3 = tpu.matmul %1, %2, %cst {dimension_numbers = #tpu.dot_dimension_numbers<[1], [0], [0], [1], [0, 0, 1, 1], [], []>} : vector<64x468xf32>, vector<468x512xf32>, vector<64x512xf32> -> vector<64x512xf32>
    %c0_4 = arith.constant 0 : index
    %c0_5 = arith.constant 0 : index
    %4 = vector.load %arg2[%c0_4, %c0_5] : memref<1x512xf32, #tpu.memory_space<vmem>>, vector<1x512xf32>
    %5 = vector.broadcast %4 : vector<1x512xf32> to vector<64x512xf32>
    %6 = arith.addf %3, %5 : vector<64x512xf32>
    %7 = vector.shape_cast %6 : vector<64x512xf32> to vector<8x8x512xf32>
    %c0_6 = arith.constant 0 : index
    %c0_7 = arith.constant 0 : index
    %c0_8 = arith.constant 0 : index
    %8 = vector.load %arg7[%c0_6, %c0_7, %c0_8] : memref<8x8x512xf32, #tpu.memory_space<vmem>>, vector<8x8x512xf32>
    tpu.vector_store %arg7[%c0_6, %c0_7, %c0_8], %7 {strides = array<i32>} : memref<8x8x512xf32, #tpu.memory_space<vmem>>, vector<8x8x512xf32>,
    %c0_9 = arith.constant 0 : index
    %c0_10 = arith.constant 0 : index
    %9 = vector.load %arg3[%c0_9, %c0_10] : memref<128x512xf32, #tpu.memory_space<vmem>>, vector<128x512xf32>
    %c0_11 = arith.constant 0 : index
    %c0_12 = arith.constant 0 : index
    %c0_13 = arith.constant 0 : index
    %10 = vector.load %arg7[%c0_11, %c0_12, %c0_13] : memref<8x8x512xf32, #tpu.memory_space<vmem>>, vector<8x1x512xf32>
    %11 = vector.shape_cast %10 : vector<8x1x512xf32> to vector<8x512xf32>
    %cst_14 = arith.constant 0.000000e+00 : f32
    %12 = vector.broadcast %cst_14 : f32 to vector<8x128xf32>
    %13 = vector.extract_strided_slice %11 {offsets = [0, 0], sizes = [8, 384], strides = [1, 1]} : vector<8x512xf32> to vector<8x384xf32>
    %14 = arith.negf %13 : vector<8x384xf32>
    %15 = math.exp %14 : vector<8x384xf32>
    %cst_15 = arith.constant 1.000000e+00 : f32
    %16 = vector.broadcast %cst_15 : f32 to vector<8x384xf32>
    %17 = arith.addf %16, %15 : vector<8x384xf32>
    %18 = arith.divf %16, %17 : vector<8x384xf32>
    %19 = vector.extract_strided_slice %18 {offsets = [0, 0], sizes = [8, 128], strides = [1, 1]} : vector<8x384xf32> to vector<8x128xf32>
    %20 = vector.extract_strided_slice %18 {offsets = [0, 128], sizes = [8, 128], strides = [1, 1]} : vector<8x384xf32> to vector<8x128xf32>
    %21 = vector.extract_strided_slice %18 {offsets = [0, 256], sizes = [8, 128], strides = [1, 1]} : vector<8x384xf32> to vector<8x128xf32>
    %22 = vector.extract_strided_slice %11 {offsets = [0, 384], sizes = [8, 128], strides = [1, 1]} : vector<8x512xf32> to vector<8x128xf32>
    %23 = math.tanh %22 : vector<8x128xf32>
    %24 = arith.mulf %20, %12 : vector<8x128xf32>
    %25 = arith.mulf %19, %23 : vector<8x128xf32>
    %26 = arith.addf %24, %25 : vector<8x128xf32>
    %27 = math.tanh %26 : vector<8x128xf32>
    %28 = arith.mulf %21, %27 : vector<8x128xf32>
    %29 = tpu.iota {dimensions = array<i32: 1>} : vector<8x128xi32>
    %c64_i32 = arith.constant 64 : i32
    %30 = vector.broadcast %c64_i32 : i32 to vector<8x128xi32>
    %31 = arith.cmpi slt, %29, %30 : vector<8x128xi32>
    %cst_16 = arith.constant 0.000000e+00 : f32
    %32 = vector.broadcast %cst_16 : f32 to vector<8x128xf32>
    %33 = arith.select %31, %28, %32 : vector<8x128xi1>, vector<8x128xf32>
    %cst_17 = arith.constant 0.000000e+00 : f32
    %34 = vector.broadcast %cst_17 : f32 to vector<8x128xf32>
    %35 = arith.select %31, %26, %34 : vector<8x128xi1>, vector<8x128xf32>
    %cst_18 = arith.constant dense<0.000000e+00> : vector<8x512xf32>
    %36 = tpu.matmul %33, %9, %cst_18 {dimension_numbers = #tpu.dot_dimension_numbers<[1], [0], [0], [1], [0, 0, 1, 1], [], []>} : vector<8x128xf32>, vector<128x512xf32>, vector<8x512xf32> -> vector<8x512xf32>
    %c0_19 = arith.constant 0 : index
    %c1 = arith.constant 1 : index
    %c0_20 = arith.constant 0 : index
    %37 = vector.load %arg7[%c0_19, %c1, %c0_20] : memref<8x8x512xf32, #tpu.memory_space<vmem>>, vector<8x1x512xf32>
    %38 = vector.shape_cast %37 : vector<8x1x512xf32> to vector<8x512xf32>
    %39 = arith.addf %36, %38 : vector<8x512xf32>
    %40 = vector.extract_strided_slice %39 {offsets = [0, 0], sizes = [8, 384], strides = [1, 1]} : vector<8x512xf32> to vector<8x384xf32>
    %41 = arith.negf %40 : vector<8x384xf32>
    %42 = math.exp %41 : vector<8x384xf32>
    %cst_21 = arith.constant 1.000000e+00 : f32
    %43 = vector.broadcast %cst_21 : f32 to vector<8x384xf32>
    %44 = arith.addf %43, %42 : vector<8x384xf32>
    %45 = arith.divf %43, %44 : vector<8x384xf32>
    %46 = vector.extract_strided_slice %45 {offsets = [0, 0], sizes = [8, 128], strides = [1, 1]} : vector<8x384xf32> to vector<8x128xf32>
    %47 = vector.extract_strided_slice %45 {offsets = [0, 128], sizes = [8, 128], strides = [1, 1]} : vector<8x384xf32> to vector<8x128xf32>
    %48 = vector.extract_strided_slice %45 {offsets = [0, 256], sizes = [8, 128], strides = [1, 1]} : vector<8x384xf32> to vector<8x128xf32>
    %49 = vector.extract_strided_slice %39 {offsets = [0, 384], sizes = [8, 128], strides = [1, 1]} : vector<8x512xf32> to vector<8x128xf32>
    %50 = math.tanh %49 : vector<8x128xf32>
    %51 = arith.mulf %47, %35 : vector<8x128xf32>
    %52 = arith.mulf %46, %50 : vector<8x128xf32>
    %53 = arith.addf %51, %52 : vector<8x128xf32>
    %54 = math.tanh %53 : vector<8x128xf32>
    %55 = arith.mulf %48, %54 : vector<8x128xf32>
    %cst_22 = arith.constant dense<0.000000e+00> : vector<8x512xf32>
    %56 = tpu.matmul %55, %9, %cst_22 {dimension_numbers = #tpu.dot_dimension_numbers<[1], [0], [0], [1], [0, 0, 1, 1], [], []>} : vector<8x128xf32>, vector<128x512xf32>, vector<8x512xf32> -> vector<8x512xf32>
    %c0_23 = arith.constant 0 : index
    %c2 = arith.constant 2 : index
    %c0_24 = arith.constant 0 : index
    %57 = vector.load %arg7[%c0_23, %c2, %c0_24] : memref<8x8x512xf32, #tpu.memory_space<vmem>>, vector<8x1x512xf32>
    %58 = vector.shape_cast %57 : vector<8x1x512xf32> to vector<8x512xf32>
    %59 = arith.addf %56, %58 : vector<8x512xf32>
    %60 = vector.extract_strided_slice %59 {offsets = [0, 0], sizes = [8, 384], strides = [1, 1]} : vector<8x512xf32> to vector<8x384xf32>
    %61 = arith.negf %60 : vector<8x384xf32>
    %62 = math.exp %61 : vector<8x384xf32>
    %cst_25 = arith.constant 1.000000e+00 : f32
    %63 = vector.broadcast %cst_25 : f32 to vector<8x384xf32>
    %64 = arith.addf %63, %62 : vector<8x384xf32>
    %65 = arith.divf %63, %64 : vector<8x384xf32>
    %66 = vector.extract_strided_slice %65 {offsets = [0, 0], sizes = [8, 128], strides = [1, 1]} : vector<8x384xf32> to vector<8x128xf32>
    %67 = vector.extract_strided_slice %65 {offsets = [0, 128], sizes = [8, 128], strides = [1, 1]} : vector<8x384xf32> to vector<8x128xf32>
    %68 = vector.extract_strided_slice %65 {offsets = [0, 256], sizes = [8, 128], strides = [1, 1]} : vector<8x384xf32> to vector<8x128xf32>
    %69 = vector.extract_strided_slice %59 {offsets = [0, 384], sizes = [8, 128], strides = [1, 1]} : vector<8x512xf32> to vector<8x128xf32>
    %70 = math.tanh %69 : vector<8x128xf32>
    %71 = arith.mulf %67, %53 : vector<8x128xf32>
    %72 = arith.mulf %66, %70 : vector<8x128xf32>
    %73 = arith.addf %71, %72 : vector<8x128xf32>
    %74 = math.tanh %73 : vector<8x128xf32>
    %75 = arith.mulf %68, %74 : vector<8x128xf32>
    %cst_26 = arith.constant dense<0.000000e+00> : vector<8x512xf32>
    %76 = tpu.matmul %75, %9, %cst_26 {dimension_numbers = #tpu.dot_dimension_numbers<[1], [0], [0], [1], [0, 0, 1, 1], [], []>} : vector<8x128xf32>, vector<128x512xf32>, vector<8x512xf32> -> vector<8x512xf32>
    %c0_27 = arith.constant 0 : index
    %c3 = arith.constant 3 : index
    %c0_28 = arith.constant 0 : index
    %77 = vector.load %arg7[%c0_27, %c3, %c0_28] : memref<8x8x512xf32, #tpu.memory_space<vmem>>, vector<8x1x512xf32>
    %78 = vector.shape_cast %77 : vector<8x1x512xf32> to vector<8x512xf32>
    %79 = arith.addf %76, %78 : vector<8x512xf32>
    %80 = vector.extract_strided_slice %79 {offsets = [0, 0], sizes = [8, 384], strides = [1, 1]} : vector<8x512xf32> to vector<8x384xf32>
    %81 = arith.negf %80 : vector<8x384xf32>
    %82 = math.exp %81 : vector<8x384xf32>
    %cst_29 = arith.constant 1.000000e+00 : f32
    %83 = vector.broadcast %cst_29 : f32 to vector<8x384xf32>
    %84 = arith.addf %83, %82 : vector<8x384xf32>
    %85 = arith.divf %83, %84 : vector<8x384xf32>
    %86 = vector.extract_strided_slice %85 {offsets = [0, 0], sizes = [8, 128], strides = [1, 1]} : vector<8x384xf32> to vector<8x128xf32>
    %87 = vector.extract_strided_slice %85 {offsets = [0, 128], sizes = [8, 128], strides = [1, 1]} : vector<8x384xf32> to vector<8x128xf32>
    %88 = vector.extract_strided_slice %85 {offsets = [0, 256], sizes = [8, 128], strides = [1, 1]} : vector<8x384xf32> to vector<8x128xf32>
    %89 = vector.extract_strided_slice %79 {offsets = [0, 384], sizes = [8, 128], strides = [1, 1]} : vector<8x512xf32> to vector<8x128xf32>
    %90 = math.tanh %89 : vector<8x128xf32>
    %91 = arith.mulf %87, %73 : vector<8x128xf32>
    %92 = arith.mulf %86, %90 : vector<8x128xf32>
    %93 = arith.addf %91, %92 : vector<8x128xf32>
    %94 = math.tanh %93 : vector<8x128xf32>
    %95 = arith.mulf %88, %94 : vector<8x128xf32>
    %cst_30 = arith.constant dense<0.000000e+00> : vector<8x512xf32>
    %96 = tpu.matmul %95, %9, %cst_30 {dimension_numbers = #tpu.dot_dimension_numbers<[1], [0], [0], [1], [0, 0, 1, 1], [], []>} : vector<8x128xf32>, vector<128x512xf32>, vector<8x512xf32> -> vector<8x512xf32>
    %c0_31 = arith.constant 0 : index
    %c4 = arith.constant 4 : index
    %c0_32 = arith.constant 0 : index
    %97 = vector.load %arg7[%c0_31, %c4, %c0_32] : memref<8x8x512xf32, #tpu.memory_space<vmem>>, vector<8x1x512xf32>
    %98 = vector.shape_cast %97 : vector<8x1x512xf32> to vector<8x512xf32>
    %99 = arith.addf %96, %98 : vector<8x512xf32>
    %100 = vector.extract_strided_slice %99 {offsets = [0, 0], sizes = [8, 384], strides = [1, 1]} : vector<8x512xf32> to vector<8x384xf32>
    %101 = arith.negf %100 : vector<8x384xf32>
    %102 = math.exp %101 : vector<8x384xf32>
    %cst_33 = arith.constant 1.000000e+00 : f32
    %103 = vector.broadcast %cst_33 : f32 to vector<8x384xf32>
    %104 = arith.addf %103, %102 : vector<8x384xf32>
    %105 = arith.divf %103, %104 : vector<8x384xf32>
    %106 = vector.extract_strided_slice %105 {offsets = [0, 0], sizes = [8, 128], strides = [1, 1]} : vector<8x384xf32> to vector<8x128xf32>
    %107 = vector.extract_strided_slice %105 {offsets = [0, 128], sizes = [8, 128], strides = [1, 1]} : vector<8x384xf32> to vector<8x128xf32>
    %108 = vector.extract_strided_slice %105 {offsets = [0, 256], sizes = [8, 128], strides = [1, 1]} : vector<8x384xf32> to vector<8x128xf32>
    %109 = vector.extract_strided_slice %99 {offsets = [0, 384], sizes = [8, 128], strides = [1, 1]} : vector<8x512xf32> to vector<8x128xf32>
    %110 = math.tanh %109 : vector<8x128xf32>
    %111 = arith.mulf %107, %93 : vector<8x128xf32>
    %112 = arith.mulf %106, %110 : vector<8x128xf32>
    %113 = arith.addf %111, %112 : vector<8x128xf32>
    %114 = math.tanh %113 : vector<8x128xf32>
    %115 = arith.mulf %108, %114 : vector<8x128xf32>
    %cst_34 = arith.constant dense<0.000000e+00> : vector<8x512xf32>
    %116 = tpu.matmul %115, %9, %cst_34 {dimension_numbers = #tpu.dot_dimension_numbers<[1], [0], [0], [1], [0, 0, 1, 1], [], []>} : vector<8x128xf32>, vector<128x512xf32>, vector<8x512xf32> -> vector<8x512xf32>
    %c0_35 = arith.constant 0 : index
    %c5 = arith.constant 5 : index
    %c0_36 = arith.constant 0 : index
    %117 = vector.load %arg7[%c0_35, %c5, %c0_36] : memref<8x8x512xf32, #tpu.memory_space<vmem>>, vector<8x1x512xf32>
    %118 = vector.shape_cast %117 : vector<8x1x512xf32> to vector<8x512xf32>
    %119 = arith.addf %116, %118 : vector<8x512xf32>
    %120 = vector.extract_strided_slice %119 {offsets = [0, 0], sizes = [8, 384], strides = [1, 1]} : vector<8x512xf32> to vector<8x384xf32>
    %121 = arith.negf %120 : vector<8x384xf32>
    %122 = math.exp %121 : vector<8x384xf32>
    %cst_37 = arith.constant 1.000000e+00 : f32
    %123 = vector.broadcast %cst_37 : f32 to vector<8x384xf32>
    %124 = arith.addf %123, %122 : vector<8x384xf32>
    %125 = arith.divf %123, %124 : vector<8x384xf32>
    %126 = vector.extract_strided_slice %125 {offsets = [0, 0], sizes = [8, 128], strides = [1, 1]} : vector<8x384xf32> to vector<8x128xf32>
    %127 = vector.extract_strided_slice %125 {offsets = [0, 128], sizes = [8, 128], strides = [1, 1]} : vector<8x384xf32> to vector<8x128xf32>
    %128 = vector.extract_strided_slice %125 {offsets = [0, 256], sizes = [8, 128], strides = [1, 1]} : vector<8x384xf32> to vector<8x128xf32>
    %129 = vector.extract_strided_slice %119 {offsets = [0, 384], sizes = [8, 128], strides = [1, 1]} : vector<8x512xf32> to vector<8x128xf32>
    %130 = math.tanh %129 : vector<8x128xf32>
    %131 = arith.mulf %127, %113 : vector<8x128xf32>
    %132 = arith.mulf %126, %130 : vector<8x128xf32>
    %133 = arith.addf %131, %132 : vector<8x128xf32>
    %134 = math.tanh %133 : vector<8x128xf32>
    %135 = arith.mulf %128, %134 : vector<8x128xf32>
    %cst_38 = arith.constant dense<0.000000e+00> : vector<8x512xf32>
    %136 = tpu.matmul %135, %9, %cst_38 {dimension_numbers = #tpu.dot_dimension_numbers<[1], [0], [0], [1], [0, 0, 1, 1], [], []>} : vector<8x128xf32>, vector<128x512xf32>, vector<8x512xf32> -> vector<8x512xf32>
    %c0_39 = arith.constant 0 : index
    %c6 = arith.constant 6 : index
    %c0_40 = arith.constant 0 : index
    %137 = vector.load %arg7[%c0_39, %c6, %c0_40] : memref<8x8x512xf32, #tpu.memory_space<vmem>>, vector<8x1x512xf32>
    %138 = vector.shape_cast %137 : vector<8x1x512xf32> to vector<8x512xf32>
    %139 = arith.addf %136, %138 : vector<8x512xf32>
    %140 = vector.extract_strided_slice %139 {offsets = [0, 0], sizes = [8, 384], strides = [1, 1]} : vector<8x512xf32> to vector<8x384xf32>
    %141 = arith.negf %140 : vector<8x384xf32>
    %142 = math.exp %141 : vector<8x384xf32>
    %cst_41 = arith.constant 1.000000e+00 : f32
    %143 = vector.broadcast %cst_41 : f32 to vector<8x384xf32>
    %144 = arith.addf %143, %142 : vector<8x384xf32>
    %145 = arith.divf %143, %144 : vector<8x384xf32>
    %146 = vector.extract_strided_slice %145 {offsets = [0, 0], sizes = [8, 128], strides = [1, 1]} : vector<8x384xf32> to vector<8x128xf32>
    %147 = vector.extract_strided_slice %145 {offsets = [0, 128], sizes = [8, 128], strides = [1, 1]} : vector<8x384xf32> to vector<8x128xf32>
    %148 = vector.extract_strided_slice %145 {offsets = [0, 256], sizes = [8, 128], strides = [1, 1]} : vector<8x384xf32> to vector<8x128xf32>
    %149 = vector.extract_strided_slice %139 {offsets = [0, 384], sizes = [8, 128], strides = [1, 1]} : vector<8x512xf32> to vector<8x128xf32>
    %150 = math.tanh %149 : vector<8x128xf32>
    %151 = arith.mulf %147, %133 : vector<8x128xf32>
    %152 = arith.mulf %146, %150 : vector<8x128xf32>
    %153 = arith.addf %151, %152 : vector<8x128xf32>
    %154 = math.tanh %153 : vector<8x128xf32>
    %155 = arith.mulf %148, %154 : vector<8x128xf32>
    %cst_42 = arith.constant dense<0.000000e+00> : vector<8x512xf32>
    %156 = tpu.matmul %155, %9, %cst_42 {dimension_numbers = #tpu.dot_dimension_numbers<[1], [0], [0], [1], [0, 0, 1, 1], [], []>} : vector<8x128xf32>, vector<128x512xf32>, vector<8x512xf32> -> vector<8x512xf32>
    %c0_43 = arith.constant 0 : index
    %c7 = arith.constant 7 : index
    %c0_44 = arith.constant 0 : index
    %157 = vector.load %arg7[%c0_43, %c7, %c0_44] : memref<8x8x512xf32, #tpu.memory_space<vmem>>, vector<8x1x512xf32>
    %158 = vector.shape_cast %157 : vector<8x1x512xf32> to vector<8x512xf32>
    %159 = arith.addf %156, %158 : vector<8x512xf32>
    %160 = vector.extract_strided_slice %159 {offsets = [0, 0], sizes = [8, 384], strides = [1, 1]} : vector<8x512xf32> to vector<8x384xf32>
    %161 = arith.negf %160 : vector<8x384xf32>
    %162 = math.exp %161 : vector<8x384xf32>
    %cst_45 = arith.constant 1.000000e+00 : f32
    %163 = vector.broadcast %cst_45 : f32 to vector<8x384xf32>
    %164 = arith.addf %163, %162 : vector<8x384xf32>
    %165 = arith.divf %163, %164 : vector<8x384xf32>
    %166 = vector.extract_strided_slice %165 {offsets = [0, 0], sizes = [8, 128], strides = [1, 1]} : vector<8x384xf32> to vector<8x128xf32>
    %167 = vector.extract_strided_slice %165 {offsets = [0, 128], sizes = [8, 128], strides = [1, 1]} : vector<8x384xf32> to vector<8x128xf32>
    %168 = vector.extract_strided_slice %165 {offsets = [0, 256], sizes = [8, 128], strides = [1, 1]} : vector<8x384xf32> to vector<8x128xf32>
    %169 = vector.extract_strided_slice %159 {offsets = [0, 384], sizes = [8, 128], strides = [1, 1]} : vector<8x512xf32> to vector<8x128xf32>
    %170 = math.tanh %169 : vector<8x128xf32>
    %171 = arith.mulf %167, %153 : vector<8x128xf32>
    %172 = arith.mulf %166, %170 : vector<8x128xf32>
    %173 = arith.addf %171, %172 : vector<8x128xf32>
    %174 = math.tanh %173 : vector<8x128xf32>
    %175 = arith.mulf %168, %174 : vector<8x128xf32>
    %cst_46 = arith.constant dense<0.000000e+00> : vector<8x512xf32>
    %176 = tpu.matmul %175, %9, %cst_46 {dimension_numbers = #tpu.dot_dimension_numbers<[1], [0], [0], [1], [0, 0, 1, 1], [], []>} : vector<8x128xf32>, vector<128x512xf32>, vector<8x512xf32> -> vector<8x512xf32>
    %c0_47 = arith.constant 0 : index
    %c0_48 = arith.constant 0 : index
    %177 = vector.load %arg2[%c0_47, %c0_48] : memref<1x512xf32, #tpu.memory_space<vmem>>, vector<1x512xf32>
    %178 = vector.broadcast %177 : vector<1x512xf32> to vector<8x512xf32>
    %179 = arith.addf %176, %178 : vector<8x512xf32>
    %180 = vector.extract_strided_slice %179 {offsets = [0, 0], sizes = [8, 384], strides = [1, 1]} : vector<8x512xf32> to vector<8x384xf32>
    %181 = arith.negf %180 : vector<8x384xf32>
    %182 = math.exp %181 : vector<8x384xf32>
    %cst_49 = arith.constant 1.000000e+00 : f32
    %183 = vector.broadcast %cst_49 : f32 to vector<8x384xf32>
    %184 = arith.addf %183, %182 : vector<8x384xf32>
    %185 = arith.divf %183, %184 : vector<8x384xf32>
    %186 = vector.extract_strided_slice %185 {offsets = [0, 0], sizes = [8, 128], strides = [1, 1]} : vector<8x384xf32> to vector<8x128xf32>
    %187 = vector.extract_strided_slice %185 {offsets = [0, 128], sizes = [8, 128], strides = [1, 1]} : vector<8x384xf32> to vector<8x128xf32>
    %188 = vector.extract_strided_slice %185 {offsets = [0, 256], sizes = [8, 128], strides = [1, 1]} : vector<8x384xf32> to vector<8x128xf32>
    %189 = vector.extract_strided_slice %179 {offsets = [0, 384], sizes = [8, 128], strides = [1, 1]} : vector<8x512xf32> to vector<8x128xf32>
    %190 = math.tanh %189 : vector<8x128xf32>
    %191 = arith.mulf %187, %173 : vector<8x128xf32>
    %192 = arith.mulf %186, %190 : vector<8x128xf32>
    %193 = arith.addf %191, %192 : vector<8x128xf32>
    %194 = math.tanh %193 : vector<8x128xf32>
    %195 = arith.mulf %188, %194 : vector<8x128xf32>
    %196 = vector.extract_strided_slice %195 {offsets = [0, 64], sizes = [8, 64], strides = [1, 1]} : vector<8x128xf32> to vector<8x64xf32>
    %c0_50 = arith.constant 0 : index
    %c0_51 = arith.constant 0 : index
    %197 = vector.load %arg4[%c0_50, %c0_51] : memref<64x1xf32, #tpu.memory_space<vmem>>, vector<64x1xf32>
    %cst_52 = arith.constant dense<0.000000e+00> : vector<8x1xf32>
    %198 = tpu.matmul %196, %197, %cst_52 {dimension_numbers = #tpu.dot_dimension_numbers<[1], [0], [0], [1], [0, 0, 1, 1], [], []>} : vector<8x64xf32>, vector<64x1xf32>, vector<8x1xf32> -> vector<8x1xf32>
    %c0_53 = arith.constant 0 : index
    %c0_54 = arith.constant 0 : index
    %199 = vector.load %arg5[%c0_53, %c0_54] : memref<1x1xf32, #tpu.memory_space<vmem>>, vector<1x1xf32>
    %200 = vector.broadcast %199 : vector<1x1xf32> to vector<8x1xf32>
    %201 = arith.addf %198, %200 : vector<8x1xf32>
    %c0_55 = arith.constant 0 : index
    %c0_56 = arith.constant 0 : index
    %202 = vector.load %arg6[%c0_55, %c0_56] : memref<8x1xf32, #tpu.memory_space<vmem>>, vector<8x1xf32>
    tpu.vector_store %arg6[%c0_55, %c0_56], %201 {strides = array<i32>} : memref<8x1xf32, #tpu.memory_space<vmem>>, vector<8x1xf32>,
    return
  }
}

</mosaic_0001>

<llo_original>
// kernel: tpu_custom_call.1
$region0: #{tpu_custom_call.1}
  #allocation0 [shape = 'u32[]', space=smem, size = 0x4, offset = 0x4, fixed_abs, tag = 'smem constant byte address 0x4 - core index']
  #allocation1 [shape = 'u32[144,128]{1,0:T(1,128)}', space=vmem, size = 0x12000, scoped, tag = 'internal scratch']
  #allocation2 [shape = 'f32[8,8,512]{2,1,0:T(8,128)}', space=vmem, size = 0x20000, scoped, tag = 'scratch operand']
  #allocation3 [shape = 'f32[1,1]{1,0:T(1,128)S(1)}', space=vmem, size = 0x200, scoped, tag = 'scoped memory for tpu_custom_call.1']
  %s0 = inlined_call_operand.hbm [shape: f32[8,8,468], index: 0, kind: input, shape index: {}]
  %s1 = inlined_call_operand.hbm [shape: f32[468,512], index: 1, kind: input, shape index: {}]
  %s2 = inlined_call_operand.vmem [shape: f32[1,512], index: 2, kind: input, shape index: {}]
  %s3 = inlined_call_operand.hbm [shape: f32[128,512], index: 3, kind: input, shape index: {}]
  %s4 = inlined_call_operand.vmem [shape: f32[64,1], index: 4, kind: input, shape index: {}]
  %s5 = inlined_call_operand.<no memory space> [shape: f32[1,1], index: 5, kind: input, shape index: {}]
  %s6 = inlined_call_operand.vmem [shape: f32[8,1], index: 6, kind: output, shape index: {}]
  %s7 = sld [smem:[#allocation0]]
  $region46: #{tpu_custom_call.1} parent=0
    _
  %s9 = ssub.s32 1, %s7
  %s10 = scalar_select 0, %s9, %s7
  %v11 = vstv %s5
  %12 = vst [vmem:[#allocation3] sm:$0x1] %v11
  $region1: #{tpu_custom_call.1} parent=0
    #allocation4 [shape = 'u8[131072]{0}', space=vmem, size = 0x20000, scoped, tag = 'input window, operand 0, single buffered']
    #allocation5 [shape = 's32[1]{0}', space=sflag, size = 0x4, scoped, tag = 'scoped memory for tpu_custom_call.1']
    #allocation6 [shape = 'u8[966656]{0}', space=vmem, size = 0xec000, scoped, tag = 'input window, operand 1, single buffered']
    #allocation7 [shape = 's32[1]{0}', space=sflag, size = 0x4, scoped, tag = 'scoped memory for tpu_custom_call.1']
    #allocation8 [shape = 'u8[262144]{0}', space=vmem, size = 0x40000, scoped, tag = 'input window, operand 3, single buffered']
    %13 = vsyncpa [#allocation5], 0
    %14 = vsyncpa [#allocation7], 0
    // Predicated region
    $region2: #{tpu_custom_call.1} parent=1 // pred_check
      _
    $region3: #{tpu_custom_call.1} parent=1 // pred_check_branch
      %16 = sbr.rel (0) target = $region5
    $region4: #{tpu_custom_call.1} parent=1 // pred_region
      %s18 = ssub.s32 4096, 4096
      %19 = vsyncadd [#allocation5], %s18
      %s20 = sshll.u32 [#allocation4], 4
      %s21 = int_to_ptr.vmem [resolvable:$true] %s20
      %26 = dma.hbm_to_vmem [thread:$0]  %s0, 4096, %s21, [#allocation5], 512, 512, 32
    $region5: #{tpu_custom_call.1} parent=1 // pred_fallthru
      _
    // Predicated region
    $region6: #{tpu_custom_call.1} parent=1 // pred_check
      _
    $region7: #{tpu_custom_call.1} parent=1 // pred_check_branch
      %28 = sbr.rel (0) target = $region9
    $region8: #{tpu_custom_call.1} parent=1 // pred_region
      %s30 = ssub.s32 30208, 30208
      %31 = vsyncadd [#allocation7], %s30
      %s32 = sshll.u32 [#allocation6], 4
      %s33 = int_to_ptr.vmem [resolvable:$true] %s32
      %38 = dma.hbm_to_vmem [thread:$0]  %s1, 30208, %s33, [#allocation7], 512, 512, 32
    $region9: #{tpu_custom_call.1} parent=1 // pred_fallthru
      _
    // Predicated region
    $region10: #{tpu_custom_call.1} parent=1 // pred_check
      _
    $region11: #{tpu_custom_call.1} parent=1 // pred_check_branch
      %40 = sbr.rel (0) target = $region13
    $region12: #{tpu_custom_call.1} parent=1 // pred_region
      _
    $region13: #{tpu_custom_call.1} parent=1 // pred_fallthru
      _
    // Predicated region
    $region14: #{tpu_custom_call.1} parent=1 // pred_check
      _
    $region15: #{tpu_custom_call.1} parent=1 // pred_check_branch
      %42 = sbr.rel (0) target = $region17
    $region16: #{tpu_custom_call.1} parent=1 // pred_region
      %s44 = ssub.s32 8192, 8192
      %45 = vsyncadd [#allocation7], %s44
      %s46 = sshll.u32 [#allocation8], 4
      %s47 = int_to_ptr.vmem [resolvable:$true] %s46
      %52 = dma.hbm_to_vmem [thread:$0]  %s3, 8192, %s47, [#allocation7], 512, 512, 32
    $region17: #{tpu_custom_call.1} parent=1 // pred_fallthru
      _
    // Predicated region
    $region18: #{tpu_custom_call.1} parent=1 // pred_check
      _
    $region19: #{tpu_custom_call.1} parent=1 // pred_check_branch
      %54 = sbr.rel (0) target = $region21
    $region20: #{tpu_custom_call.1} parent=1 // pred_region
      _
    $region21: #{tpu_custom_call.1} parent=1 // pred_fallthru
      _
    // Predicated region
    $region22: #{tpu_custom_call.1} parent=1 // pred_check
      _
    $region23: #{tpu_custom_call.1} parent=1 // pred_check_branch
      %56 = sbr.rel (0) target = $region25
    $region24: #{tpu_custom_call.1} parent=1 // pred_region
      _
    $region25: #{tpu_custom_call.1} parent=1 // pred_fallthru
      _
    // Predicated region
    $region26: #{tpu_custom_call.1} parent=1 // pred_check
      _
    $region27: #{tpu_custom_call.1} parent=1 // pred_check_branch
      %58 = sbr.rel (0) target = $region29
    $region28: #{tpu_custom_call.1} parent=1 // pred_region
      %59 = dma.done [#allocation5], 4096
    $region29: #{tpu_custom_call.1} parent=1 // pred_fallthru
      _
    // Predicated region
    $region30: #{tpu_custom_call.1} parent=1 // pred_check
      _
    $region31: #{tpu_custom_call.1} parent=1 // pred_check_branch
      %61 = sbr.rel (0) target = $region33
    $region32: #{tpu_custom_call.1} parent=1 // pred_region
      %62 = dma.done [#allocation7], 30208
    $region33: #{tpu_custom_call.1} parent=1 // pred_fallthru
      _
    // Predicated region
    $region34: #{tpu_custom_call.1} parent=1 // pred_check
      _
    $region35: #{tpu_custom_call.1} parent=1 // pred_check_branch
      %64 = sbr.rel (0) target = $region37
    $region36: #{tpu_custom_call.1} parent=1 // pred_region
      %65 = dma.done [#allocation7], 8192
    $region37: #{tpu_custom_call.1} parent=1 // pred_fallthru
      _
    %v66 = vld [vmem:[#allocation4] sm:$0xff]
    %v67 = vld [vmem:[#allocation4 + $0x8] sm:$0xff]
    %v68 = vld [vmem:[#allocation4 + $0x10] sm:$0xff]
    %v69 = vld [vmem:[#allocation4 + $0x18] sm:$0xff]
    %v70 = vld [vmem:[#allocation4 + $0x20] sm:$0xff]
    %v71 = vld [vmem:[#allocation4 + $0x28] sm:$0xff]
    %v72 = vld [vmem:[#allocation4 + $0x30] sm:$0xff]
    %v73 = vld [vmem:[#allocation4 + $0x38] sm:$0xff]
    %v74 = vld [vmem:[#allocation4 + $0x40] sm:$0xff]
    %v75 = vld [vmem:[#allocation4 + $0x48] sm:$0xff]
    %v76 = vld [vmem:[#allocation4 + $0x50] sm:$0xff]
    %v77 = vld [vmem:[#allocation4 + $0x58] sm:$0xff]
    %v78 = vld [vmem:[#allocation4 + $0x60] sm:$0xff]
    %v79 = vld [vmem:[#allocation4 + $0x68] sm:$0xff]
    %v80 = vld [vmem:[#allocation4 + $0x70] sm:$0xff]
    %v81 = vld [vmem:[#allocation4 + $0x78] sm:$0xff]
    %v82 = vld [vmem:[#allocation4 + $0x80] sm:$0xff]
    %v83 = vld [vmem:[#allocation4 + $0x88] sm:$0xff]
    %v84 = vld [vmem:[#allocation4 + $0x90] sm:$0xff]
    %v85 = vld [vmem:[#allocation4 + $0x98] sm:$0xff]
    %v86 = vld [vmem:[#allocation4 + $0xa0] sm:$0xff]
    %v87 = vld [vmem:[#allocation4 + $0xa8] sm:$0xff]
    %v88 = vld [vmem:[#allocation4 + $0xb0] sm:$0xff]
    %v89 = vld [vmem:[#allocation4 + $0xb8] sm:$0xff]
    %v90 = vld [vmem:[#allocation4 + $0xc0] sm:$0xff]
    %v91 = vld [vmem:[#allocation4 + $0xc8] sm:$0xff]
    %v92 = vld [vmem:[#allocation4 + $0xd0] sm:$0xff]
    %v93 = vld [vmem:[#allocation4 + $0xd8] sm:$0xff]
    %v94 = vld [vmem:[#allocation4 + $0xe0] sm:$0xff]
    %v95 = vld [vmem:[#allocation4 + $0xe8] sm:$0xff]
    %v96 = vld [vmem:[#allocation4 + $0xf0] sm:$0xff]
    %v97 = vld [vmem:[#allocation4 + $0xf8] sm:$0xff]
    %v98 = vld [vmem:[#allocation6] sm:$0xff]
    %v99 = vld [vmem:[#allocation6 + $0x8] sm:$0xff]
    %v100 = vld [vmem:[#allocation6 + $0x10] sm:$0xff]
    %v101 = vld [vmem:[#allocation6 + $0x18] sm:$0xff]
    %v102 = vld [vmem:[#allocation6 + $0x20] sm:$0xff]
    %v103 = vld [vmem:[#allocation6 + $0x28] sm:$0xff]
    %v104 = vld [vmem:[#allocation6 + $0x30] sm:$0xff]
    %v105 = vld [vmem:[#allocation6 + $0x38] sm:$0xff]
    %v106 = vld [vmem:[#allocation6 + $0x40] sm:$0xff]
    %v107 = vld [vmem:[#allocation6 + $0x48] sm:$0xff]
    %v108 = vld [vmem:[#allocation6 + $0x50] sm:$0xff]
    %v109 = vld [vmem:[#allocation6 + $0x58] sm:$0xff]
    %v110 = vld [vmem:[#allocation6 + $0x60] sm:$0xff]
    %v111 = vld [vmem:[#allocation6 + $0x68] sm:$0xff]
    %v112 = vld [vmem:[#allocation6 + $0x70] sm:$0xff]
    %v113 = vld [vmem:[#allocation6 + $0x78] sm:$0xff]
    %v114 = vld [vmem:[#allocation6 + $0x80] sm:$0xff]
    %v115 = vld [vmem:[#allocation6 + $0x88] sm:$0xff]
    %v116 = vld [vmem:[#allocation6 + $0x90] sm:$0xff]
    %v117 = vld [vmem:[#allocation6 + $0x98] sm:$0xff]
    %v118 = vld [vmem:[#allocation6 + $0xa0] sm:$0xff]
    %v119 = vld [vmem:[#allocation6 + $0xa8] sm:$0xff]
    %v120 = vld [vmem:[#allocation6 + $0xb0] sm:$0xff]
    %v121 = vld [vmem:[#allocation6 + $0xb8] sm:$0xff]
    %v122 = vld [vmem:[#allocation6 + $0xc0] sm:$0xff]
    %v123 = vld [vmem:[#allocation6 + $0xc8] sm:$0xff]
    %v124 = vld [vmem:[#allocation6 + $0xd0] sm:$0xff]
    %v125 = vld [vmem:[#allocation6 + $0xd8] sm:$0xff]
    %v126 = vld [vmem:[#allocation6 + $0xe0] sm:$0xff]
    %v127 = vld [vmem:[#allocation6 + $0xe8] sm:$0xff]
    %v128 = vld [vmem:[#allocation6 + $0xf0] sm:$0xff]
    %v129 = vld [vmem:[#allocation6 + $0xf8] sm:$0xff]
    %v130 = vld [vmem:[#allocation6 + $0x100] sm:$0xff]
    %v131 = vld [vmem:[#allocation6 + $0x108] sm:$0xff]
    %v132 = vld [vmem:[#allocation6 + $0x110] sm:$0xff]
    %v133 = vld [vmem:[#allocation6 + $0x118] sm:$0xff]
    %v134 = vld [vmem:[#allocation6 + $0x120] sm:$0xff]
    %v135 = vld [vmem:[#allocation6 + $0x128] sm:$0xff]
    %v136 = vld [vmem:[#allocation6 + $0x130] sm:$0xff]
    %v137 = vld [vmem:[#allocation6 + $0x138] sm:$0xff]
    %v138 = vld [vmem:[#allocation6 + $0x140] sm:$0xff]
    %v139 = vld [vmem:[#allocation6 + $0x148] sm:$0xff]
    %v140 = vld [vmem:[#allocation6 + $0x150] sm:$0xff]
    %v141 = vld [vmem:[#allocation6 + $0x158] sm:$0xff]
    %v142 = vld [vmem:[#allocation6 + $0x160] sm:$0xff]
    %v143 = vld [vmem:[#allocation6 + $0x168] sm:$0xff]
    %v144 = vld [vmem:[#allocation6 + $0x170] sm:$0xff]
    %v145 = vld [vmem:[#allocation6 + $0x178] sm:$0xff]
    %v146 = vld [vmem:[#allocation6 + $0x180] sm:$0xff]
    %v147 = vld [vmem:[#allocation6 + $0x188] sm:$0xff]
    %v148 = vld [vmem:[#allocation6 + $0x190] sm:$0xff]
    %v149 = vld [vmem:[#allocation6 + $0x198] sm:$0xff]
    %v150 = vld [vmem:[#allocation6 + $0x1a0] sm:$0xff]
    %v151 = vld [vmem:[#allocation6 + $0x1a8] sm:$0xff]
    %v152 = vld [vmem:[#allocation6 + $0x1b0] sm:$0xff]
    %v153 = vld [vmem:[#allocation6 + $0x1b8] sm:$0xff]
    %v154 = vld [vmem:[#allocation6 + $0x1c0] sm:$0xff]
    %v155 = vld [vmem:[#allocation6 + $0x1c8] sm:$0xff]
    %v156 = vld [vmem:[#allocation6 + $0x1d0] sm:$0xff]
    %v157 = vld [vmem:[#allocation6 + $0x1d8] sm:$0xff]
    %v158 = vld [vmem:[#allocation6 + $0x1e0] sm:$0xff]
    %v159 = vld [vmem:[#allocation6 + $0x1e8] sm:$0xff]
    %v160 = vld [vmem:[#allocation6 + $0x1f0] sm:$0xff]
    %v161 = vld [vmem:[#allocation6 + $0x1f8] sm:$0xff]
    %v162 = vld [vmem:[#allocation6 + $0x200] sm:$0xff]
    %v163 = vld [vmem:[#allocation6 + $0x208] sm:$0xff]
    %v164 = vld [vmem:[#allocation6 + $0x210] sm:$0xff]
    %v165 = vld [vmem:[#allocation6 + $0x218] sm:$0xff]
    %v166 = vld [vmem:[#allocation6 + $0x220] sm:$0xff]
    %v167 = vld [vmem:[#allocation6 + $0x228] sm:$0xff]
    %v168 = vld [vmem:[#allocation6 + $0x230] sm:$0xff]
    %v169 = vld [vmem:[#allocation6 + $0x238] sm:$0xff]
    %v170 = vld [vmem:[#allocation6 + $0x240] sm:$0xff]
    %v171 = vld [vmem:[#allocation6 + $0x248] sm:$0xff]
    %v172 = vld [vmem:[#allocation6 + $0x250] sm:$0xff]
    %v173 = vld [vmem:[#allocation6 + $0x258] sm:$0xff]
    %v174 = vld [vmem:[#allocation6 + $0x260] sm:$0xff]
    %v175 = vld [vmem:[#allocation6 + $0x268] sm:$0xff]
    %v176 = vld [vmem:[#allocation6 + $0x270] sm:$0xff]
    %v177 = vld [vmem:[#allocation6 + $0x278] sm:$0xff]
    %v178 = vld [vmem:[#allocation6 + $0x280] sm:$0xff]
    %v179 = vld [vmem:[#allocation6 + $0x288] sm:$0xff]
    %v180 = vld [vmem:[#allocation6 + $0x290] sm:$0xff]
    %v181 = vld [vmem:[#allocation6 + $0x298] sm:$0xff]
    %v182 = vld [vmem:[#allocation6 + $0x2a0] sm:$0xff]
    %v183 = vld [vmem:[#allocation6 + $0x2a8] sm:$0xff]
    %v184 = vld [vmem:[#allocation6 + $0x2b0] sm:$0xff]
    %v185 = vld [vmem:[#allocation6 + $0x2b8] sm:$0xff]
    %v186 = vld [vmem:[#allocation6 + $0x2c0] sm:$0xff]
    %v187 = vld [vmem:[#allocation6 + $0x2c8] sm:$0xff]
    %v188 = vld [vmem:[#allocation6 + $0x2d0] sm:$0xff]
    %v189 = vld [vmem:[#allocation6 + $0x2d8] sm:$0xff]
    %v190 = vld [vmem:[#allocation6 + $0x2e0] sm:$0xff]
    %v191 = vld [vmem:[#allocation6 + $0x2e8] sm:$0xff]
    %v192 = vld [vmem:[#allocation6 + $0x2f0] sm:$0xff]
    %v193 = vld [vmem:[#allocation6 + $0x2f8] sm:$0xff]
    %v194 = vld [vmem:[#allocation6 + $0x300] sm:$0xff]
    %v195 = vld [vmem:[#allocation6 + $0x308] sm:$0xff]
    %v196 = vld [vmem:[#allocation6 + $0x310] sm:$0xff]
    %v197 = vld [vmem:[#allocation6 + $0x318] sm:$0xff]
    %v198 = vld [vmem:[#allocation6 + $0x320] sm:$0xff]
    %v199 = vld [vmem:[#allocation6 + $0x328] sm:$0xff]
    %v200 = vld [vmem:[#allocation6 + $0x330] sm:$0xff]
    %v201 = vld [vmem:[#allocation6 + $0x338] sm:$0xff]
    %v202 = vld [vmem:[#allocation6 + $0x340] sm:$0xff]
    %v203 = vld [vmem:[#allocation6 + $0x348] sm:$0xff]
    %v204 = vld [vmem:[#allocation6 + $0x350] sm:$0xff]
    %v205 = vld [vmem:[#allocation6 + $0x358] sm:$0xff]
    %v206 = vld [vmem:[#allocation6 + $0x360] sm:$0xff]
    %v207 = vld [vmem:[#allocation6 + $0x368] sm:$0xff]
    %v208 = vld [vmem:[#allocation6 + $0x370] sm:$0xff]
    %v209 = vld [vmem:[#allocation6 + $0x378] sm:$0xff]
    %v210 = vld [vmem:[#allocation6 + $0x380] sm:$0xff]
    %v211 = vld [vmem:[#allocation6 + $0x388] sm:$0xff]
    %v212 = vld [vmem:[#allocation6 + $0x390] sm:$0xff]
    %v213 = vld [vmem:[#allocation6 + $0x398] sm:$0xff]
    %v214 = vld [vmem:[#allocation6 + $0x3a0] sm:$0xff]
    %v215 = vld [vmem:[#allocation6 + $0x3a8] sm:$0xff]
    %v216 = vld [vmem:[#allocation6 + $0x3b0] sm:$0xff]
    %v217 = vld [vmem:[#allocation6 + $0x3b8] sm:$0xff]
    %v218 = vld [vmem:[#allocation6 + $0x3c0] sm:$0xff]
    %v219 = vld [vmem:[#allocation6 + $0x3c8] sm:$0xff]
    %v220 = vld [vmem:[#allocation6 + $0x3d0] sm:$0xff]
    %v221 = vld [vmem:[#allocation6 + $0x3d8] sm:$0xff]
    %v222 = vld [vmem:[#allocation6 + $0x3e0] sm:$0xff]
    %v223 = vld [vmem:[#allocation6 + $0x3e8] sm:$0xff]
    %v224 = vld [vmem:[#allocation6 + $0x3f0] sm:$0xff]
    %v225 = vld [vmem:[#allocation6 + $0x3f8] sm:$0xff]
    %v226 = vld [vmem:[#allocation6 + $0x400] sm:$0xff]
    %v227 = vld [vmem:[#allocation6 + $0x408] sm:$0xff]
    %v228 = vld [vmem:[#allocation6 + $0x410] sm:$0xff]
    %v229 = vld [vmem:[#allocation6 + $0x418] sm:$0xff]
    %v230 = vld [vmem:[#allocation6 + $0x420] sm:$0xff]
    %v231 = vld [vmem:[#allocation6 + $0x428] sm:$0xff]
    %v232 = vld [vmem:[#allocation6 + $0x430] sm:$0xff]
    %v233 = vld [vmem:[#allocation6 + $0x438] sm:$0xff]
    %v234 = vld [vmem:[#allocation6 + $0x440] sm:$0xff]
    %v235 = vld [vmem:[#allocation6 + $0x448] sm:$0xff]
    %v236 = vld [vmem:[#allocation6 + $0x450] sm:$0xff]
    %v237 = vld [vmem:[#allocation6 + $0x458] sm:$0xff]
    %v238 = vld [vmem:[#allocation6 + $0x460] sm:$0xff]
    %v239 = vld [vmem:[#allocation6 + $0x468] sm:$0xff]
    %v240 = vld [vmem:[#allocation6 + $0x470] sm:$0xff]
    %v241 = vld [vmem:[#allocation6 + $0x478] sm:$0xff]
    %v242 = vld [vmem:[#allocation6 + $0x480] sm:$0xff]
    %v243 = vld [vmem:[#allocation6 + $0x488] sm:$0xff]
    %v244 = vld [vmem:[#allocation6 + $0x490] sm:$0xff]
    %v245 = vld [vmem:[#allocation6 + $0x498] sm:$0xff]
    %v246 = vld [vmem:[#allocation6 + $0x4a0] sm:$0xff]
    %v247 = vld [vmem:[#allocation6 + $0x4a8] sm:$0xff]
    %v248 = vld [vmem:[#allocation6 + $0x4b0] sm:$0xff]
    %v249 = vld [vmem:[#allocation6 + $0x4b8] sm:$0xff]
    %v250 = vld [vmem:[#allocation6 + $0x4c0] sm:$0xff]
    %v251 = vld [vmem:[#allocation6 + $0x4c8] sm:$0xff]
    %v252 = vld [vmem:[#allocation6 + $0x4d0] sm:$0xff]
    %v253 = vld [vmem:[#allocation6 + $0x4d8] sm:$0xff]
    %v254 = vld [vmem:[#allocation6 + $0x4e0] sm:$0xff]
    %v255 = vld [vmem:[#allocation6 + $0x4e8] sm:$0xff]
    %v256 = vld [vmem:[#allocation6 + $0x4f0] sm:$0xff]
    %v257 = vld [vmem:[#allocation6 + $0x4f8] sm:$0xff]
    %v258 = vld [vmem:[#allocation6 + $0x500] sm:$0xff]
    %v259 = vld [vmem:[#allocation6 + $0x508] sm:$0xff]
    %v260 = vld [vmem:[#allocation6 + $0x510] sm:$0xff]
    %v261 = vld [vmem:[#allocation6 + $0x518] sm:$0xff]
    %v262 = vld [vmem:[#allocation6 + $0x520] sm:$0xff]
    %v263 = vld [vmem:[#allocation6 + $0x528] sm:$0xff]
    %v264 = vld [vmem:[#allocation6 + $0x530] sm:$0xff]
    %v265 = vld [vmem:[#allocation6 + $0x538] sm:$0xff]
    %v266 = vld [vmem:[#allocation6 + $0x540] sm:$0xff]
    %v267 = vld [vmem:[#allocation6 + $0x548] sm:$0xff]
    %v268 = vld [vmem:[#allocation6 + $0x550] sm:$0xff]
    %v269 = vld [vmem:[#allocation6 + $0x558] sm:$0xff]
    %v270 = vld [vmem:[#allocation6 + $0x560] sm:$0xff]
    %v271 = vld [vmem:[#allocation6 + $0x568] sm:$0xff]
    %v272 = vld [vmem:[#allocation6 + $0x570] sm:$0xff]
    %v273 = vld [vmem:[#allocation6 + $0x578] sm:$0xff]
    %v274 = vld [vmem:[#allocation6 + $0x580] sm:$0xff]
    %v275 = vld [vmem:[#allocation6 + $0x588] sm:$0xff]
    %v276 = vld [vmem:[#allocation6 + $0x590] sm:$0xff]
    %v277 = vld [vmem:[#allocation6 + $0x598] sm:$0xff]
    %v278 = vld [vmem:[#allocation6 + $0x5a0] sm:$0xff]
    %v279 = vld [vmem:[#allocation6 + $0x5a8] sm:$0xff]
    %v280 = vld [vmem:[#allocation6 + $0x5b0] sm:$0xff]
    %v281 = vld [vmem:[#allocation6 + $0x5b8] sm:$0xff]
    %v282 = vld [vmem:[#allocation6 + $0x5c0] sm:$0xff]
    %v283 = vld [vmem:[#allocation6 + $0x5c8] sm:$0xff]
    %v284 = vld [vmem:[#allocation6 + $0x5d0] sm:$0xff]
    %v285 = vld [vmem:[#allocation6 + $0x5d8] sm:$0xff]
    %v286 = vld [vmem:[#allocation6 + $0x5e0] sm:$0xff]
    %v287 = vld [vmem:[#allocation6 + $0x5e8] sm:$0xff]
    %v288 = vld [vmem:[#allocation6 + $0x5f0] sm:$0xff]
    %v289 = vld [vmem:[#allocation6 + $0x5f8] sm:$0xff]
    %v290 = vld [vmem:[#allocation6 + $0x600] sm:$0xff]
    %v291 = vld [vmem:[#allocation6 + $0x608] sm:$0xff]
    %v292 = vld [vmem:[#allocation6 + $0x610] sm:$0xff]
    %v293 = vld [vmem:[#allocation6 + $0x618] sm:$0xff]
    %v294 = vld [vmem:[#allocation6 + $0x620] sm:$0xff]
    %v295 = vld [vmem:[#allocation6 + $0x628] sm:$0xff]
    %v296 = vld [vmem:[#allocation6 + $0x630] sm:$0xff]
    %v297 = vld [vmem:[#allocation6 + $0x638] sm:$0xff]
    %v298 = vld [vmem:[#allocation6 + $0x640] sm:$0xff]
    %v299 = vld [vmem:[#allocation6 + $0x648] sm:$0xff]
    %v300 = vld [vmem:[#allocation6 + $0x650] sm:$0xff]
    %v301 = vld [vmem:[#allocation6 + $0x658] sm:$0xff]
    %v302 = vld [vmem:[#allocation6 + $0x660] sm:$0xff]
    %v303 = vld [vmem:[#allocation6 + $0x668] sm:$0xff]
    %v304 = vld [vmem:[#allocation6 + $0x670] sm:$0xff]
    %v305 = vld [vmem:[#allocation6 + $0x678] sm:$0xff]
    %v306 = vld [vmem:[#allocation6 + $0x680] sm:$0xff]
    %v307 = vld [vmem:[#allocation6 + $0x688] sm:$0xff]
    %v308 = vld [vmem:[#allocation6 + $0x690] sm:$0xff]
    %v309 = vld [vmem:[#allocation6 + $0x698] sm:$0xff]
    %v310 = vld [vmem:[#allocation6 + $0x6a0] sm:$0xff]
    %v311 = vld [vmem:[#allocation6 + $0x6a8] sm:$0xff]
    %v312 = vld [vmem:[#allocation6 + $0x6b0] sm:$0xff]
    %v313 = vld [vmem:[#allocation6 + $0x6b8] sm:$0xff]
    %v314 = vld [vmem:[#allocation6 + $0x6c0] sm:$0xff]
    %v315 = vld [vmem:[#allocation6 + $0x6c8] sm:$0xff]
    %v316 = vld [vmem:[#allocation6 + $0x6d0] sm:$0xff]
    %v317 = vld [vmem:[#allocation6 + $0x6d8] sm:$0xff]
    %v318 = vld [vmem:[#allocation6 + $0x6e0] sm:$0xff]
    %v319 = vld [vmem:[#allocation6 + $0x6e8] sm:$0xff]
    %v320 = vld [vmem:[#allocation6 + $0x6f0] sm:$0xff]
    %v321 = vld [vmem:[#allocation6 + $0x6f8] sm:$0xff]
    %v322 = vld [vmem:[#allocation6 + $0x700] sm:$0xff]
    %v323 = vld [vmem:[#allocation6 + $0x708] sm:$0xff]
    %v324 = vld [vmem:[#allocation6 + $0x710] sm:$0xff]
    %v325 = vld [vmem:[#allocation6 + $0x718] sm:$0xff]
    %v326 = vld [vmem:[#allocation6 + $0x720] sm:$0xff]
    %v327 = vld [vmem:[#allocation6 + $0x728] sm:$0xff]
    %v328 = vld [vmem:[#allocation6 + $0x730] sm:$0xff]
    %v329 = vld [vmem:[#allocation6 + $0x738] sm:$0xff]
    %v330 = vld [vmem:[#allocation6 + $0x740] sm:$0xf]
    %v331 = vld [vmem:[#allocation6 + $0x748] sm:$0xf]
    %v332 = vld [vmem:[#allocation6 + $0x750] sm:$0xf]
    %v333 = vld [vmem:[#allocation6 + $0x758] sm:$0xf]
    %v334 = vld [vmem:[%s2] sm:$0xf]
    %v336 = vlaneseq
    %v337 = vshrl.u32 %v336, 7
    %v338 = vsub.s32 0, %v337
    %v339 = vrot.slane %v334, %v338
    %v340 = vlaneseq
    %v341 = vshrl.u32 %v340, 7
    %v342 = vsub.s32 1, %v341
    %v343 = vrot.slane %v334, %v342
    %v344 = vlaneseq
    %v345 = vshrl.u32 %v344, 7
    %v346 = vsub.s32 2, %v345
    %v347 = vrot.slane %v334, %v346
    %v348 = vlaneseq
    %v349 = vshrl.u32 %v348, 7
    %v350 = vsub.s32 3, %v349
    %v351 = vrot.slane %v334, %v350
    %vm356 = vcmask 687104
    %v358 = vsel %vm356, %v69, 0
    %v361 = vsel %vm356, %v73, 0
    %v364 = vsel %vm356, %v77, 0
    %v367 = vsel %vm356, %v81, 0
    %v370 = vsel %vm356, %v85, 0
    %v373 = vsel %vm356, %v89, 0
    %v376 = vsel %vm356, %v93, 0
    %v379 = vsel %vm356, %v97, 0
    %vm381 = vcmask 1043456
    %v383 = vsel %vm381, %v330, 0
    %v386 = vsel %vm381, %v331, 0
    %v389 = vsel %vm381, %v332, 0
    %v392 = vsel %vm381, %v333, 0
    %394 = vmatprep.subr.mxu0 %v99
    %395 = vmatpush1.msra.mxu0 %v98
    %396 = vmatprep.subr.mxu0 %v103
    %397 = vmatpush1.msra.mxu0 %v102
    %398 = vmatprep.subr.mxu0 %v107
    %399 = vmatpush1.msra.mxu0 %v106
    %400 = vmatprep.subr.mxu0 %v111
    %401 = vmatpush1.msra.mxu0 %v110
    %402 = vmatprep.subr.mxu0 %v115
    %403 = vmatpush1.msra.mxu0 %v114
    %404 = vmatprep.subr.mxu0 %v119
    %405 = vmatpush1.msra.mxu0 %v118
    %406 = vmatprep.subr.mxu0 %v123
    %407 = vmatpush1.msra.mxu0 %v122
    %408 = vmatprep.subr.mxu0 %v127
    %409 = vmatpush1.msra.mxu0 %v126
    %410 = vmatprep.subr.mxu0 %v131
    %411 = vmatpush1.msra.mxu0 %v130
    %412 = vmatprep.subr.mxu0 %v135
    %413 = vmatpush1.msra.mxu0 %v134
    %414 = vmatprep.subr.mxu0 %v139
    %415 = vmatpush1.msra.mxu0 %v138
    %416 = vmatprep.subr.mxu0 %v143
    %417 = vmatpush1.msra.mxu0 %v142
    %418 = vmatprep.subr.mxu0 %v147
    %419 = vmatpush1.msra.mxu0 %v146
    %420 = vmatprep.subr.mxu0 %v151
    %421 = vmatpush1.msra.mxu0 %v150
    %422 = vmatprep.subr.mxu0 %v155
    %423 = vmatpush1.msra.mxu0 %v154
    %424 = vmatprep.subr.mxu0 %v159
    %425 = vmatpush1.msra.mxu0 %v158
    %426 = vmatprep.subr.mxu0 %v163
    %427 = vmatpush1.msra.mxu0 %v162
    %428 = vmatprep.subr.mxu0 %v167
    %429 = vmatpush1.msra.mxu0 %v166
    %430 = vmatprep.subr.mxu0 %v171
    %431 = vmatpush1.msra.mxu0 %v170
    %432 = vmatprep.subr.mxu0 %v175
    %433 = vmatpush1.msra.mxu0 %v174
    %434 = vmatprep.subr.mxu0 %v179
    %435 = vmatpush1.msra.mxu0 %v178
    %436 = vmatprep.subr.mxu0 %v183
    %437 = vmatpush1.msra.mxu0 %v182
    %438 = vmatprep.subr.mxu0 %v187
    %439 = vmatpush1.msra.mxu0 %v186
    %440 = vmatprep.subr.mxu0 %v191
    %441 = vmatpush1.msra.mxu0 %v190
    %442 = vmatprep.subr.mxu0 %v195
    %443 = vmatpush1.msra.mxu0 %v194
    %444 = vmatprep.subr.mxu0 %v199
    %445 = vmatpush1.msra.mxu0 %v198
    %446 = vmatprep.subr.mxu0 %v203
    %447 = vmatpush1.msra.mxu0 %v202
    %448 = vmatprep.subr.mxu0 %v207
    %449 = vmatpush1.msra.mxu0 %v206
    %450 = vmatprep.subr.mxu0 %v211
    %451 = vmatpush1.msra.mxu0 %v210
    %452 = vmatprep.subr.mxu0 %v215
    %453 = vmatpush1.msra.mxu0 %v214
    %454 = vmatprep.subr.mxu0 %v219
    %455 = vmatpush1.msra.mxu0 %v218
    %456 = vmatprep.subr.mxu0 %v223
    %457 = vmatpush1.msra.mxu0 %v222
    %458 = vmatprep.mubr.f32.mxu0 %v67
    %459 = vmatmul.mubr.f32.gmra.mrb[0].mxu0 %v66
    %v460 = vpop.f32.mrb[0].mxu0
    %v461 = vadd.f32 %v339, %v460
    %v462 = vpop.f32.mrb[0].mxu0
    %v463 = vadd.f32 %v343, %v462
    %464 = vmatprep.mubr.f32.mxu0 %v71
    %465 = vmatmul.mubr.f32.gmra.mrb[0].mxu0 %v70
    %v466 = vpop.f32.mrb[0].mxu0
    %v467 = vadd.f32 %v339, %v466
    %v468 = vpop.f32.mrb[0].mxu0
    %v469 = vadd.f32 %v343, %v468
    %470 = vmatprep.mubr.f32.mxu0 %v75
    %471 = vmatmul.mubr.f32.gmra.mrb[0].mxu0 %v74
    %v472 = vpop.f32.mrb[0].mxu0
    %v473 = vadd.f32 %v339, %v472
    %v474 = vpop.f32.mrb[0].mxu0
    %v475 = vadd.f32 %v343, %v474
    %476 = vmatprep.mubr.f32.mxu0 %v79
    %477 = vmatmul.mubr.f32.gmra.mrb[0].mxu0 %v78
    %v478 = vpop.f32.mrb[0].mxu0
    %v479 = vadd.f32 %v339, %v478
    %v480 = vpop.f32.mrb[0].mxu0
    %v481 = vadd.f32 %v343, %v480
    %482 = vmatprep.mubr.f32.mxu0 %v83
    %483 = vmatmul.mubr.f32.gmra.mrb[0].mxu0 %v82
    %v484 = vpop.f32.mrb[0].mxu0
    %v485 = vadd.f32 %v339, %v484
    %v486 = vpop.f32.mrb[0].mxu0
    %v487 = vadd.f32 %v343, %v486
    %488 = vmatprep.mubr.f32.mxu0 %v87
    %489 = vmatmul.mubr.f32.gmra.mrb[0].mxu0 %v86
    %v490 = vpop.f32.mrb[0].mxu0
    %v491 = vadd.f32 %v339, %v490
    %v492 = vpop.f32.mrb[0].mxu0
    %v493 = vadd.f32 %v343, %v492
    %494 = vmatprep.mubr.f32.mxu0 %v91
    %495 = vmatmul.mubr.f32.gmra.mrb[0].mxu0 %v90
    %v496 = vpop.f32.mrb[0].mxu0
    %v497 = vadd.f32 %v339, %v496
    %v498 = vpop.f32.mrb[0].mxu0
    %v499 = vadd.f32 %v343, %v498
    %500 = vmatprep.mubr.f32.mxu0 %v95
    %501 = vmatmul.mubr.f32.gmra.mrb[0].mxu0 %v94
    %v502 = vpop.f32.mrb[0].mxu0
    %v503 = vadd.f32 %v339, %v502
    %v504 = vpop.f32.mrb[0].mxu0
    %v505 = vadd.f32 %v343, %v504
    %506 = vdwg.mxu0
    %507 = vmatprep.subr.mxu0 %v227
    %508 = vmatpush1.msra.mxu0 %v226
    %509 = vmatprep.subr.mxu0 %v231
    %510 = vmatpush1.msra.mxu0 %v230
    %511 = vmatprep.subr.mxu0 %v235
    %512 = vmatpush1.msra.mxu0 %v234
    %513 = vmatprep.subr.mxu0 %v239
    %514 = vmatpush1.msra.mxu0 %v238
    %515 = vmatprep.subr.mxu0 %v243
    %516 = vmatpush1.msra.mxu0 %v242
    %517 = vmatprep.subr.mxu0 %v247
    %518 = vmatpush1.msra.mxu0 %v246
    %519 = vmatprep.subr.mxu0 %v251
    %520 = vmatpush1.msra.mxu0 %v250
    %521 = vmatprep.subr.mxu0 %v255
    %522 = vmatpush1.msra.mxu0 %v254
    %523 = vmatprep.subr.mxu0 %v259
    %524 = vmatpush1.msra.mxu0 %v258
    %525 = vmatprep.subr.mxu0 %v263
    %526 = vmatpush1.msra.mxu0 %v262
    %527 = vmatprep.subr.mxu0 %v267
    %528 = vmatpush1.msra.mxu0 %v266
    %529 = vmatprep.subr.mxu0 %v271
    %530 = vmatpush1.msra.mxu0 %v270
    %531 = vmatprep.subr.mxu0 %v275
    %532 = vmatpush1.msra.mxu0 %v274
    %533 = vmatprep.subr.mxu0 %v279
    %534 = vmatpush1.msra.mxu0 %v278
    %535 = vmatprep.subr.mxu0 %v283
    %536 = vmatpush1.msra.mxu0 %v282
    %537 = vmatprep.subr.mxu0 %v287
    %538 = vmatpush1.msra.mxu0 %v286
    %539 = vmatprep.subr.mxu0 %v291
    %540 = vmatpush1.msra.mxu0 %v290
    %541 = vmatprep.subr.mxu0 %v295
    %542 = vmatpush1.msra.mxu0 %v294
    %543 = vmatprep.subr.mxu0 %v299
    %544 = vmatpush1.msra.mxu0 %v298
    %545 = vmatprep.subr.mxu0 %v303
    %546 = vmatpush1.msra.mxu0 %v302
    %547 = vmatprep.subr.mxu0 %v307
    %548 = vmatpush1.msra.mxu0 %v306
    %549 = vmatprep.subr.mxu0 %v311
    %550 = vmatpush1.msra.mxu0 %v310
    %551 = vmatprep.subr.mxu0 %v315
    %552 = vmatpush1.msra.mxu0 %v314
    %553 = vmatprep.subr.mxu0 %v319
    %554 = vmatpush1.msra.mxu0 %v318
    %555 = vmatprep.subr.mxu0 %v323
    %556 = vmatpush1.msra.mxu0 %v322
    %557 = vmatprep.subr.mxu0 %v327
    %558 = vmatpush1.msra.mxu0 %v326
    %559 = vmatprep.subr.mxu0 %v386
    %560 = vmatpush1.msra.mxu0 %v383
    %561 = vmatprep.subr.mxu0 0.0
    %562 = vmatpush1.msra.mxu0 0.0
    %563 = vmatprep.subr.mxu0 0.0
    %564 = vmatpush1.msra.mxu0 0.0
    %565 = vmatprep.subr.mxu0 0.0
    %566 = vmatpush1.msra.mxu0 0.0
    %567 = vmatprep.subr.mxu0 0.0
    %568 = vmatpush1.msra.mxu0 0.0
    %569 = vmatprep.subr.mxu0 0.0
    %570 = vmatpush1.msra.mxu0 0.0
    %571 = vmatprep.mubr.f32.mxu0 %v358
    %572 = vmatmul.mubr.f32.gmra.mrb[0].mxu0 %v68
    %v573 = vpop.f32.mrb[0].mxu0
    %v574 = vadd.f32 %v461, %v573
    %v575 = vpop.f32.mrb[0].mxu0
    %v576 = vadd.f32 %v463, %v575
    %577 = vmatprep.mubr.f32.mxu0 %v361
    %578 = vmatmul.mubr.f32.gmra.mrb[0].mxu0 %v72
    %v579 = vpop.f32.mrb[0].mxu0
    %v580 = vadd.f32 %v467, %v579
    %v581 = vpop.f32.mrb[0].mxu0
    %v582 = vadd.f32 %v469, %v581
    %583 = vmatprep.mubr.f32.mxu0 %v364
    %584 = vmatmul.mubr.f32.gmra.mrb[0].mxu0 %v76
    %v585 = vpop.f32.mrb[0].mxu0
    %v586 = vadd.f32 %v473, %v585
    %v587 = vpop.f32.mrb[0].mxu0
    %v588 = vadd.f32 %v475, %v587
    %589 = vmatprep.mubr.f32.mxu0 %v367
    %590 = vmatmul.mubr.f32.gmra.mrb[0].mxu0 %v80
    %v591 = vpop.f32.mrb[0].mxu0
    %v592 = vadd.f32 %v479, %v591
    %v593 = vpop.f32.mrb[0].mxu0
    %v594 = vadd.f32 %v481, %v593
    %595 = vmatprep.mubr.f32.mxu0 %v370
    %596 = vmatmul.mubr.f32.gmra.mrb[0].mxu0 %v84
    %v597 = vpop.f32.mrb[0].mxu0
    %v598 = vadd.f32 %v485, %v597
    %v599 = vpop.f32.mrb[0].mxu0
    %v600 = vadd.f32 %v487, %v599
    %601 = vmatprep.mubr.f32.mxu0 %v373
    %602 = vmatmul.mubr.f32.gmra.mrb[0].mxu0 %v88
    %v603 = vpop.f32.mrb[0].mxu0
    %v604 = vadd.f32 %v491, %v603
    %v605 = vpop.f32.mrb[0].mxu0
    %v606 = vadd.f32 %v493, %v605
    %607 = vmatprep.mubr.f32.mxu0 %v376
    %608 = vmatmul.mubr.f32.gmra.mrb[0].mxu0 %v92
    %v609 = vpop.f32.mrb[0].mxu0
    %v610 = vadd.f32 %v497, %v609
    %v611 = vpop.f32.mrb[0].mxu0
    %v612 = vadd.f32 %v499, %v611
    %613 = vmatprep.mubr.f32.mxu0 %v379
    %614 = vmatmul.mubr.f32.gmra.mrb[0].mxu0 %v96
    %v615 = vpop.f32.mrb[0].mxu0
    %v616 = vadd.f32 %v503, %v615
    %v617 = vpop.f32.mrb[0].mxu0
    %v618 = vadd.f32 %v505, %v617
    %619 = vdwg.mxu0
    %620 = vmatprep.subr.mxu0 %v101
    %621 = vmatpush1.msra.mxu0 %v100
    %622 = vmatprep.subr.mxu0 %v105
    %623 = vmatpush1.msra.mxu0 %v104
    %624 = vmatprep.subr.mxu0 %v109
    %625 = vmatpush1.msra.mxu0 %v108
    %626 = vmatprep.subr.mxu0 %v113
    %627 = vmatpush1.msra.mxu0 %v112
    %628 = vmatprep.subr.mxu0 %v117
    %629 = vmatpush1.msra.mxu0 %v116
    %630 = vmatprep.subr.mxu0 %v121
    %631 = vmatpush1.msra.mxu0 %v120
    %632 = vmatprep.subr.mxu0 %v125
    %633 = vmatpush1.msra.mxu0 %v124
    %634 = vmatprep.subr.mxu0 %v129
    %635 = vmatpush1.msra.mxu0 %v128
    %636 = vmatprep.subr.mxu0 %v133
    %637 = vmatpush1.msra.mxu0 %v132
    %638 = vmatprep.subr.mxu0 %v137
    %639 = vmatpush1.msra.mxu0 %v136
    %640 = vmatprep.subr.mxu0 %v141
    %641 = vmatpush1.msra.mxu0 %v140
    %642 = vmatprep.subr.mxu0 %v145
    %643 = vmatpush1.msra.mxu0 %v144
    %644 = vmatprep.subr.mxu0 %v149
    %645 = vmatpush1.msra.mxu0 %v148
    %646 = vmatprep.subr.mxu0 %v153
    %647 = vmatpush1.msra.mxu0 %v152
    %648 = vmatprep.subr.mxu0 %v157
    %649 = vmatpush1.msra.mxu0 %v156
    %650 = vmatprep.subr.mxu0 %v161
    %651 = vmatpush1.msra.mxu0 %v160
    %652 = vmatprep.subr.mxu0 %v165
    %653 = vmatpush1.msra.mxu0 %v164
    %654 = vmatprep.subr.mxu0 %v169
    %655 = vmatpush1.msra.mxu0 %v168
    %656 = vmatprep.subr.mxu0 %v173
    %657 = vmatpush1.msra.mxu0 %v172
    %658 = vmatprep.subr.mxu0 %v177
    %659 = vmatpush1.msra.mxu0 %v176
    %660 = vmatprep.subr.mxu0 %v181
    %661 = vmatpush1.msra.mxu0 %v180
    %662 = vmatprep.subr.mxu0 %v185
    %663 = vmatpush1.msra.mxu0 %v184
    %664 = vmatprep.subr.mxu0 %v189
    %665 = vmatpush1.msra.mxu0 %v188
    %666 = vmatprep.subr.mxu0 %v193
    %667 = vmatpush1.msra.mxu0 %v192
    %668 = vmatprep.subr.mxu0 %v197
    %669 = vmatpush1.msra.mxu0 %v196
    %670 = vmatprep.subr.mxu0 %v201
    %671 = vmatpush1.msra.mxu0 %v200
    %672 = vmatprep.subr.mxu0 %v205
    %673 = vmatpush1.msra.mxu0 %v204
    %674 = vmatprep.subr.mxu0 %v209
    %675 = vmatpush1.msra.mxu0 %v208
    %676 = vmatprep.subr.mxu0 %v213
    %677 = vmatpush1.msra.mxu0 %v212
    %678 = vmatprep.subr.mxu0 %v217
    %679 = vmatpush1.msra.mxu0 %v216
    %680 = vmatprep.subr.mxu0 %v221
    %681 = vmatpush1.msra.mxu0 %v220
    %682 = vmatprep.subr.mxu0 %v225
    %683 = vmatpush1.msra.mxu0 %v224
    %684 = vmatprep.mubr.f32.mxu0 %v67
    %685 = vmatmul.mubr.f32.gmra.mrb[0].mxu0 %v66
    %v686 = vpop.f32.mrb[0].mxu0
    %v687 = vadd.f32 %v347, %v686
    %v688 = vpop.f32.mrb[0].mxu0
    %v689 = vadd.f32 %v351, %v688
    %690 = vmatprep.mubr.f32.mxu0 %v71
    %691 = vmatmul.mubr.f32.gmra.mrb[0].mxu0 %v70
    %v692 = vpop.f32.mrb[0].mxu0
    %v693 = vadd.f32 %v347, %v692
    %v694 = vpop.f32.mrb[0].mxu0
    %v695 = vadd.f32 %v351, %v694
    %696 = vmatprep.mubr.f32.mxu0 %v75
    %697 = vmatmul.mubr.f32.gmra.mrb[0].mxu0 %v74
    %v698 = vpop.f32.mrb[0].mxu0
    %v699 = vadd.f32 %v347, %v698
    %v700 = vpop.f32.mrb[0].mxu0
    %v701 = vadd.f32 %v351, %v700
    %702 = vmatprep.mubr.f32.mxu0 %v79
    %703 = vmatmul.mubr.f32.gmra.mrb[0].mxu0 %v78
    %v704 = vpop.f32.mrb[0].mxu0
    %v705 = vadd.f32 %v347, %v704
    %v706 = vpop.f32.mrb[0].mxu0
    %v707 = vadd.f32 %v351, %v706
    %708 = vmatprep.mubr.f32.mxu0 %v83
    %709 = vmatmul.mubr.f32.gmra.mrb[0].mxu0 %v82
    %v710 = vpop.f32.mrb[0].mxu0
    %v711 = vadd.f32 %v347, %v710
    %v712 = vpop.f32.mrb[0].mxu0
    %v713 = vadd.f32 %v351, %v712
    %714 = vmatprep.mubr.f32.mxu0 %v87
    %715 = vmatmul.mubr.f32.gmra.mrb[0].mxu0 %v86
    %v716 = vpop.f32.mrb[0].mxu0
    %v717 = vadd.f32 %v347, %v716
    %v718 = vpop.f32.mrb[0].mxu0
    %v719 = vadd.f32 %v351, %v718
    %720 = vmatprep.mubr.f32.mxu0 %v91
    %721 = vmatmul.mubr.f32.gmra.mrb[0].mxu0 %v90
    %v722 = vpop.f32.mrb[0].mxu0
    %v723 = vadd.f32 %v347, %v722
    %v724 = vpop.f32.mrb[0].mxu0
    %v725 = vadd.f32 %v351, %v724
    %726 = vmatprep.mubr.f32.mxu0 %v95
    %727 = vmatmul.mubr.f32.gmra.mrb[0].mxu0 %v94
    %v728 = vpop.f32.mrb[0].mxu0
    %v729 = vadd.f32 %v347, %v728
    %v730 = vpop.f32.mrb[0].mxu0
    %v731 = vadd.f32 %v351, %v730
    %732 = vdwg.mxu0
    %733 = vmatprep.subr.mxu0 %v229
    %734 = vmatpush1.msra.mxu0 %v228
    %735 = vmatprep.subr.mxu0 %v233
    %736 = vmatpush1.msra.mxu0 %v232
    %737 = vmatprep.subr.mxu0 %v237
    %738 = vmatpush1.msra.mxu0 %v236
    %739 = vmatprep.subr.mxu0 %v241
    %740 = vmatpush1.msra.mxu0 %v240
    %741 = vmatprep.subr.mxu0 %v245
    %742 = vmatpush1.msra.mxu0 %v244
    %743 = vmatprep.subr.mxu0 %v249
    %744 = vmatpush1.msra.mxu0 %v248
    %745 = vmatprep.subr.mxu0 %v253
    %746 = vmatpush1.msra.mxu0 %v252
    %747 = vmatprep.subr.mxu0 %v257
    %748 = vmatpush1.msra.mxu0 %v256
    %749 = vmatprep.subr.mxu0 %v261
    %750 = vmatpush1.msra.mxu0 %v260
    %751 = vmatprep.subr.mxu0 %v265
    %752 = vmatpush1.msra.mxu0 %v264
    %753 = vmatprep.subr.mxu0 %v269
    %754 = vmatpush1.msra.mxu0 %v268
    %755 = vmatprep.subr.mxu0 %v273
    %756 = vmatpush1.msra.mxu0 %v272
    %757 = vmatprep.subr.mxu0 %v277
    %758 = vmatpush1.msra.mxu0 %v276
    %759 = vmatprep.subr.mxu0 %v281
    %760 = vmatpush1.msra.mxu0 %v280
    %761 = vmatprep.subr.mxu0 %v285
    %762 = vmatpush1.msra.mxu0 %v284
    %763 = vmatprep.subr.mxu0 %v289
    %764 = vmatpush1.msra.mxu0 %v288
    %765 = vmatprep.subr.mxu0 %v293
    %766 = vmatpush1.msra.mxu0 %v292
    %767 = vmatprep.subr.mxu0 %v297
    %768 = vmatpush1.msra.mxu0 %v296
    %769 = vmatprep.subr.mxu0 %v301
    %770 = vmatpush1.msra.mxu0 %v300
    %771 = vmatprep.subr.mxu0 %v305
    %772 = vmatpush1.msra.mxu0 %v304
    %773 = vmatprep.subr.mxu0 %v309
    %774 = vmatpush1.msra.mxu0 %v308
    %775 = vmatprep.subr.mxu0 %v313
    %776 = vmatpush1.msra.mxu0 %v312
    %777 = vmatprep.subr.mxu0 %v317
    %778 = vmatpush1.msra.mxu0 %v316
    %779 = vmatprep.subr.mxu0 %v321
    %780 = vmatpush1.msra.mxu0 %v320
    %781 = vmatprep.subr.mxu0 %v325
    %782 = vmatpush1.msra.mxu0 %v324
    %783 = vmatprep.subr.mxu0 %v329
    %784 = vmatpush1.msra.mxu0 %v328
    %785 = vmatprep.subr.mxu0 %v392
    %786 = vmatpush1.msra.mxu0 %v389
    %787 = vmatprep.subr.mxu0 0.0
    %788 = vmatpush1.msra.mxu0 0.0
    %789 = vmatprep.subr.mxu0 0.0
    %790 = vmatpush1.msra.mxu0 0.0
    %791 = vmatprep.subr.mxu0 0.0
    %792 = vmatpush1.msra.mxu0 0.0
    %793 = vmatprep.subr.mxu0 0.0
    %794 = vmatpush1.msra.mxu0 0.0
    %795 = vmatprep.subr.mxu0 0.0
    %796 = vmatpush1.msra.mxu0 0.0
    %797 = vmatprep.mubr.f32.mxu0 %v358
    %798 = vmatmul.mubr.f32.gmra.mrb[0].mxu0 %v68
    %v799 = vpop.f32.mrb[0].mxu0
    %v800 = vadd.f32 %v687, %v799
    %v801 = vpop.f32.mrb[0].mxu0
    %v802 = vadd.f32 %v689, %v801
    %803 = vmatprep.mubr.f32.mxu0 %v361
    %804 = vmatmul.mubr.f32.gmra.mrb[0].mxu0 %v72
    %v805 = vpop.f32.mrb[0].mxu0
    %v806 = vadd.f32 %v693, %v805
    %v807 = vpop.f32.mrb[0].mxu0
    %v808 = vadd.f32 %v695, %v807
    %809 = vmatprep.mubr.f32.mxu0 %v364
    %810 = vmatmul.mubr.f32.gmra.mrb[0].mxu0 %v76
    %v811 = vpop.f32.mrb[0].mxu0
    %v812 = vadd.f32 %v699, %v811
    %v813 = vpop.f32.mrb[0].mxu0
    %v814 = vadd.f32 %v701, %v813
    %815 = vmatprep.mubr.f32.mxu0 %v367
    %816 = vmatmul.mubr.f32.gmra.mrb[0].mxu0 %v80
    %v817 = vpop.f32.mrb[0].mxu0
    %v818 = vadd.f32 %v705, %v817
    %v819 = vpop.f32.mrb[0].mxu0
    %v820 = vadd.f32 %v707, %v819
    %821 = vmatprep.mubr.f32.mxu0 %v370
    %822 = vmatmul.mubr.f32.gmra.mrb[0].mxu0 %v84
    %v823 = vpop.f32.mrb[0].mxu0
    %v824 = vadd.f32 %v711, %v823
    %v825 = vpop.f32.mrb[0].mxu0
    %v826 = vadd.f32 %v713, %v825
    %827 = vmatprep.mubr.f32.mxu0 %v373
    %828 = vmatmul.mubr.f32.gmra.mrb[0].mxu0 %v88
    %v829 = vpop.f32.mrb[0].mxu0
    %v830 = vadd.f32 %v717, %v829
    %v831 = vpop.f32.mrb[0].mxu0
    %v832 = vadd.f32 %v719, %v831
    %833 = vmatprep.mubr.f32.mxu0 %v376
    %834 = vmatmul.mubr.f32.gmra.mrb[0].mxu0 %v92
    %v835 = vpop.f32.mrb[0].mxu0
    %v836 = vadd.f32 %v723, %v835
    %v837 = vpop.f32.mrb[0].mxu0
    %v838 = vadd.f32 %v725, %v837
    %839 = vmatprep.mubr.f32.mxu0 %v379
    %840 = vmatmul.mubr.f32.gmra.mrb[0].mxu0 %v96
    %v841 = vpop.f32.mrb[0].mxu0
    %v842 = vadd.f32 %v729, %v841
    %v843 = vpop.f32.mrb[0].mxu0
    %v844 = vadd.f32 %v731, %v843
    %845 = vdwg.mxu0
    %846 = vst [vmem:[#allocation2] sm:$0xff] %v574
    %847 = vst [vmem:[#allocation2 + $0x8] sm:$0xff] %v576
    %848 = vst [vmem:[#allocation2 + $0x10] sm:$0xff] %v800
    %849 = vst [vmem:[#allocation2 + $0x18] sm:$0xff] %v802
    %850 = vst [vmem:[#allocation2 + $0x20] sm:$0xff] %v580
    %851 = vst [vmem:[#allocation2 + $0x28] sm:$0xff] %v582
    %852 = vst [vmem:[#allocation2 + $0x30] sm:$0xff] %v806
    %853 = vst [vmem:[#allocation2 + $0x38] sm:$0xff] %v808
    %854 = vst [vmem:[#allocation2 + $0x40] sm:$0xff] %v586
    %855 = vst [vmem:[#allocation2 + $0x48] sm:$0xff] %v588
    %856 = vst [vmem:[#allocation2 + $0x50] sm:$0xff] %v812
    %857 = vst [vmem:[#allocation2 + $0x58] sm:$0xff] %v814
    %858 = vst [vmem:[#allocation2 + $0x60] sm:$0xff] %v592
    %859 = vst [vmem:[#allocation2 + $0x68] sm:$0xff] %v594
    %860 = vst [vmem:[#allocation2 + $0x70] sm:$0xff] %v818
    %861 = vst [vmem:[#allocation2 + $0x78] sm:$0xff] %v820
    %862 = vst [vmem:[#allocation2 + $0x80] sm:$0xff] %v598
    %863 = vst [vmem:[#allocation2 + $0x88] sm:$0xff] %v600
    %864 = vst [vmem:[#allocation2 + $0x90] sm:$0xff] %v824
    %865 = vst [vmem:[#allocation2 + $0x98] sm:$0xff] %v826
    %866 = vst [vmem:[#allocation2 + $0xa0] sm:$0xff] %v604
    %867 = vst [vmem:[#allocation2 + $0xa8] sm:$0xff] %v606
    %868 = vst [vmem:[#allocation2 + $0xb0] sm:$0xff] %v830
    %869 = vst [vmem:[#allocation2 + $0xb8] sm:$0xff] %v832
    %870 = vst [vmem:[#allocation2 + $0xc0] sm:$0xff] %v610
    %871 = vst [vmem:[#allocation2 + $0xc8] sm:$0xff] %v612
    %872 = vst [vmem:[#allocation2 + $0xd0] sm:$0xff] %v836
    %873 = vst [vmem:[#allocation2 + $0xd8] sm:$0xff] %v838
    %874 = vst [vmem:[#allocation2 + $0xe0] sm:$0xff] %v616
    %875 = vst [vmem:[#allocation2 + $0xe8] sm:$0xff] %v618
    %876 = vst [vmem:[#allocation2 + $0xf0] sm:$0xff] %v842
    %877 = vst [vmem:[#allocation2 + $0xf8] sm:$0xff] %v844
    %v878 = vld [vmem:[#allocation8] sm:$0xff]
    %v879 = vld [vmem:[#allocation8 + $0x8] sm:$0xff]
    %v880 = vld [vmem:[#allocation8 + $0x10] sm:$0xff]
    %v881 = vld [vmem:[#allocation8 + $0x18] sm:$0xff]
    %v882 = vld [vmem:[#allocation8 + $0x20] sm:$0xff]
    %v883 = vld [vmem:[#allocation8 + $0x28] sm:$0xff]
    %v884 = vld [vmem:[#allocation8 + $0x30] sm:$0xff]
    %v885 = vld [vmem:[#allocation8 + $0x38] sm:$0xff]
    %v886 = vld [vmem:[#allocation8 + $0x40] sm:$0xff]
    %v887 = vld [vmem:[#allocation8 + $0x48] sm:$0xff]
    %v888 = vld [vmem:[#allocation8 + $0x50] sm:$0xff]
    %v889 = vld [vmem:[#allocation8 + $0x58] sm:$0xff]
    %v890 = vld [vmem:[#allocation8 + $0x60] sm:$0xff]
    %v891 = vld [vmem:[#allocation8 + $0x68] sm:$0xff]
    %v892 = vld [vmem:[#allocation8 + $0x70] sm:$0xff]
    %v893 = vld [vmem:[#allocation8 + $0x78] sm:$0xff]
    %v894 = vld [vmem:[#allocation8 + $0x80] sm:$0xff]
    %v895 = vld [vmem:[#allocation8 + $0x88] sm:$0xff]
    %v896 = vld [vmem:[#allocation8 + $0x90] sm:$0xff]
    %v897 = vld [vmem:[#allocation8 + $0x98] sm:$0xff]
    %v898 = vld [vmem:[#allocation8 + $0xa0] sm:$0xff]
    %v899 = vld [vmem:[#allocation8 + $0xa8] sm:$0xff]
    %v900 = vld [vmem:[#allocation8 + $0xb0] sm:$0xff]
    %v901 = vld [vmem:[#allocation8 + $0xb8] sm:$0xff]
    %v902 = vld [vmem:[#allocation8 + $0xc0] sm:$0xff]
    %v903 = vld [vmem:[#allocation8 + $0xc8] sm:$0xff]
    %v904 = vld [vmem:[#allocation8 + $0xd0] sm:$0xff]
    %v905 = vld [vmem:[#allocation8 + $0xd8] sm:$0xff]
    %v906 = vld [vmem:[#allocation8 + $0xe0] sm:$0xff]
    %v907 = vld [vmem:[#allocation8 + $0xe8] sm:$0xff]
    %v908 = vld [vmem:[#allocation8 + $0xf0] sm:$0xff]
    %v909 = vld [vmem:[#allocation8 + $0xf8] sm:$0xff]
    %v910 = vld [vmem:[#allocation8 + $0x100] sm:$0xff]
    %v911 = vld [vmem:[#allocation8 + $0x108] sm:$0xff]
    %v912 = vld [vmem:[#allocation8 + $0x110] sm:$0xff]
    %v913 = vld [vmem:[#allocation8 + $0x118] sm:$0xff]
    %v914 = vld [vmem:[#allocation8 + $0x120] sm:$0xff]
    %v915 = vld [vmem:[#allocation8 + $0x128] sm:$0xff]
    %v916 = vld [vmem:[#allocation8 + $0x130] sm:$0xff]
    %v917 = vld [vmem:[#allocation8 + $0x138] sm:$0xff]
    %v918 = vld [vmem:[#allocation8 + $0x140] sm:$0xff]
    %v919 = vld [vmem:[#allocation8 + $0x148] sm:$0xff]
    %v920 = vld [vmem:[#allocation8 + $0x150] sm:$0xff]
    %v921 = vld [vmem:[#allocation8 + $0x158] sm:$0xff]
    %v922 = vld [vmem:[#allocation8 + $0x160] sm:$0xff]
    %v923 = vld [vmem:[#allocation8 + $0x168] sm:$0xff]
    %v924 = vld [vmem:[#allocation8 + $0x170] sm:$0xff]
    %v925 = vld [vmem:[#allocation8 + $0x178] sm:$0xff]
    %v926 = vld [vmem:[#allocation8 + $0x180] sm:$0xff]
    %v927 = vld [vmem:[#allocation8 + $0x188] sm:$0xff]
    %v928 = vld [vmem:[#allocation8 + $0x190] sm:$0xff]
    %v929 = vld [vmem:[#allocation8 + $0x198] sm:$0xff]
    %v930 = vld [vmem:[#allocation8 + $0x1a0] sm:$0xff]
    %v931 = vld [vmem:[#allocation8 + $0x1a8] sm:$0xff]
    %v932 = vld [vmem:[#allocation8 + $0x1b0] sm:$0xff]
    %v933 = vld [vmem:[#allocation8 + $0x1b8] sm:$0xff]
    %v934 = vld [vmem:[#allocation8 + $0x1c0] sm:$0xff]
    %v935 = vld [vmem:[#allocation8 + $0x1c8] sm:$0xff]
    %v936 = vld [vmem:[#allocation8 + $0x1d0] sm:$0xff]
    %v937 = vld [vmem:[#allocation8 + $0x1d8] sm:$0xff]
    %v938 = vld [vmem:[#allocation8 + $0x1e0] sm:$0xff]
    %v939 = vld [vmem:[#allocation8 + $0x1e8] sm:$0xff]
    %v940 = vld [vmem:[#allocation8 + $0x1f0] sm:$0xff]
    %v941 = vld [vmem:[#allocation8 + $0x1f8] sm:$0xff]
    %v942 = vld [vmem:[#allocation2] ss:$8 sm:$0xf]
    %s943 = scalar_lea.vmem [#allocation2], 32
    %v944 = vld [vmem:[%s943] ss:$8 sm:$0xf]
    %s945 = scalar_lea.vmem [#allocation2], 64
    %v946 = vld [vmem:[%s945] ss:$8 sm:$0xf]
    %s947 = scalar_lea.vmem [#allocation2], 96
    %v948 = vld [vmem:[%s947] ss:$8 sm:$0xf]
    %s949 = scalar_lea.vmem [#allocation2], 128
    %v950 = vld [vmem:[%s949] ss:$8 sm:$0xf]
    %s951 = scalar_lea.vmem [#allocation2], 160
    %v952 = vld [vmem:[%s951] ss:$8 sm:$0xf]
    %s953 = scalar_lea.vmem [#allocation2], 192
    %v954 = vld [vmem:[%s953] ss:$8 sm:$0xf]
    %s955 = scalar_lea.vmem [#allocation2], 224
    %v956 = vld [vmem:[%s955] ss:$8 sm:$0xf]
    %v957 = vxor.u32 %v942, 2147483648
    %v958 = vxor.u32 %v944, 2147483648
    %v959 = vxor.u32 %v946, 2147483648
    %v960 = vxor.u32 %v948, 2147483648
    %v961 = vxor.u32 %v950, 2147483648
    %v962 = vxor.u32 %v952, 2147483648
    %v963 = vxor.u32 %v954, 2147483648
    %v964 = vxor.u32 %v956, 2147483648
    %v965 = vmul.f32 %v957, 1.442695
    %v966 = vpow.pop %v965
    %v967 = vmul.f32 %v958, 1.442695
    %v968 = vpow.pop %v967
    %v969 = vmul.f32 %v959, 1.442695
    %v970 = vpow.pop %v969
    %v971 = vmul.f32 %v960, 1.442695
    %v972 = vpow.pop %v971
    %v973 = vmul.f32 %v961, 1.442695
    %v974 = vpow.pop %v973
    %v975 = vmul.f32 %v962, 1.442695
    %v976 = vpow.pop %v975
    %v977 = vmul.f32 %v963, 1.442695
    %v978 = vpow.pop %v977
    %v979 = vmul.f32 %v964, 1.442695
    %v980 = vpow.pop %v979
    %v981 = vadd.f32 %v966, 1.0
    %v982 = vadd.f32 %v968, 1.0
    %v983 = vadd.f32 %v970, 1.0
    %v984 = vadd.f32 %v972, 1.0
    %v985 = vadd.f32 %v974, 1.0
    %v986 = vadd.f32 %v976, 1.0
    %v987 = vadd.f32 %v978, 1.0
    %v988 = vadd.f32 %v980, 1.0
    %v989 = vrcp.pop %v981
    %v990 = vmul.f32 1.0, %v989
    %v991 = vrcp.pop %v982
    %v992 = vmul.f32 1.0, %v991
    %v993 = vrcp.pop %v983
    %v994 = vmul.f32 1.0, %v993
    %v995 = vrcp.pop %v984
    %v996 = vmul.f32 1.0, %v995
    %v997 = vrcp.pop %v985
    %v998 = vmul.f32 1.0, %v997
    %v999 = vrcp.pop %v986
    %v1000 = vmul.f32 1.0, %v999
    %v1001 = vrcp.pop %v987
    %v1002 = vmul.f32 1.0, %v1001
    %v1003 = vrcp.pop %v988
    %v1004 = vmul.f32 1.0, %v1003
    %v1013 = vrot.slane %v942, 3
    %v1014 = vrot.slane %v944, 3
    %v1015 = vrot.slane %v946, 3
    %v1016 = vrot.slane %v948, 3
    %v1017 = vrot.slane %v950, 3
    %v1018 = vrot.slane %v952, 3
    %v1019 = vrot.slane %v954, 3
    %v1020 = vrot.slane %v956, 3
    %v1029 = vtanh.pop %v1013
    %v1030 = vtanh.pop %v1014
    %v1031 = vtanh.pop %v1015
    %v1032 = vtanh.pop %v1016
    %v1033 = vtanh.pop %v1017
    %v1034 = vtanh.pop %v1018
    %v1035 = vtanh.pop %v1019
    %v1036 = vtanh.pop %v1020
    %v1045 = vrot.slane %v990, 1
    %v1046 = vrot.slane %v992, 1
    %v1047 = vrot.slane %v994, 1
    %v1048 = vrot.slane %v996, 1
    %v1049 = vrot.slane %v998, 1
    %v1050 = vrot.slane %v1000, 1
    %v1051 = vrot.slane %v1002, 1
    %v1052 = vrot.slane %v1004, 1
    %v1061 = vmul.f32 %v1045, 0.0
    %v1062 = vmul.f32 %v1046, 0.0
    %v1063 = vmul.f32 %v1047, 0.0
    %v1064 = vmul.f32 %v1048, 0.0
    %v1065 = vmul.f32 %v1049, 0.0
    %v1066 = vmul.f32 %v1050, 0.0
    %v1067 = vmul.f32 %v1051, 0.0
    %v1068 = vmul.f32 %v1052, 0.0
    %v1069 = vmul.f32 %v990, %v1029
    %v1070 = vmul.f32 %v992, %v1030
    %v1071 = vmul.f32 %v994, %v1031
    %v1072 = vmul.f32 %v996, %v1032
    %v1073 = vmul.f32 %v998, %v1033
    %v1074 = vmul.f32 %v1000, %v1034
    %v1075 = vmul.f32 %v1002, %v1035
    %v1076 = vmul.f32 %v1004, %v1036
    %v1077 = vadd.f32 %v1061, %v1069
    %v1078 = vadd.f32 %v1062, %v1070
    %v1079 = vadd.f32 %v1063, %v1071
    %v1080 = vadd.f32 %v1064, %v1072
    %v1081 = vadd.f32 %v1065, %v1073
    %v1082 = vadd.f32 %v1066, %v1074
    %v1083 = vadd.f32 %v1067, %v1075
    %v1084 = vadd.f32 %v1068, %v1076
    %v1085 = vtanh.pop %v1077
    %v1086 = vtanh.pop %v1078
    %v1087 = vtanh.pop %v1079
    %v1088 = vtanh.pop %v1080
    %v1089 = vtanh.pop %v1081
    %v1090 = vtanh.pop %v1082
    %v1091 = vtanh.pop %v1083
    %v1092 = vtanh.pop %v1084
    %v1093 = vrot.slane %v990, 2
    %v1094 = vrot.slane %v992, 2
    %v1095 = vrot.slane %v994, 2
    %v1096 = vrot.slane %v996, 2
    %v1097 = vrot.slane %v998, 2
    %v1098 = vrot.slane %v1000, 2
    %v1099 = vrot.slane %v1002, 2
    %v1100 = vrot.slane %v1004, 2
    %v1109 = vmul.f32 %v1093, %v1085
    %v1110 = vmul.f32 %v1094, %v1086
    %v1111 = vmul.f32 %v1095, %v1087
    %v1112 = vmul.f32 %v1096, %v1088
    %v1113 = vmul.f32 %v1097, %v1089
    %v1114 = vmul.f32 %v1098, %v1090
    %v1115 = vmul.f32 %v1099, %v1091
    %v1116 = vmul.f32 %v1100, %v1092
    %v1117 = vlaneseq
    %v1118 = vand.u32 %v1117, 127
    %vm1119 = vcmp.lt.s32.totalorder %v1118, 64
    %v1128 = vcombine.low %v1109, %v1110
    %v1129 = vcombine.low %v1111, %v1112
    %v1130 = vcombine.low %v1113, %v1114
    %v1131 = vcombine.low %v1115, %v1116
    %v1133 = vunpack.c.l.s4 1966171168
    %v1134 = vunpack.c.0.s8 %v1133
    %v1135 = vlaneseq
    %v1136 = vshrl.u32 %v1135, 7
    %v1137 = vsub.s32 %v1134, %v1136
    %v1138 = vrot.slane %v1128, %v1137
    %v1140 = vunpack.c.l.s4 1966171168
    %v1141 = vunpack.c.0.s8 %v1140
    %v1142 = vlaneseq
    %v1143 = vshrl.u32 %v1142, 7
    %v1144 = vsub.s32 %v1141, %v1143
    %v1145 = vrot.slane %v1129, %v1144
    %v1147 = vunpack.c.l.s4 1966171168
    %v1148 = vunpack.c.0.s8 %v1147
    %v1149 = vlaneseq
    %v1150 = vshrl.u32 %v1149, 7
    %v1151 = vsub.s32 %v1148, %v1150
    %v1152 = vrot.slane %v1130, %v1151
    %v1154 = vunpack.c.l.s4 1966171168
    %v1155 = vunpack.c.0.s8 %v1154
    %v1156 = vlaneseq
    %v1157 = vshrl.u32 %v1156, 7
    %v1158 = vsub.s32 %v1155, %v1157
    %v1159 = vrot.slane %v1131, %v1158
    %v1160 = vcombine.low %v1138, %v1145
    %v1161 = vcombine.low %v1152, %v1159
    %v1163 = vunpack.c.l.s4 1966171168
    %v1164 = vunpack.c.0.s8 %v1163
    %v1165 = vlaneseq
    %v1166 = vshrl.u32 %v1165, 7
    %v1167 = vsub.s32 %v1164, %v1166
    %v1168 = vrot.slane %v1160, %v1167
    %v1170 = vunpack.c.l.s4 1966171168
    %v1171 = vunpack.c.0.s8 %v1170
    %v1172 = vlaneseq
    %v1173 = vshrl.u32 %v1172, 7
    %v1174 = vsub.s32 %v1171, %v1173
    %v1175 = vrot.slane %v1161, %v1174
    %v1176 = vcombine.low %v1168, %v1175
    %v1178 = vsel %vm1119, %v1176, 0.0
    %v1187 = vcombine.low %v1077, %v1078
    %v1188 = vcombine.low %v1079, %v1080
    %v1189 = vcombine.low %v1081, %v1082
    %v1190 = vcombine.low %v1083, %v1084
    %v1192 = vunpack.c.l.s4 1966171168
    %v1193 = vunpack.c.0.s8 %v1192
    %v1194 = vlaneseq
    %v1195 = vshrl.u32 %v1194, 7
    %v1196 = vsub.s32 %v1193, %v1195
    %v1197 = vrot.slane %v1187, %v1196
    %v1199 = vunpack.c.l.s4 1966171168
    %v1200 = vunpack.c.0.s8 %v1199
    %v1201 = vlaneseq
    %v1202 = vshrl.u32 %v1201, 7
    %v1203 = vsub.s32 %v1200, %v1202
    %v1204 = vrot.slane %v1188, %v1203
    %v1206 = vunpack.c.l.s4 1966171168
    %v1207 = vunpack.c.0.s8 %v1206
    %v1208 = vlaneseq
    %v1209 = vshrl.u32 %v1208, 7
    %v1210 = vsub.s32 %v1207, %v1209
    %v1211 = vrot.slane %v1189, %v1210
    %v1213 = vunpack.c.l.s4 1966171168
    %v1214 = vunpack.c.0.s8 %v1213
    %v1215 = vlaneseq
    %v1216 = vshrl.u32 %v1215, 7
    %v1217 = vsub.s32 %v1214, %v1216
    %v1218 = vrot.slane %v1190, %v1217
    %v1219 = vcombine.low %v1197, %v1204
    %v1220 = vcombine.low %v1211, %v1218
    %v1222 = vunpack.c.l.s4 1966171168
    %v1223 = vunpack.c.0.s8 %v1222
    %v1224 = vlaneseq
    %v1225 = vshrl.u32 %v1224, 7
    %v1226 = vsub.s32 %v1223, %v1225
    %v1227 = vrot.slane %v1219, %v1226
    %v1229 = vunpack.c.l.s4 1966171168
    %v1230 = vunpack.c.0.s8 %v1229
    %v1231 = vlaneseq
    %v1232 = vshrl.u32 %v1231, 7
    %v1233 = vsub.s32 %v1230, %v1232
    %v1234 = vrot.slane %v1220, %v1233
    %v1235 = vcombine.low %v1227, %v1234
    %v1237 = vsel %vm1119, %v1235, 0.0
    %s1238 = scalar_lea.vmem [#allocation2], 1
    %v1239 = vld [vmem:[%s1238] ss:$8 sm:$0xf]
    %s1240 = scalar_lea.vmem [#allocation2], 33
    %v1241 = vld [vmem:[%s1240] ss:$8 sm:$0xf]
    %s1242 = scalar_lea.vmem [#allocation2], 65
    %v1243 = vld [vmem:[%s1242] ss:$8 sm:$0xf]
    %s1244 = scalar_lea.vmem [#allocation2], 97
    %v1245 = vld [vmem:[%s1244] ss:$8 sm:$0xf]
    %s1246 = scalar_lea.vmem [#allocation2], 129
    %v1247 = vld [vmem:[%s1246] ss:$8 sm:$0xf]
    %s1248 = scalar_lea.vmem [#allocation2], 161
    %v1249 = vld [vmem:[%s1248] ss:$8 sm:$0xf]
    %s1250 = scalar_lea.vmem [#allocation2], 193
    %v1251 = vld [vmem:[%s1250] ss:$8 sm:$0xf]
    %s1252 = scalar_lea.vmem [#allocation2], 225
    %v1253 = vld [vmem:[%s1252] ss:$8 sm:$0xf]
    %v1262 = vcombine.low %v1239, %v1241
    %v1263 = vcombine.low %v1243, %v1245
    %v1264 = vcombine.low %v1247, %v1249
    %v1265 = vcombine.low %v1251, %v1253
    %v1267 = vunpack.c.l.s4 1966171168
    %v1268 = vunpack.c.0.s8 %v1267
    %v1269 = vlaneseq
    %v1270 = vshrl.u32 %v1269, 7
    %v1271 = vsub.s32 %v1268, %v1270
    %v1272 = vrot.slane %v1262, %v1271
    %v1274 = vunpack.c.l.s4 1966171168
    %v1275 = vunpack.c.0.s8 %v1274
    %v1276 = vlaneseq
    %v1277 = vshrl.u32 %v1276, 7
    %v1278 = vsub.s32 %v1275, %v1277
    %v1279 = vrot.slane %v1263, %v1278
    %v1281 = vunpack.c.l.s4 1966171168
    %v1282 = vunpack.c.0.s8 %v1281
    %v1283 = vlaneseq
    %v1284 = vshrl.u32 %v1283, 7
    %v1285 = vsub.s32 %v1282, %v1284
    %v1286 = vrot.slane %v1264, %v1285
    %v1288 = vunpack.c.l.s4 1966171168
    %v1289 = vunpack.c.0.s8 %v1288
    %v1290 = vlaneseq
    %v1291 = vshrl.u32 %v1290, 7
    %v1292 = vsub.s32 %v1289, %v1291
    %v1293 = vrot.slane %v1265, %v1292
    %v1294 = vcombine.low %v1272, %v1279
    %v1295 = vcombine.high %v1272, %v1279
    %v1296 = vcombine.low %v1286, %v1293
    %v1297 = vcombine.high %v1286, %v1293
    %v1299 = vunpack.c.l.s4 1966171168
    %v1300 = vunpack.c.0.s8 %v1299
    %v1301 = vlaneseq
    %v1302 = vshrl.u32 %v1301, 7
    %v1303 = vsub.s32 %v1300, %v1302
    %v1304 = vrot.slane %v1294, %v1303
    %v1306 = vunpack.c.l.s4 1966171168
    %v1307 = vunpack.c.0.s8 %v1306
    %v1308 = vlaneseq
    %v1309 = vshrl.u32 %v1308, 7
    %v1310 = vsub.s32 %v1307, %v1309
    %v1311 = vrot.slane %v1295, %v1310
    %v1313 = vunpack.c.l.s4 1966171168
    %v1314 = vunpack.c.0.s8 %v1313
    %v1315 = vlaneseq
    %v1316 = vshrl.u32 %v1315, 7
    %v1317 = vsub.s32 %v1314, %v1316
    %v1318 = vrot.slane %v1296, %v1317
    %v1320 = vunpack.c.l.s4 1966171168
    %v1321 = vunpack.c.0.s8 %v1320
    %v1322 = vlaneseq
    %v1323 = vshrl.u32 %v1322, 7
    %v1324 = vsub.s32 %v1321, %v1323
    %v1325 = vrot.slane %v1297, %v1324
    %v1326 = vcombine.low %v1304, %v1318
    %v1327 = vcombine.high %v1304, %v1318
    %v1328 = vcombine.low %v1311, %v1325
    %v1329 = vcombine.high %v1311, %v1325
    %1334 = vmatprep.subr.mxu0 %v879
    %1335 = vmatpush1.msra.mxu0 %v878
    %1336 = vmatprep.subr.mxu0 %v883
    %1337 = vmatpush1.msra.mxu0 %v882
    %1338 = vmatprep.subr.mxu0 %v887
    %1339 = vmatpush1.msra.mxu0 %v886
    %1340 = vmatprep.subr.mxu0 %v891
    %1341 = vmatpush1.msra.mxu0 %v890
    %1342 = vmatprep.subr.mxu0 %v895
    %1343 = vmatpush1.msra.mxu0 %v894
    %1344 = vmatprep.subr.mxu0 %v899
    %1345 = vmatpush1.msra.mxu0 %v898
    %1346 = vmatprep.subr.mxu0 %v903
    %1347 = vmatpush1.msra.mxu0 %v902
    %1348 = vmatprep.subr.mxu0 %v907
    %1349 = vmatpush1.msra.mxu0 %v906
    %1350 = vmatprep.subr.mxu0 %v911
    %1351 = vmatpush1.msra.mxu0 %v910
    %1352 = vmatprep.subr.mxu0 %v915
    %1353 = vmatpush1.msra.mxu0 %v914
    %1354 = vmatprep.subr.mxu0 %v919
    %1355 = vmatpush1.msra.mxu0 %v918
    %1356 = vmatprep.subr.mxu0 %v923
    %1357 = vmatpush1.msra.mxu0 %v922
    %1358 = vmatprep.subr.mxu0 %v927
    %1359 = vmatpush1.msra.mxu0 %v926
    %1360 = vmatprep.subr.mxu0 %v931
    %1361 = vmatpush1.msra.mxu0 %v930
    %1362 = vmatprep.subr.mxu0 %v935
    %1363 = vmatpush1.msra.mxu0 %v934
    %1364 = vmatprep.subr.mxu0 %v939
    %1365 = vmatpush1.msra.mxu0 %v938
    %1366 = vmatprep.subr.mxu0 0.0
    %1367 = vmatpush1.msra.mxu0 0.0
    %1368 = vmatprep.subr.mxu0 0.0
    %1369 = vmatpush1.msra.mxu0 0.0
    %1370 = vmatprep.subr.mxu0 0.0
    %1371 = vmatpush1.msra.mxu0 0.0
    %1372 = vmatprep.subr.mxu0 0.0
    %1373 = vmatpush1.msra.mxu0 0.0
    %1374 = vmatprep.subr.mxu0 0.0
    %1375 = vmatpush1.msra.mxu0 0.0
    %1376 = vmatprep.subr.mxu0 0.0
    %1377 = vmatpush1.msra.mxu0 0.0
    %1378 = vmatprep.subr.mxu0 0.0
    %1379 = vmatpush1.msra.mxu0 0.0
    %1380 = vmatprep.subr.mxu0 0.0
    %1381 = vmatpush1.msra.mxu0 0.0
    %1382 = vmatprep.subr.mxu0 0.0
    %1383 = vmatpush1.msra.mxu0 0.0
    %1384 = vmatprep.subr.mxu0 0.0
    %1385 = vmatpush1.msra.mxu0 0.0
    %1386 = vmatprep.subr.mxu0 0.0
    %1387 = vmatpush1.msra.mxu0 0.0
    %1388 = vmatprep.subr.mxu0 0.0
    %1389 = vmatpush1.msra.mxu0 0.0
    %1390 = vmatprep.subr.mxu0 0.0
    %1391 = vmatpush1.msra.mxu0 0.0
    %1392 = vmatprep.subr.mxu0 0.0
    %1393 = vmatpush1.msra.mxu0 0.0
    %1394 = vmatprep.subr.mxu0 0.0
    %1395 = vmatpush1.msra.mxu0 0.0
    %1396 = vmatprep.subr.mxu0 0.0
    %1397 = vmatpush1.msra.mxu0 0.0
    %1398 = vmatprep.mubr.f32.mxu0 0.0
    %1399 = vmatmul.mubr.f32.gmra.mrb[0].mxu0 %v1178
    %v1400 = vpop.f32.mrb[0].mxu0
    %v1401 = vadd.f32 %v1326, %v1400
    %v1402 = vpop.f32.mrb[0].mxu0
    %v1403 = vadd.f32 %v1328, %v1402
    %1404 = vdwg.mxu0
    %1405 = vmatprep.subr.mxu0 %v881
    %1406 = vmatpush1.msra.mxu0 %v880
    %1407 = vmatprep.subr.mxu0 %v885
    %1408 = vmatpush1.msra.mxu0 %v884
    %1409 = vmatprep.subr.mxu0 %v889
    %1410 = vmatpush1.msra.mxu0 %v888
    %1411 = vmatprep.subr.mxu0 %v893
    %1412 = vmatpush1.msra.mxu0 %v892
    %1413 = vmatprep.subr.mxu0 %v897
    %1414 = vmatpush1.msra.mxu0 %v896
    %1415 = vmatprep.subr.mxu0 %v901
    %1416 = vmatpush1.msra.mxu0 %v900
    %1417 = vmatprep.subr.mxu0 %v905
    %1418 = vmatpush1.msra.mxu0 %v904
    %1419 = vmatprep.subr.mxu0 %v909
    %1420 = vmatpush1.msra.mxu0 %v908
    %1421 = vmatprep.subr.mxu0 %v913
    %1422 = vmatpush1.msra.mxu0 %v912
    %1423 = vmatprep.subr.mxu0 %v917
    %1424 = vmatpush1.msra.mxu0 %v916
    %1425 = vmatprep.subr.mxu0 %v921
    %1426 = vmatpush1.msra.mxu0 %v920
    %1427 = vmatprep.subr.mxu0 %v925
    %1428 = vmatpush1.msra.mxu0 %v924
    %1429 = vmatprep.subr.mxu0 %v929
    %1430 = vmatpush1.msra.mxu0 %v928
    %1431 = vmatprep.subr.mxu0 %v933
    %1432 = vmatpush1.msra.mxu0 %v932
    %1433 = vmatprep.subr.mxu0 %v937
    %1434 = vmatpush1.msra.mxu0 %v936
    %1435 = vmatprep.subr.mxu0 %v941
    %1436 = vmatpush1.msra.mxu0 %v940
    %1437 = vmatprep.subr.mxu0 0.0
    %1438 = vmatpush1.msra.mxu0 0.0
    %1439 = vmatprep.subr.mxu0 0.0
    %1440 = vmatpush1.msra.mxu0 0.0
    %1441 = vmatprep.subr.mxu0 0.0
    %1442 = vmatpush1.msra.mxu0 0.0
    %1443 = vmatprep.subr.mxu0 0.0
    %1444 = vmatpush1.msra.mxu0 0.0
    %1445 = vmatprep.subr.mxu0 0.0
    %1446 = vmatpush1.msra.mxu0 0.0
    %1447 = vmatprep.subr.mxu0 0.0
    %1448 = vmatpush1.msra.mxu0 0.0
    %1449 = vmatprep.subr.mxu0 0.0
    %1450 = vmatpush1.msra.mxu0 0.0
    %1451 = vmatprep.subr.mxu0 0.0
    %1452 = vmatpush1.msra.mxu0 0.0
    %1453 = vmatprep.subr.mxu0 0.0
    %1454 = vmatpush1.msra.mxu0 0.0
    %1455 = vmatprep.subr.mxu0 0.0
    %1456 = vmatpush1.msra.mxu0 0.0
    %1457 = vmatprep.subr.mxu0 0.0
    %1458 = vmatpush1.msra.mxu0 0.0
    %1459 = vmatprep.subr.mxu0 0.0
    %1460 = vmatpush1.msra.mxu0 0.0
    %1461 = vmatprep.subr.mxu0 0.0
    %1462 = vmatpush1.msra.mxu0 0.0
    %1463 = vmatprep.subr.mxu0 0.0
    %1464 = vmatpush1.msra.mxu0 0.0
    %1465 = vmatprep.subr.mxu0 0.0
    %1466 = vmatpush1.msra.mxu0 0.0
    %1467 = vmatprep.subr.mxu0 0.0
    %1468 = vmatpush1.msra.mxu0 0.0
    %1469 = vmatprep.mubr.f32.mxu0 0.0
    %1470 = vmatmul.mubr.f32.gmra.mrb[0].mxu0 %v1178
    %v1471 = vpop.f32.mrb[0].mxu0
    %v1472 = vadd.f32 %v1327, %v1471
    %v1473 = vpop.f32.mrb[0].mxu0
    %v1474 = vadd.f32 %v1329, %v1473
    %1475 = vdwg.mxu0
    %v1476 = vxor.u32 %v1401, 2147483648
    %v1477 = vxor.u32 %v1403, 2147483648
    %v1478 = vxor.u32 %v1472, 2147483648
    %v1479 = vmul.f32 %v1476, 1.442695
    %v1480 = vpow.pop %v1479
    %v1481 = vmul.f32 %v1477, 1.442695
    %v1482 = vpow.pop %v1481
    %v1483 = vmul.f32 %v1478, 1.442695
    %v1484 = vpow.pop %v1483
    %v1485 = vadd.f32 %v1480, 1.0
    %v1486 = vadd.f32 %v1482, 1.0
    %v1487 = vadd.f32 %v1484, 1.0
    %v1488 = vrcp.pop %v1485
    %v1489 = vmul.f32 1.0, %v1488
    %v1490 = vrcp.pop %v1486
    %v1491 = vmul.f32 1.0, %v1490
    %v1492 = vrcp.pop %v1487
    %v1493 = vmul.f32 1.0, %v1492
    %v1494 = vtanh.pop %v1474
    %v1495 = vmul.f32 %v1491, %v1237
    %v1496 = vmul.f32 %v1489, %v1494
    %v1497 = vadd.f32 %v1495, %v1496
    %v1498 = vtanh.pop %v1497
    %v1499 = vmul.f32 %v1493, %v1498
    %s1500 = scalar_lea.vmem [#allocation2], 2
    %v1501 = vld [vmem:[%s1500] ss:$8 sm:$0xf]
    %s1502 = scalar_lea.vmem [#allocation2], 34
    %v1503 = vld [vmem:[%s1502] ss:$8 sm:$0xf]
    %s1504 = scalar_lea.vmem [#allocation2], 66
    %v1505 = vld [vmem:[%s1504] ss:$8 sm:$0xf]
    %s1506 = scalar_lea.vmem [#allocation2], 98
    %v1507 = vld [vmem:[%s1506] ss:$8 sm:$0xf]
    %s1508 = scalar_lea.vmem [#allocation2], 130
    %v1509 = vld [vmem:[%s1508] ss:$8 sm:$0xf]
    %s1510 = scalar_lea.vmem [#allocation2], 162
    %v1511 = vld [vmem:[%s1510] ss:$8 sm:$0xf]
    %s1512 = scalar_lea.vmem [#allocation2], 194
    %v1513 = vld [vmem:[%s1512] ss:$8 sm:$0xf]
    %s1514 = scalar_lea.vmem [#allocation2], 226
    %v1515 = vld [vmem:[%s1514] ss:$8 sm:$0xf]
    %v1524 = vcombine.low %v1501, %v1503
    %v1525 = vcombine.low %v1505, %v1507
    %v1526 = vcombine.low %v1509, %v1511
    %v1527 = vcombine.low %v1513, %v1515
    %v1529 = vunpack.c.l.s4 1966171168
    %v1530 = vunpack.c.0.s8 %v1529
    %v1531 = vlaneseq
    %v1532 = vshrl.u32 %v1531, 7
    %v1533 = vsub.s32 %v1530, %v1532
    %v1534 = vrot.slane %v1524, %v1533
    %v1536 = vunpack.c.l.s4 1966171168
    %v1537 = vunpack.c.0.s8 %v1536
    %v1538 = vlaneseq
    %v1539 = vshrl.u32 %v1538, 7
    %v1540 = vsub.s32 %v1537, %v1539
    %v1541 = vrot.slane %v1525, %v1540
    %v1543 = vunpack.c.l.s4 1966171168
    %v1544 = vunpack.c.0.s8 %v1543
    %v1545 = vlaneseq
    %v1546 = vshrl.u32 %v1545, 7
    %v1547 = vsub.s32 %v1544, %v1546
    %v1548 = vrot.slane %v1526, %v1547
    %v1550 = vunpack.c.l.s4 1966171168
    %v1551 = vunpack.c.0.s8 %v1550
    %v1552 = vlaneseq
    %v1553 = vshrl.u32 %v1552, 7
    %v1554 = vsub.s32 %v1551, %v1553
    %v1555 = vrot.slane %v1527, %v1554
    %v1556 = vcombine.low %v1534, %v1541
    %v1557 = vcombine.high %v1534, %v1541
    %v1558 = vcombine.low %v1548, %v1555
    %v1559 = vcombine.high %v1548, %v1555
    %v1561 = vunpack.c.l.s4 1966171168
    %v1562 = vunpack.c.0.s8 %v1561
    %v1563 = vlaneseq
    %v1564 = vshrl.u32 %v1563, 7
    %v1565 = vsub.s32 %v1562, %v1564
    %v1566 = vrot.slane %v1556, %v1565
    %v1568 = vunpack.c.l.s4 1966171168
    %v1569 = vunpack.c.0.s8 %v1568
    %v1570 = vlaneseq
    %v1571 = vshrl.u32 %v1570, 7
    %v1572 = vsub.s32 %v1569, %v1571
    %v1573 = vrot.slane %v1557, %v1572
    %v1575 = vunpack.c.l.s4 1966171168
    %v1576 = vunpack.c.0.s8 %v1575
    %v1577 = vlaneseq
    %v1578 = vshrl.u32 %v1577, 7
    %v1579 = vsub.s32 %v1576, %v1578
    %v1580 = vrot.slane %v1558, %v1579
    %v1582 = vunpack.c.l.s4 1966171168
    %v1583 = vunpack.c.0.s8 %v1582
    %v1584 = vlaneseq
    %v1585 = vshrl.u32 %v1584, 7
    %v1586 = vsub.s32 %v1583, %v1585
    %v1587 = vrot.slane %v1559, %v1586
    %v1588 = vcombine.low %v1566, %v1580
    %v1589 = vcombine.high %v1566, %v1580
    %v1590 = vcombine.low %v1573, %v1587
    %v1591 = vcombine.high %v1573, %v1587
    %1596 = vmatprep.subr.mxu0 %v879
    %1597 = vmatpush1.msra.mxu0 %v878
    %1598 = vmatprep.subr.mxu0 %v883
    %1599 = vmatpush1.msra.mxu0 %v882
    %1600 = vmatprep.subr.mxu0 %v887
    %1601 = vmatpush1.msra.mxu0 %v886
    %1602 = vmatprep.subr.mxu0 %v891
    %1603 = vmatpush1.msra.mxu0 %v890
    %1604 = vmatprep.subr.mxu0 %v895
    %1605 = vmatpush1.msra.mxu0 %v894
    %1606 = vmatprep.subr.mxu0 %v899
    %1607 = vmatpush1.msra.mxu0 %v898
    %1608 = vmatprep.subr.mxu0 %v903
    %1609 = vmatpush1.msra.mxu0 %v902
    %1610 = vmatprep.subr.mxu0 %v907
    %1611 = vmatpush1.msra.mxu0 %v906
    %1612 = vmatprep.subr.mxu0 %v911
    %1613 = vmatpush1.msra.mxu0 %v910
    %1614 = vmatprep.subr.mxu0 %v915
    %1615 = vmatpush1.msra.mxu0 %v914
    %1616 = vmatprep.subr.mxu0 %v919
    %1617 = vmatpush1.msra.mxu0 %v918
    %1618 = vmatprep.subr.mxu0 %v923
    %1619 = vmatpush1.msra.mxu0 %v922
    %1620 = vmatprep.subr.mxu0 %v927
    %1621 = vmatpush1.msra.mxu0 %v926
    %1622 = vmatprep.subr.mxu0 %v931
    %1623 = vmatpush1.msra.mxu0 %v930
    %1624 = vmatprep.subr.mxu0 %v935
    %1625 = vmatpush1.msra.mxu0 %v934
    %1626 = vmatprep.subr.mxu0 %v939
    %1627 = vmatpush1.msra.mxu0 %v938
    %1628 = vmatprep.subr.mxu0 0.0
    %1629 = vmatpush1.msra.mxu0 0.0
    %1630 = vmatprep.subr.mxu0 0.0
    %1631 = vmatpush1.msra.mxu0 0.0
    %1632 = vmatprep.subr.mxu0 0.0
    %1633 = vmatpush1.msra.mxu0 0.0
    %1634 = vmatprep.subr.mxu0 0.0
    %1635 = vmatpush1.msra.mxu0 0.0
    %1636 = vmatprep.subr.mxu0 0.0
    %1637 = vmatpush1.msra.mxu0 0.0
    %1638 = vmatprep.subr.mxu0 0.0
    %1639 = vmatpush1.msra.mxu0 0.0
    %1640 = vmatprep.subr.mxu0 0.0
    %1641 = vmatpush1.msra.mxu0 0.0
    %1642 = vmatprep.subr.mxu0 0.0
    %1643 = vmatpush1.msra.mxu0 0.0
    %1644 = vmatprep.subr.mxu0 0.0
    %1645 = vmatpush1.msra.mxu0 0.0
    %1646 = vmatprep.subr.mxu0 0.0
    %1647 = vmatpush1.msra.mxu0 0.0
    %1648 = vmatprep.subr.mxu0 0.0
    %1649 = vmatpush1.msra.mxu0 0.0
    %1650 = vmatprep.subr.mxu0 0.0
    %1651 = vmatpush1.msra.mxu0 0.0
    %1652 = vmatprep.subr.mxu0 0.0
    %1653 = vmatpush1.msra.mxu0 0.0
    %1654 = vmatprep.subr.mxu0 0.0
    %1655 = vmatpush1.msra.mxu0 0.0
    %1656 = vmatprep.subr.mxu0 0.0
    %1657 = vmatpush1.msra.mxu0 0.0
    %1658 = vmatprep.subr.mxu0 0.0
    %1659 = vmatpush1.msra.mxu0 0.0
    %1660 = vmatprep.mubr.f32.mxu0 0.0
    %1661 = vmatmul.mubr.f32.gmra.mrb[0].mxu0 %v1499
    %v1662 = vpop.f32.mrb[0].mxu0
    %v1663 = vadd.f32 %v1588, %v1662
    %v1664 = vpop.f32.mrb[0].mxu0
    %v1665 = vadd.f32 %v1590, %v1664
    %1666 = vdwg.mxu0
    %1667 = vmatprep.subr.mxu0 %v881
    %1668 = vmatpush1.msra.mxu0 %v880
    %1669 = vmatprep.subr.mxu0 %v885
    %1670 = vmatpush1.msra.mxu0 %v884
    %1671 = vmatprep.subr.mxu0 %v889
    %1672 = vmatpush1.msra.mxu0 %v888
    %1673 = vmatprep.subr.mxu0 %v893
    %1674 = vmatpush1.msra.mxu0 %v892
    %1675 = vmatprep.subr.mxu0 %v897
    %1676 = vmatpush1.msra.mxu0 %v896
    %1677 = vmatprep.subr.mxu0 %v901
    %1678 = vmatpush1.msra.mxu0 %v900
    %1679 = vmatprep.subr.mxu0 %v905
    %1680 = vmatpush1.msra.mxu0 %v904
    %1681 = vmatprep.subr.mxu0 %v909
    %1682 = vmatpush1.msra.mxu0 %v908
    %1683 = vmatprep.subr.mxu0 %v913
    %1684 = vmatpush1.msra.mxu0 %v912
    %1685 = vmatprep.subr.mxu0 %v917
    %1686 = vmatpush1.msra.mxu0 %v916
    %1687 = vmatprep.subr.mxu0 %v921
    %1688 = vmatpush1.msra.mxu0 %v920
    %1689 = vmatprep.subr.mxu0 %v925
    %1690 = vmatpush1.msra.mxu0 %v924
    %1691 = vmatprep.subr.mxu0 %v929
    %1692 = vmatpush1.msra.mxu0 %v928
    %1693 = vmatprep.subr.mxu0 %v933
    %1694 = vmatpush1.msra.mxu0 %v932
    %1695 = vmatprep.subr.mxu0 %v937
    %1696 = vmatpush1.msra.mxu0 %v936
    %1697 = vmatprep.subr.mxu0 %v941
    %1698 = vmatpush1.msra.mxu0 %v940
    %1699 = vmatprep.subr.mxu0 0.0
    %1700 = vmatpush1.msra.mxu0 0.0
    %1701 = vmatprep.subr.mxu0 0.0
    %1702 = vmatpush1.msra.mxu0 0.0
    %1703 = vmatprep.subr.mxu0 0.0
    %1704 = vmatpush1.msra.mxu0 0.0
    %1705 = vmatprep.subr.mxu0 0.0
    %1706 = vmatpush1.msra.mxu0 0.0
    %1707 = vmatprep.subr.mxu0 0.0
    %1708 = vmatpush1.msra.mxu0 0.0
    %1709 = vmatprep.subr.mxu0 0.0
    %1710 = vmatpush1.msra.mxu0 0.0
    %1711 = vmatprep.subr.mxu0 0.0
    %1712 = vmatpush1.msra.mxu0 0.0
    %1713 = vmatprep.subr.mxu0 0.0
    %1714 = vmatpush1.msra.mxu0 0.0
    %1715 = vmatprep.subr.mxu0 0.0
    %1716 = vmatpush1.msra.mxu0 0.0
    %1717 = vmatprep.subr.mxu0 0.0
    %1718 = vmatpush1.msra.mxu0 0.0
    %1719 = vmatprep.subr.mxu0 0.0
    %1720 = vmatpush1.msra.mxu0 0.0
    %1721 = vmatprep.subr.mxu0 0.0
    %1722 = vmatpush1.msra.mxu0 0.0
    %1723 = vmatprep.subr.mxu0 0.0
    %1724 = vmatpush1.msra.mxu0 0.0
    %1725 = vmatprep.subr.mxu0 0.0
    %1726 = vmatpush1.msra.mxu0 0.0
    %1727 = vmatprep.subr.mxu0 0.0
    %1728 = vmatpush1.msra.mxu0 0.0
    %1729 = vmatprep.subr.mxu0 0.0
    %1730 = vmatpush1.msra.mxu0 0.0
    %1731 = vmatprep.mubr.f32.mxu0 0.0
    %1732 = vmatmul.mubr.f32.gmra.mrb[0].mxu0 %v1499
    %v1733 = vpop.f32.mrb[0].mxu0
    %v1734 = vadd.f32 %v1589, %v1733
    %v1735 = vpop.f32.mrb[0].mxu0
    %v1736 = vadd.f32 %v1591, %v1735
    %1737 = vdwg.mxu0
    %v1738 = vxor.u32 %v1663, 2147483648
    %v1739 = vxor.u32 %v1665, 2147483648
    %v1740 = vxor.u32 %v1734, 2147483648
    %v1741 = vmul.f32 %v1738, 1.442695
    %v1742 = vpow.pop %v1741
    %v1743 = vmul.f32 %v1739, 1.442695
    %v1744 = vpow.pop %v1743
    %v1745 = vmul.f32 %v1740, 1.442695
    %v1746 = vpow.pop %v1745
    %v1747 = vadd.f32 %v1742, 1.0
    %v1748 = vadd.f32 %v1744, 1.0
    %v1749 = vadd.f32 %v1746, 1.0
    %v1750 = vrcp.pop %v1747
    %v1751 = vmul.f32 1.0, %v1750
    %v1752 = vrcp.pop %v1748
    %v1753 = vmul.f32 1.0, %v1752
    %v1754 = vrcp.pop %v1749
    %v1755 = vmul.f32 1.0, %v1754
    %v1756 = vtanh.pop %v1736
    %v1757 = vmul.f32 %v1753, %v1497
    %v1758 = vmul.f32 %v1751, %v1756
    %v1759 = vadd.f32 %v1757, %v1758
    %v1760 = vtanh.pop %v1759
    %v1761 = vmul.f32 %v1755, %v1760
    %s1762 = scalar_lea.vmem [#allocation2], 3
    %v1763 = vld [vmem:[%s1762] ss:$8 sm:$0xf]
    %s1764 = scalar_lea.vmem [#allocation2], 35
    %v1765 = vld [vmem:[%s1764] ss:$8 sm:$0xf]
    %s1766 = scalar_lea.vmem [#allocation2], 67
    %v1767 = vld [vmem:[%s1766] ss:$8 sm:$0xf]
    %s1768 = scalar_lea.vmem [#allocation2], 99
    %v1769 = vld [vmem:[%s1768] ss:$8 sm:$0xf]
    %s1770 = scalar_lea.vmem [#allocation2], 131
    %v1771 = vld [vmem:[%s1770] ss:$8 sm:$0xf]
    %s1772 = scalar_lea.vmem [#allocation2], 163
    %v1773 = vld [vmem:[%s1772] ss:$8 sm:$0xf]
    %s1774 = scalar_lea.vmem [#allocation2], 195
    %v1775 = vld [vmem:[%s1774] ss:$8 sm:$0xf]
    %s1776 = scalar_lea.vmem [#allocation2], 227
    %v1777 = vld [vmem:[%s1776] ss:$8 sm:$0xf]
    %v1786 = vcombine.low %v1763, %v1765
    %v1787 = vcombine.low %v1767, %v1769
    %v1788 = vcombine.low %v1771, %v1773
    %v1789 = vcombine.low %v1775, %v1777
    %v1791 = vunpack.c.l.s4 1966171168
    %v1792 = vunpack.c.0.s8 %v1791
    %v1793 = vlaneseq
    %v1794 = vshrl.u32 %v1793, 7
    %v1795 = vsub.s32 %v1792, %v1794
    %v1796 = vrot.slane %v1786, %v1795
    %v1798 = vunpack.c.l.s4 1966171168
    %v1799 = vunpack.c.0.s8 %v1798
    %v1800 = vlaneseq
    %v1801 = vshrl.u32 %v1800, 7
    %v1802 = vsub.s32 %v1799, %v1801
    %v1803 = vrot.slane %v1787, %v1802
    %v1805 = vunpack.c.l.s4 1966171168
    %v1806 = vunpack.c.0.s8 %v1805
    %v1807 = vlaneseq
    %v1808 = vshrl.u32 %v1807, 7
    %v1809 = vsub.s32 %v1806, %v1808
    %v1810 = vrot.slane %v1788, %v1809
    %v1812 = vunpack.c.l.s4 1966171168
    %v1813 = vunpack.c.0.s8 %v1812
    %v1814 = vlaneseq
    %v1815 = vshrl.u32 %v1814, 7
    %v1816 = vsub.s32 %v1813, %v1815
    %v1817 = vrot.slane %v1789, %v1816
    %v1818 = vcombine.low %v1796, %v1803
    %v1819 = vcombine.high %v1796, %v1803
    %v1820 = vcombine.low %v1810, %v1817
    %v1821 = vcombine.high %v1810, %v1817
    %v1823 = vunpack.c.l.s4 1966171168
    %v1824 = vunpack.c.0.s8 %v1823
    %v1825 = vlaneseq
    %v1826 = vshrl.u32 %v1825, 7
    %v1827 = vsub.s32 %v1824, %v1826
    %v1828 = vrot.slane %v1818, %v1827
    %v1830 = vunpack.c.l.s4 1966171168
    %v1831 = vunpack.c.0.s8 %v1830
    %v1832 = vlaneseq
    %v1833 = vshrl.u32 %v1832, 7
    %v1834 = vsub.s32 %v1831, %v1833
    %v1835 = vrot.slane %v1819, %v1834
    %v1837 = vunpack.c.l.s4 1966171168
    %v1838 = vunpack.c.0.s8 %v1837
    %v1839 = vlaneseq
    %v1840 = vshrl.u32 %v1839, 7
    %v1841 = vsub.s32 %v1838, %v1840
    %v1842 = vrot.slane %v1820, %v1841
    %v1844 = vunpack.c.l.s4 1966171168
    %v1845 = vunpack.c.0.s8 %v1844
    %v1846 = vlaneseq
    %v1847 = vshrl.u32 %v1846, 7
    %v1848 = vsub.s32 %v1845, %v1847
    %v1849 = vrot.slane %v1821, %v1848
    %v1850 = vcombine.low %v1828, %v1842
    %v1851 = vcombine.high %v1828, %v1842
    %v1852 = vcombine.low %v1835, %v1849
    %v1853 = vcombine.high %v1835, %v1849
    %1858 = vmatprep.subr.mxu0 %v879
    %1859 = vmatpush1.msra.mxu0 %v878
    %1860 = vmatprep.subr.mxu0 %v883
    %1861 = vmatpush1.msra.mxu0 %v882
    %1862 = vmatprep.subr.mxu0 %v887
    %1863 = vmatpush1.msra.mxu0 %v886
    %1864 = vmatprep.subr.mxu0 %v891
    %1865 = vmatpush1.msra.mxu0 %v890
    %1866 = vmatprep.subr.mxu0 %v895
    %1867 = vmatpush1.msra.mxu0 %v894
    %1868 = vmatprep.subr.mxu0 %v899
    %1869 = vmatpush1.msra.mxu0 %v898
    %1870 = vmatprep.subr.mxu0 %v903
    %1871 = vmatpush1.msra.mxu0 %v902
    %1872 = vmatprep.subr.mxu0 %v907
    %1873 = vmatpush1.msra.mxu0 %v906
    %1874 = vmatprep.subr.mxu0 %v911
    %1875 = vmatpush1.msra.mxu0 %v910
    %1876 = vmatprep.subr.mxu0 %v915
    %1877 = vmatpush1.msra.mxu0 %v914
    %1878 = vmatprep.subr.mxu0 %v919
    %1879 = vmatpush1.msra.mxu0 %v918
    %1880 = vmatprep.subr.mxu0 %v923
    %1881 = vmatpush1.msra.mxu0 %v922
    %1882 = vmatprep.subr.mxu0 %v927
    %1883 = vmatpush1.msra.mxu0 %v926
    %1884 = vmatprep.subr.mxu0 %v931
    %1885 = vmatpush1.msra.mxu0 %v930
    %1886 = vmatprep.subr.mxu0 %v935
    %1887 = vmatpush1.msra.mxu0 %v934
    %1888 = vmatprep.subr.mxu0 %v939
    %1889 = vmatpush1.msra.mxu0 %v938
    %1890 = vmatprep.subr.mxu0 0.0
    %1891 = vmatpush1.msra.mxu0 0.0
    %1892 = vmatprep.subr.mxu0 0.0
    %1893 = vmatpush1.msra.mxu0 0.0
    %1894 = vmatprep.subr.mxu0 0.0
    %1895 = vmatpush1.msra.mxu0 0.0
    %1896 = vmatprep.subr.mxu0 0.0
    %1897 = vmatpush1.msra.mxu0 0.0
    %1898 = vmatprep.subr.mxu0 0.0
    %1899 = vmatpush1.msra.mxu0 0.0
    %1900 = vmatprep.subr.mxu0 0.0
    %1901 = vmatpush1.msra.mxu0 0.0
    %1902 = vmatprep.subr.mxu0 0.0
    %1903 = vmatpush1.msra.mxu0 0.0
    %1904 = vmatprep.subr.mxu0 0.0
    %1905 = vmatpush1.msra.mxu0 0.0
    %1906 = vmatprep.subr.mxu0 0.0
    %1907 = vmatpush1.msra.mxu0 0.0
    %1908 = vmatprep.subr.mxu0 0.0
    %1909 = vmatpush1.msra.mxu0 0.0
    %1910 = vmatprep.subr.mxu0 0.0
    %1911 = vmatpush1.msra.mxu0 0.0
    %1912 = vmatprep.subr.mxu0 0.0
    %1913 = vmatpush1.msra.mxu0 0.0
    %1914 = vmatprep.subr.mxu0 0.0
    %1915 = vmatpush1.msra.mxu0 0.0
    %1916 = vmatprep.subr.mxu0 0.0
    %1917 = vmatpush1.msra.mxu0 0.0
    %1918 = vmatprep.subr.mxu0 0.0
    %1919 = vmatpush1.msra.mxu0 0.0
    %1920 = vmatprep.subr.mxu0 0.0
    %1921 = vmatpush1.msra.mxu0 0.0
    %1922 = vmatprep.mubr.f32.mxu0 0.0
    %1923 = vmatmul.mubr.f32.gmra.mrb[0].mxu0 %v1761
    %v1924 = vpop.f32.mrb[0].mxu0
    %v1925 = vadd.f32 %v1850, %v1924
    %v1926 = vpop.f32.mrb[0].mxu0
    %v1927 = vadd.f32 %v1852, %v1926
    %1928 = vdwg.mxu0
    %1929 = vmatprep.subr.mxu0 %v881
    %1930 = vmatpush1.msra.mxu0 %v880
    %1931 = vmatprep.subr.mxu0 %v885
    %1932 = vmatpush1.msra.mxu0 %v884
    %1933 = vmatprep.subr.mxu0 %v889
    %1934 = vmatpush1.msra.mxu0 %v888
    %1935 = vmatprep.subr.mxu0 %v893
    %1936 = vmatpush1.msra.mxu0 %v892
    %1937 = vmatprep.subr.mxu0 %v897
    %1938 = vmatpush1.msra.mxu0 %v896
    %1939 = vmatprep.subr.mxu0 %v901
    %1940 = vmatpush1.msra.mxu0 %v900
    %1941 = vmatprep.subr.mxu0 %v905
    %1942 = vmatpush1.msra.mxu0 %v904
    %1943 = vmatprep.subr.mxu0 %v909
    %1944 = vmatpush1.msra.mxu0 %v908
    %1945 = vmatprep.subr.mxu0 %v913
    %1946 = vmatpush1.msra.mxu0 %v912
    %1947 = vmatprep.subr.mxu0 %v917
    %1948 = vmatpush1.msra.mxu0 %v916
    %1949 = vmatprep.subr.mxu0 %v921
    %1950 = vmatpush1.msra.mxu0 %v920
    %1951 = vmatprep.subr.mxu0 %v925
    %1952 = vmatpush1.msra.mxu0 %v924
    %1953 = vmatprep.subr.mxu0 %v929
    %1954 = vmatpush1.msra.mxu0 %v928
    %1955 = vmatprep.subr.mxu0 %v933
    %1956 = vmatpush1.msra.mxu0 %v932
    %1957 = vmatprep.subr.mxu0 %v937
    %1958 = vmatpush1.msra.mxu0 %v936
    %1959 = vmatprep.subr.mxu0 %v941
    %1960 = vmatpush1.msra.mxu0 %v940
    %1961 = vmatprep.subr.mxu0 0.0
    %1962 = vmatpush1.msra.mxu0 0.0
    %1963 = vmatprep.subr.mxu0 0.0
    %1964 = vmatpush1.msra.mxu0 0.0
    %1965 = vmatprep.subr.mxu0 0.0
    %1966 = vmatpush1.msra.mxu0 0.0
    %1967 = vmatprep.subr.mxu0 0.0
    %1968 = vmatpush1.msra.mxu0 0.0
    %1969 = vmatprep.subr.mxu0 0.0
    %1970 = vmatpush1.msra.mxu0 0.0
    %1971 = vmatprep.subr.mxu0 0.0
    %1972 = vmatpush1.msra.mxu0 0.0
    %1973 = vmatprep.subr.mxu0 0.0
    %1974 = vmatpush1.msra.mxu0 0.0
    %1975 = vmatprep.subr.mxu0 0.0
    %1976 = vmatpush1.msra.mxu0 0.0
    %1977 = vmatprep.subr.mxu0 0.0
    %1978 = vmatpush1.msra.mxu0 0.0
    %1979 = vmatprep.subr.mxu0 0.0
    %1980 = vmatpush1.msra.mxu0 0.0
    %1981 = vmatprep.subr.mxu0 0.0
    %1982 = vmatpush1.msra.mxu0 0.0
    %1983 = vmatprep.subr.mxu0 0.0
    %1984 = vmatpush1.msra.mxu0 0.0
    %1985 = vmatprep.subr.mxu0 0.0
    %1986 = vmatpush1.msra.mxu0 0.0
    %1987 = vmatprep.subr.mxu0 0.0
    %1988 = vmatpush1.msra.mxu0 0.0
    %1989 = vmatprep.subr.mxu0 0.0
    %1990 = vmatpush1.msra.mxu0 0.0
    %1991 = vmatprep.subr.mxu0 0.0
    %1992 = vmatpush1.msra.mxu0 0.0
    %1993 = vmatprep.mubr.f32.mxu0 0.0
    %1994 = vmatmul.mubr.f32.gmra.mrb[0].mxu0 %v1761
    %v1995 = vpop.f32.mrb[0].mxu0
    %v1996 = vadd.f32 %v1851, %v1995
    %v1997 = vpop.f32.mrb[0].mxu0
    %v1998 = vadd.f32 %v1853, %v1997
    %1999 = vdwg.mxu0
    %v2000 = vxor.u32 %v1925, 2147483648
    %v2001 = vxor.u32 %v1927, 2147483648
    %v2002 = vxor.u32 %v1996, 2147483648
    %v2003 = vmul.f32 %v2000, 1.442695
    %v2004 = vpow.pop %v2003
    %v2005 = vmul.f32 %v2001, 1.442695
    %v2006 = vpow.pop %v2005
    %v2007 = vmul.f32 %v2002, 1.442695
    %v2008 = vpow.pop %v2007
    %v2009 = vadd.f32 %v2004, 1.0
    %v2010 = vadd.f32 %v2006, 1.0
    %v2011 = vadd.f32 %v2008, 1.0
    %v2012 = vrcp.pop %v2009
    %v2013 = vmul.f32 1.0, %v2012
    %v2014 = vrcp.pop %v2010
    %v2015 = vmul.f32 1.0, %v2014
    %v2016 = vrcp.pop %v2011
    %v2017 = vmul.f32 1.0, %v2016
    %v2018 = vtanh.pop %v1998
    %v2019 = vmul.f32 %v2015, %v1759
    %v2020 = vmul.f32 %v2013, %v2018
    %v2021 = vadd.f32 %v2019, %v2020
    %v2022 = vtanh.pop %v2021
    %v2023 = vmul.f32 %v2017, %v2022
    %s2024 = scalar_lea.vmem [#allocation2], 4
    %v2025 = vld [vmem:[%s2024] ss:$8 sm:$0xf]
    %s2026 = scalar_lea.vmem [#allocation2], 36
    %v2027 = vld [vmem:[%s2026] ss:$8 sm:$0xf]
    %s2028 = scalar_lea.vmem [#allocation2], 68
    %v2029 = vld [vmem:[%s2028] ss:$8 sm:$0xf]
    %s2030 = scalar_lea.vmem [#allocation2], 100
    %v2031 = vld [vmem:[%s2030] ss:$8 sm:$0xf]
    %s2032 = scalar_lea.vmem [#allocation2], 132
    %v2033 = vld [vmem:[%s2032] ss:$8 sm:$0xf]
    %s2034 = scalar_lea.vmem [#allocation2], 164
    %v2035 = vld [vmem:[%s2034] ss:$8 sm:$0xf]
    %s2036 = scalar_lea.vmem [#allocation2], 196
    %v2037 = vld [vmem:[%s2036] ss:$8 sm:$0xf]
    %s2038 = scalar_lea.vmem [#allocation2], 228
    %v2039 = vld [vmem:[%s2038] ss:$8 sm:$0xf]
    %v2048 = vcombine.low %v2025, %v2027
    %v2049 = vcombine.low %v2029, %v2031
    %v2050 = vcombine.low %v2033, %v2035
    %v2051 = vcombine.low %v2037, %v2039
    %v2053 = vunpack.c.l.s4 1966171168
    %v2054 = vunpack.c.0.s8 %v2053
    %v2055 = vlaneseq
    %v2056 = vshrl.u32 %v2055, 7
    %v2057 = vsub.s32 %v2054, %v2056
    %v2058 = vrot.slane %v2048, %v2057
    %v2060 = vunpack.c.l.s4 1966171168
    %v2061 = vunpack.c.0.s8 %v2060
    %v2062 = vlaneseq
    %v2063 = vshrl.u32 %v2062, 7
    %v2064 = vsub.s32 %v2061, %v2063
    %v2065 = vrot.slane %v2049, %v2064
    %v2067 = vunpack.c.l.s4 1966171168
    %v2068 = vunpack.c.0.s8 %v2067
    %v2069 = vlaneseq
    %v2070 = vshrl.u32 %v2069, 7
    %v2071 = vsub.s32 %v2068, %v2070
    %v2072 = vrot.slane %v2050, %v2071
    %v2074 = vunpack.c.l.s4 1966171168
    %v2075 = vunpack.c.0.s8 %v2074
    %v2076 = vlaneseq
    %v2077 = vshrl.u32 %v2076, 7
    %v2078 = vsub.s32 %v2075, %v2077
    %v2079 = vrot.slane %v2051, %v2078
    %v2080 = vcombine.low %v2058, %v2065
    %v2081 = vcombine.high %v2058, %v2065
    %v2082 = vcombine.low %v2072, %v2079
    %v2083 = vcombine.high %v2072, %v2079
    %v2085 = vunpack.c.l.s4 1966171168
    %v2086 = vunpack.c.0.s8 %v2085
    %v2087 = vlaneseq
    %v2088 = vshrl.u32 %v2087, 7
    %v2089 = vsub.s32 %v2086, %v2088
    %v2090 = vrot.slane %v2080, %v2089
    %v2092 = vunpack.c.l.s4 1966171168
    %v2093 = vunpack.c.0.s8 %v2092
    %v2094 = vlaneseq
    %v2095 = vshrl.u32 %v2094, 7
    %v2096 = vsub.s32 %v2093, %v2095
    %v2097 = vrot.slane %v2081, %v2096
    %v2099 = vunpack.c.l.s4 1966171168
    %v2100 = vunpack.c.0.s8 %v2099
    %v2101 = vlaneseq
    %v2102 = vshrl.u32 %v2101, 7
    %v2103 = vsub.s32 %v2100, %v2102
    %v2104 = vrot.slane %v2082, %v2103
    %v2106 = vunpack.c.l.s4 1966171168
    %v2107 = vunpack.c.0.s8 %v2106
    %v2108 = vlaneseq
    %v2109 = vshrl.u32 %v2108, 7
    %v2110 = vsub.s32 %v2107, %v2109
    %v2111 = vrot.slane %v2083, %v2110
    %v2112 = vcombine.low %v2090, %v2104
    %v2113 = vcombine.high %v2090, %v2104
    %v2114 = vcombine.low %v2097, %v2111
    %v2115 = vcombine.high %v2097, %v2111
    %2120 = vmatprep.subr.mxu0 %v879
    %2121 = vmatpush1.msra.mxu0 %v878
    %2122 = vmatprep.subr.mxu0 %v883
    %2123 = vmatpush1.msra.mxu0 %v882
    %2124 = vmatprep.subr.mxu0 %v887
    %2125 = vmatpush1.msra.mxu0 %v886
    %2126 = vmatprep.subr.mxu0 %v891
    %2127 = vmatpush1.msra.mxu0 %v890
    %2128 = vmatprep.subr.mxu0 %v895
    %2129 = vmatpush1.msra.mxu0 %v894
    %2130 = vmatprep.subr.mxu0 %v899
    %2131 = vmatpush1.msra.mxu0 %v898
    %2132 = vmatprep.subr.mxu0 %v903
    %2133 = vmatpush1.msra.mxu0 %v902
    %2134 = vmatprep.subr.mxu0 %v907
    %2135 = vmatpush1.msra.mxu0 %v906
    %2136 = vmatprep.subr.mxu0 %v911
    %2137 = vmatpush1.msra.mxu0 %v910
    %2138 = vmatprep.subr.mxu0 %v915
    %2139 = vmatpush1.msra.mxu0 %v914
    %2140 = vmatprep.subr.mxu0 %v919
    %2141 = vmatpush1.msra.mxu0 %v918
    %2142 = vmatprep.subr.mxu0 %v923
    %2143 = vmatpush1.msra.mxu0 %v922
    %2144 = vmatprep.subr.mxu0 %v927
    %2145 = vmatpush1.msra.mxu0 %v926
    %2146 = vmatprep.subr.mxu0 %v931
    %2147 = vmatpush1.msra.mxu0 %v930
    %2148 = vmatprep.subr.mxu0 %v935
    %2149 = vmatpush1.msra.mxu0 %v934
    %2150 = vmatprep.subr.mxu0 %v939
    %2151 = vmatpush1.msra.mxu0 %v938
    %2152 = vmatprep.subr.mxu0 0.0
    %2153 = vmatpush1.msra.mxu0 0.0
    %2154 = vmatprep.subr.mxu0 0.0
    %2155 = vmatpush1.msra.mxu0 0.0
    %2156 = vmatprep.subr.mxu0 0.0
    %2157 = vmatpush1.msra.mxu0 0.0
    %2158 = vmatprep.subr.mxu0 0.0
    %2159 = vmatpush1.msra.mxu0 0.0
    %2160 = vmatprep.subr.mxu0 0.0
    %2161 = vmatpush1.msra.mxu0 0.0
    %2162 = vmatprep.subr.mxu0 0.0
    %2163 = vmatpush1.msra.mxu0 0.0
    %2164 = vmatprep.subr.mxu0 0.0
    %2165 = vmatpush1.msra.mxu0 0.0
    %2166 = vmatprep.subr.mxu0 0.0
    %2167 = vmatpush1.msra.mxu0 0.0
    %2168 = vmatprep.subr.mxu0 0.0
    %2169 = vmatpush1.msra.mxu0 0.0
    %2170 = vmatprep.subr.mxu0 0.0
    %2171 = vmatpush1.msra.mxu0 0.0
    %2172 = vmatprep.subr.mxu0 0.0
    %2173 = vmatpush1.msra.mxu0 0.0
    %2174 = vmatprep.subr.mxu0 0.0
    %2175 = vmatpush1.msra.mxu0 0.0
    %2176 = vmatprep.subr.mxu0 0.0
    %2177 = vmatpush1.msra.mxu0 0.0
    %2178 = vmatprep.subr.mxu0 0.0
    %2179 = vmatpush1.msra.mxu0 0.0
    %2180 = vmatprep.subr.mxu0 0.0
    %2181 = vmatpush1.msra.mxu0 0.0
    %2182 = vmatprep.subr.mxu0 0.0
    %2183 = vmatpush1.msra.mxu0 0.0
    %2184 = vmatprep.mubr.f32.mxu0 0.0
    %2185 = vmatmul.mubr.f32.gmra.mrb[0].mxu0 %v2023
    %v2186 = vpop.f32.mrb[0].mxu0
    %v2187 = vadd.f32 %v2112, %v2186
    %v2188 = vpop.f32.mrb[0].mxu0
    %v2189 = vadd.f32 %v2114, %v2188
    %2190 = vdwg.mxu0
    %2191 = vmatprep.subr.mxu0 %v881
    %2192 = vmatpush1.msra.mxu0 %v880
    %2193 = vmatprep.subr.mxu0 %v885
    %2194 = vmatpush1.msra.mxu0 %v884
    %2195 = vmatprep.subr.mxu0 %v889
    %2196 = vmatpush1.msra.mxu0 %v888
    %2197 = vmatprep.subr.mxu0 %v893
    %2198 = vmatpush1.msra.mxu0 %v892
    %2199 = vmatprep.subr.mxu0 %v897
    %2200 = vmatpush1.msra.mxu0 %v896
    %2201 = vmatprep.subr.mxu0 %v901
    %2202 = vmatpush1.msra.mxu0 %v900
    %2203 = vmatprep.subr.mxu0 %v905
    %2204 = vmatpush1.msra.mxu0 %v904
    %2205 = vmatprep.subr.mxu0 %v909
    %2206 = vmatpush1.msra.mxu0 %v908
    %2207 = vmatprep.subr.mxu0 %v913
    %2208 = vmatpush1.msra.mxu0 %v912
    %2209 = vmatprep.subr.mxu0 %v917
    %2210 = vmatpush1.msra.mxu0 %v916
    %2211 = vmatprep.subr.mxu0 %v921
    %2212 = vmatpush1.msra.mxu0 %v920
    %2213 = vmatprep.subr.mxu0 %v925
    %2214 = vmatpush1.msra.mxu0 %v924
    %2215 = vmatprep.subr.mxu0 %v929
    %2216 = vmatpush1.msra.mxu0 %v928
    %2217 = vmatprep.subr.mxu0 %v933
    %2218 = vmatpush1.msra.mxu0 %v932
    %2219 = vmatprep.subr.mxu0 %v937
    %2220 = vmatpush1.msra.mxu0 %v936
    %2221 = vmatprep.subr.mxu0 %v941
    %2222 = vmatpush1.msra.mxu0 %v940
    %2223 = vmatprep.subr.mxu0 0.0
    %2224 = vmatpush1.msra.mxu0 0.0
    %2225 = vmatprep.subr.mxu0 0.0
    %2226 = vmatpush1.msra.mxu0 0.0
    %2227 = vmatprep.subr.mxu0 0.0
    %2228 = vmatpush1.msra.mxu0 0.0
    %2229 = vmatprep.subr.mxu0 0.0
    %2230 = vmatpush1.msra.mxu0 0.0
    %2231 = vmatprep.subr.mxu0 0.0
    %2232 = vmatpush1.msra.mxu0 0.0
    %2233 = vmatprep.subr.mxu0 0.0
    %2234 = vmatpush1.msra.mxu0 0.0
    %2235 = vmatprep.subr.mxu0 0.0
    %2236 = vmatpush1.msra.mxu0 0.0
    %2237 = vmatprep.subr.mxu0 0.0
    %2238 = vmatpush1.msra.mxu0 0.0
    %2239 = vmatprep.subr.mxu0 0.0
    %2240 = vmatpush1.msra.mxu0 0.0
    %2241 = vmatprep.subr.mxu0 0.0
    %2242 = vmatpush1.msra.mxu0 0.0
    %2243 = vmatprep.subr.mxu0 0.0
    %2244 = vmatpush1.msra.mxu0 0.0
    %2245 = vmatprep.subr.mxu0 0.0
    %2246 = vmatpush1.msra.mxu0 0.0
    %2247 = vmatprep.subr.mxu0 0.0
    %2248 = vmatpush1.msra.mxu0 0.0
    %2249 = vmatprep.subr.mxu0 0.0
    %2250 = vmatpush1.msra.mxu0 0.0
    %2251 = vmatprep.subr.mxu0 0.0
    %2252 = vmatpush1.msra.mxu0 0.0
    %2253 = vmatprep.subr.mxu0 0.0
    %2254 = vmatpush1.msra.mxu0 0.0
    %2255 = vmatprep.mubr.f32.mxu0 0.0
    %2256 = vmatmul.mubr.f32.gmra.mrb[0].mxu0 %v2023
    %v2257 = vpop.f32.mrb[0].mxu0
    %v2258 = vadd.f32 %v2113, %v2257
    %v2259 = vpop.f32.mrb[0].mxu0
    %v2260 = vadd.f32 %v2115, %v2259
    %2261 = vdwg.mxu0
    %v2262 = vxor.u32 %v2187, 2147483648
    %v2263 = vxor.u32 %v2189, 2147483648
    %v2264 = vxor.u32 %v2258, 2147483648
    %v2265 = vmul.f32 %v2262, 1.442695
    %v2266 = vpow.pop %v2265
    %v2267 = vmul.f32 %v2263, 1.442695
    %v2268 = vpow.pop %v2267
    %v2269 = vmul.f32 %v2264, 1.442695
    %v2270 = vpow.pop %v2269
    %v2271 = vadd.f32 %v2266, 1.0
    %v2272 = vadd.f32 %v2268, 1.0
    %v2273 = vadd.f32 %v2270, 1.0
    %v2274 = vrcp.pop %v2271
    %v2275 = vmul.f32 1.0, %v2274
    %v2276 = vrcp.pop %v2272
    %v2277 = vmul.f32 1.0, %v2276
    %v2278 = vrcp.pop %v2273
    %v2279 = vmul.f32 1.0, %v2278
    %v2280 = vtanh.pop %v2260
    %v2281 = vmul.f32 %v2277, %v2021
    %v2282 = vmul.f32 %v2275, %v2280
    %v2283 = vadd.f32 %v2281, %v2282
    %v2284 = vtanh.pop %v2283
    %v2285 = vmul.f32 %v2279, %v2284
    %s2286 = scalar_lea.vmem [#allocation2], 5
    %v2287 = vld [vmem:[%s2286] ss:$8 sm:$0xf]
    %s2288 = scalar_lea.vmem [#allocation2], 37
    %v2289 = vld [vmem:[%s2288] ss:$8 sm:$0xf]
    %s2290 = scalar_lea.vmem [#allocation2], 69
    %v2291 = vld [vmem:[%s2290] ss:$8 sm:$0xf]
    %s2292 = scalar_lea.vmem [#allocation2], 101
    %v2293 = vld [vmem:[%s2292] ss:$8 sm:$0xf]
    %s2294 = scalar_lea.vmem [#allocation2], 133
    %v2295 = vld [vmem:[%s2294] ss:$8 sm:$0xf]
    %s2296 = scalar_lea.vmem [#allocation2], 165
    %v2297 = vld [vmem:[%s2296] ss:$8 sm:$0xf]
    %s2298 = scalar_lea.vmem [#allocation2], 197
    %v2299 = vld [vmem:[%s2298] ss:$8 sm:$0xf]
    %s2300 = scalar_lea.vmem [#allocation2], 229
    %v2301 = vld [vmem:[%s2300] ss:$8 sm:$0xf]
    %v2310 = vcombine.low %v2287, %v2289
    %v2311 = vcombine.low %v2291, %v2293
    %v2312 = vcombine.low %v2295, %v2297
    %v2313 = vcombine.low %v2299, %v2301
    %v2315 = vunpack.c.l.s4 1966171168
    %v2316 = vunpack.c.0.s8 %v2315
    %v2317 = vlaneseq
    %v2318 = vshrl.u32 %v2317, 7
    %v2319 = vsub.s32 %v2316, %v2318
    %v2320 = vrot.slane %v2310, %v2319
    %v2322 = vunpack.c.l.s4 1966171168
    %v2323 = vunpack.c.0.s8 %v2322
    %v2324 = vlaneseq
    %v2325 = vshrl.u32 %v2324, 7
    %v2326 = vsub.s32 %v2323, %v2325
    %v2327 = vrot.slane %v2311, %v2326
    %v2329 = vunpack.c.l.s4 1966171168
    %v2330 = vunpack.c.0.s8 %v2329
    %v2331 = vlaneseq
    %v2332 = vshrl.u32 %v2331, 7
    %v2333 = vsub.s32 %v2330, %v2332
    %v2334 = vrot.slane %v2312, %v2333
    %v2336 = vunpack.c.l.s4 1966171168
    %v2337 = vunpack.c.0.s8 %v2336
    %v2338 = vlaneseq
    %v2339 = vshrl.u32 %v2338, 7
    %v2340 = vsub.s32 %v2337, %v2339
    %v2341 = vrot.slane %v2313, %v2340
    %v2342 = vcombine.low %v2320, %v2327
    %v2343 = vcombine.high %v2320, %v2327
    %v2344 = vcombine.low %v2334, %v2341
    %v2345 = vcombine.high %v2334, %v2341
    %v2347 = vunpack.c.l.s4 1966171168
    %v2348 = vunpack.c.0.s8 %v2347
    %v2349 = vlaneseq
    %v2350 = vshrl.u32 %v2349, 7
    %v2351 = vsub.s32 %v2348, %v2350
    %v2352 = vrot.slane %v2342, %v2351
    %v2354 = vunpack.c.l.s4 1966171168
    %v2355 = vunpack.c.0.s8 %v2354
    %v2356 = vlaneseq
    %v2357 = vshrl.u32 %v2356, 7
    %v2358 = vsub.s32 %v2355, %v2357
    %v2359 = vrot.slane %v2343, %v2358
    %v2361 = vunpack.c.l.s4 1966171168
    %v2362 = vunpack.c.0.s8 %v2361
    %v2363 = vlaneseq
    %v2364 = vshrl.u32 %v2363, 7
    %v2365 = vsub.s32 %v2362, %v2364
    %v2366 = vrot.slane %v2344, %v2365
    %v2368 = vunpack.c.l.s4 1966171168
    %v2369 = vunpack.c.0.s8 %v2368
    %v2370 = vlaneseq
    %v2371 = vshrl.u32 %v2370, 7
    %v2372 = vsub.s32 %v2369, %v2371
    %v2373 = vrot.slane %v2345, %v2372
    %v2374 = vcombine.low %v2352, %v2366
    %v2375 = vcombine.high %v2352, %v2366
    %v2376 = vcombine.low %v2359, %v2373
    %v2377 = vcombine.high %v2359, %v2373
    %2382 = vmatprep.subr.mxu0 %v879
    %2383 = vmatpush1.msra.mxu0 %v878
    %2384 = vmatprep.subr.mxu0 %v883
    %2385 = vmatpush1.msra.mxu0 %v882
    %2386 = vmatprep.subr.mxu0 %v887
    %2387 = vmatpush1.msra.mxu0 %v886
    %2388 = vmatprep.subr.mxu0 %v891
    %2389 = vmatpush1.msra.mxu0 %v890
    %2390 = vmatprep.subr.mxu0 %v895
    %2391 = vmatpush1.msra.mxu0 %v894
    %2392 = vmatprep.subr.mxu0 %v899
    %2393 = vmatpush1.msra.mxu0 %v898
    %2394 = vmatprep.subr.mxu0 %v903
    %2395 = vmatpush1.msra.mxu0 %v902
    %2396 = vmatprep.subr.mxu0 %v907
    %2397 = vmatpush1.msra.mxu0 %v906
    %2398 = vmatprep.subr.mxu0 %v911
    %2399 = vmatpush1.msra.mxu0 %v910
    %2400 = vmatprep.subr.mxu0 %v915
    %2401 = vmatpush1.msra.mxu0 %v914
    %2402 = vmatprep.subr.mxu0 %v919
    %2403 = vmatpush1.msra.mxu0 %v918
    %2404 = vmatprep.subr.mxu0 %v923
    %2405 = vmatpush1.msra.mxu0 %v922
    %2406 = vmatprep.subr.mxu0 %v927
    %2407 = vmatpush1.msra.mxu0 %v926
    %2408 = vmatprep.subr.mxu0 %v931
    %2409 = vmatpush1.msra.mxu0 %v930
    %2410 = vmatprep.subr.mxu0 %v935
    %2411 = vmatpush1.msra.mxu0 %v934
    %2412 = vmatprep.subr.mxu0 %v939
    %2413 = vmatpush1.msra.mxu0 %v938
    %2414 = vmatprep.subr.mxu0 0.0
    %2415 = vmatpush1.msra.mxu0 0.0
    %2416 = vmatprep.subr.mxu0 0.0
    %2417 = vmatpush1.msra.mxu0 0.0
    %2418 = vmatprep.subr.mxu0 0.0
    %2419 = vmatpush1.msra.mxu0 0.0
    %2420 = vmatprep.subr.mxu0 0.0
    %2421 = vmatpush1.msra.mxu0 0.0
    %2422 = vmatprep.subr.mxu0 0.0
    %2423 = vmatpush1.msra.mxu0 0.0
    %2424 = vmatprep.subr.mxu0 0.0
    %2425 = vmatpush1.msra.mxu0 0.0
    %2426 = vmatprep.subr.mxu0 0.0
    %2427 = vmatpush1.msra.mxu0 0.0
    %2428 = vmatprep.subr.mxu0 0.0
    %2429 = vmatpush1.msra.mxu0 0.0
    %2430 = vmatprep.subr.mxu0 0.0
    %2431 = vmatpush1.msra.mxu0 0.0
    %2432 = vmatprep.subr.mxu0 0.0
    %2433 = vmatpush1.msra.mxu0 0.0
    %2434 = vmatprep.subr.mxu0 0.0
    %2435 = vmatpush1.msra.mxu0 0.0
    %2436 = vmatprep.subr.mxu0 0.0
    %2437 = vmatpush1.msra.mxu0 0.0
    %2438 = vmatprep.subr.mxu0 0.0
    %2439 = vmatpush1.msra.mxu0 0.0
    %2440 = vmatprep.subr.mxu0 0.0
    %2441 = vmatpush1.msra.mxu0 0.0
    %2442 = vmatprep.subr.mxu0 0.0
    %2443 = vmatpush1.msra.mxu0 0.0
    %2444 = vmatprep.subr.mxu0 0.0
    %2445 = vmatpush1.msra.mxu0 0.0
    %2446 = vmatprep.mubr.f32.mxu0 0.0
    %2447 = vmatmul.mubr.f32.gmra.mrb[0].mxu0 %v2285
    %v2448 = vpop.f32.mrb[0].mxu0
    %v2449 = vadd.f32 %v2374, %v2448
    %v2450 = vpop.f32.mrb[0].mxu0
    %v2451 = vadd.f32 %v2376, %v2450
    %2452 = vdwg.mxu0
    %2453 = vmatprep.subr.mxu0 %v881
    %2454 = vmatpush1.msra.mxu0 %v880
    %2455 = vmatprep.subr.mxu0 %v885
    %2456 = vmatpush1.msra.mxu0 %v884
    %2457 = vmatprep.subr.mxu0 %v889
    %2458 = vmatpush1.msra.mxu0 %v888
    %2459 = vmatprep.subr.mxu0 %v893
    %2460 = vmatpush1.msra.mxu0 %v892
    %2461 = vmatprep.subr.mxu0 %v897
    %2462 = vmatpush1.msra.mxu0 %v896
    %2463 = vmatprep.subr.mxu0 %v901
    %2464 = vmatpush1.msra.mxu0 %v900
    %2465 = vmatprep.subr.mxu0 %v905
    %2466 = vmatpush1.msra.mxu0 %v904
    %2467 = vmatprep.subr.mxu0 %v909
    %2468 = vmatpush1.msra.mxu0 %v908
    %2469 = vmatprep.subr.mxu0 %v913
    %2470 = vmatpush1.msra.mxu0 %v912
    %2471 = vmatprep.subr.mxu0 %v917
    %2472 = vmatpush1.msra.mxu0 %v916
    %2473 = vmatprep.subr.mxu0 %v921
    %2474 = vmatpush1.msra.mxu0 %v920
    %2475 = vmatprep.subr.mxu0 %v925
    %2476 = vmatpush1.msra.mxu0 %v924
    %2477 = vmatprep.subr.mxu0 %v929
    %2478 = vmatpush1.msra.mxu0 %v928
    %2479 = vmatprep.subr.mxu0 %v933
    %2480 = vmatpush1.msra.mxu0 %v932
    %2481 = vmatprep.subr.mxu0 %v937
    %2482 = vmatpush1.msra.mxu0 %v936
    %2483 = vmatprep.subr.mxu0 %v941
    %2484 = vmatpush1.msra.mxu0 %v940
    %2485 = vmatprep.subr.mxu0 0.0
    %2486 = vmatpush1.msra.mxu0 0.0
    %2487 = vmatprep.subr.mxu0 0.0
    %2488 = vmatpush1.msra.mxu0 0.0
    %2489 = vmatprep.subr.mxu0 0.0
    %2490 = vmatpush1.msra.mxu0 0.0
    %2491 = vmatprep.subr.mxu0 0.0
    %2492 = vmatpush1.msra.mxu0 0.0
    %2493 = vmatprep.subr.mxu0 0.0
    %2494 = vmatpush1.msra.mxu0 0.0
    %2495 = vmatprep.subr.mxu0 0.0
    %2496 = vmatpush1.msra.mxu0 0.0
    %2497 = vmatprep.subr.mxu0 0.0
    %2498 = vmatpush1.msra.mxu0 0.0
    %2499 = vmatprep.subr.mxu0 0.0
    %2500 = vmatpush1.msra.mxu0 0.0
    %2501 = vmatprep.subr.mxu0 0.0
    %2502 = vmatpush1.msra.mxu0 0.0
    %2503 = vmatprep.subr.mxu0 0.0
    %2504 = vmatpush1.msra.mxu0 0.0
    %2505 = vmatprep.subr.mxu0 0.0
    %2506 = vmatpush1.msra.mxu0 0.0
    %2507 = vmatprep.subr.mxu0 0.0
    %2508 = vmatpush1.msra.mxu0 0.0
    %2509 = vmatprep.subr.mxu0 0.0
    %2510 = vmatpush1.msra.mxu0 0.0
    %2511 = vmatprep.subr.mxu0 0.0
    %2512 = vmatpush1.msra.mxu0 0.0
    %2513 = vmatprep.subr.mxu0 0.0
    %2514 = vmatpush1.msra.mxu0 0.0
    %2515 = vmatprep.subr.mxu0 0.0
    %2516 = vmatpush1.msra.mxu0 0.0
    %2517 = vmatprep.mubr.f32.mxu0 0.0
    %2518 = vmatmul.mubr.f32.gmra.mrb[0].mxu0 %v2285
    %v2519 = vpop.f32.mrb[0].mxu0
    %v2520 = vadd.f32 %v2375, %v2519
    %v2521 = vpop.f32.mrb[0].mxu0
    %v2522 = vadd.f32 %v2377, %v2521
    %2523 = vdwg.mxu0
    %v2524 = vxor.u32 %v2449, 2147483648
    %v2525 = vxor.u32 %v2451, 2147483648
    %v2526 = vxor.u32 %v2520, 2147483648
    %v2527 = vmul.f32 %v2524, 1.442695
    %v2528 = vpow.pop %v2527
    %v2529 = vmul.f32 %v2525, 1.442695
    %v2530 = vpow.pop %v2529
    %v2531 = vmul.f32 %v2526, 1.442695
    %v2532 = vpow.pop %v2531
    %v2533 = vadd.f32 %v2528, 1.0
    %v2534 = vadd.f32 %v2530, 1.0
    %v2535 = vadd.f32 %v2532, 1.0
    %v2536 = vrcp.pop %v2533
    %v2537 = vmul.f32 1.0, %v2536
    %v2538 = vrcp.pop %v2534
    %v2539 = vmul.f32 1.0, %v2538
    %v2540 = vrcp.pop %v2535
    %v2541 = vmul.f32 1.0, %v2540
    %v2542 = vtanh.pop %v2522
    %v2543 = vmul.f32 %v2539, %v2283
    %v2544 = vmul.f32 %v2537, %v2542
    %v2545 = vadd.f32 %v2543, %v2544
    %v2546 = vtanh.pop %v2545
    %v2547 = vmul.f32 %v2541, %v2546
    %s2548 = scalar_lea.vmem [#allocation2], 6
    %v2549 = vld [vmem:[%s2548] ss:$8 sm:$0xf]
    %s2550 = scalar_lea.vmem [#allocation2], 38
    %v2551 = vld [vmem:[%s2550] ss:$8 sm:$0xf]
    %s2552 = scalar_lea.vmem [#allocation2], 70
    %v2553 = vld [vmem:[%s2552] ss:$8 sm:$0xf]
    %s2554 = scalar_lea.vmem [#allocation2], 102
    %v2555 = vld [vmem:[%s2554] ss:$8 sm:$0xf]
    %s2556 = scalar_lea.vmem [#allocation2], 134
    %v2557 = vld [vmem:[%s2556] ss:$8 sm:$0xf]
    %s2558 = scalar_lea.vmem [#allocation2], 166
    %v2559 = vld [vmem:[%s2558] ss:$8 sm:$0xf]
    %s2560 = scalar_lea.vmem [#allocation2], 198
    %v2561 = vld [vmem:[%s2560] ss:$8 sm:$0xf]
    %s2562 = scalar_lea.vmem [#allocation2], 230
    %v2563 = vld [vmem:[%s2562] ss:$8 sm:$0xf]
    %v2572 = vcombine.low %v2549, %v2551
    %v2573 = vcombine.low %v2553, %v2555
    %v2574 = vcombine.low %v2557, %v2559
    %v2575 = vcombine.low %v2561, %v2563
    %v2577 = vunpack.c.l.s4 1966171168
    %v2578 = vunpack.c.0.s8 %v2577
    %v2579 = vlaneseq
    %v2580 = vshrl.u32 %v2579, 7
    %v2581 = vsub.s32 %v2578, %v2580
    %v2582 = vrot.slane %v2572, %v2581
    %v2584 = vunpack.c.l.s4 1966171168
    %v2585 = vunpack.c.0.s8 %v2584
    %v2586 = vlaneseq
    %v2587 = vshrl.u32 %v2586, 7
    %v2588 = vsub.s32 %v2585, %v2587
    %v2589 = vrot.slane %v2573, %v2588
    %v2591 = vunpack.c.l.s4 1966171168
    %v2592 = vunpack.c.0.s8 %v2591
    %v2593 = vlaneseq
    %v2594 = vshrl.u32 %v2593, 7
    %v2595 = vsub.s32 %v2592, %v2594
    %v2596 = vrot.slane %v2574, %v2595
    %v2598 = vunpack.c.l.s4 1966171168
    %v2599 = vunpack.c.0.s8 %v2598
    %v2600 = vlaneseq
    %v2601 = vshrl.u32 %v2600, 7
    %v2602 = vsub.s32 %v2599, %v2601
    %v2603 = vrot.slane %v2575, %v2602
    %v2604 = vcombine.low %v2582, %v2589
    %v2605 = vcombine.high %v2582, %v2589
    %v2606 = vcombine.low %v2596, %v2603
    %v2607 = vcombine.high %v2596, %v2603
    %v2609 = vunpack.c.l.s4 1966171168
    %v2610 = vunpack.c.0.s8 %v2609
    %v2611 = vlaneseq
    %v2612 = vshrl.u32 %v2611, 7
    %v2613 = vsub.s32 %v2610, %v2612
    %v2614 = vrot.slane %v2604, %v2613
    %v2616 = vunpack.c.l.s4 1966171168
    %v2617 = vunpack.c.0.s8 %v2616
    %v2618 = vlaneseq
    %v2619 = vshrl.u32 %v2618, 7
    %v2620 = vsub.s32 %v2617, %v2619
    %v2621 = vrot.slane %v2605, %v2620
    %v2623 = vunpack.c.l.s4 1966171168
    %v2624 = vunpack.c.0.s8 %v2623
    %v2625 = vlaneseq
    %v2626 = vshrl.u32 %v2625, 7
    %v2627 = vsub.s32 %v2624, %v2626
    %v2628 = vrot.slane %v2606, %v2627
    %v2630 = vunpack.c.l.s4 1966171168
    %v2631 = vunpack.c.0.s8 %v2630
    %v2632 = vlaneseq
    %v2633 = vshrl.u32 %v2632, 7
    %v2634 = vsub.s32 %v2631, %v2633
    %v2635 = vrot.slane %v2607, %v2634
    %v2636 = vcombine.low %v2614, %v2628
    %v2637 = vcombine.high %v2614, %v2628
    %v2638 = vcombine.low %v2621, %v2635
    %v2639 = vcombine.high %v2621, %v2635
    %2644 = vmatprep.subr.mxu0 %v879
    %2645 = vmatpush1.msra.mxu0 %v878
    %2646 = vmatprep.subr.mxu0 %v883
    %2647 = vmatpush1.msra.mxu0 %v882
    %2648 = vmatprep.subr.mxu0 %v887
    %2649 = vmatpush1.msra.mxu0 %v886
    %2650 = vmatprep.subr.mxu0 %v891
    %2651 = vmatpush1.msra.mxu0 %v890
    %2652 = vmatprep.subr.mxu0 %v895
    %2653 = vmatpush1.msra.mxu0 %v894
    %2654 = vmatprep.subr.mxu0 %v899
    %2655 = vmatpush1.msra.mxu0 %v898
    %2656 = vmatprep.subr.mxu0 %v903
    %2657 = vmatpush1.msra.mxu0 %v902
    %2658 = vmatprep.subr.mxu0 %v907
    %2659 = vmatpush1.msra.mxu0 %v906
    %2660 = vmatprep.subr.mxu0 %v911
    %2661 = vmatpush1.msra.mxu0 %v910
    %2662 = vmatprep.subr.mxu0 %v915
    %2663 = vmatpush1.msra.mxu0 %v914
    %2664 = vmatprep.subr.mxu0 %v919
    %2665 = vmatpush1.msra.mxu0 %v918
    %2666 = vmatprep.subr.mxu0 %v923
    %2667 = vmatpush1.msra.mxu0 %v922
    %2668 = vmatprep.subr.mxu0 %v927
    %2669 = vmatpush1.msra.mxu0 %v926
    %2670 = vmatprep.subr.mxu0 %v931
    %2671 = vmatpush1.msra.mxu0 %v930
    %2672 = vmatprep.subr.mxu0 %v935
    %2673 = vmatpush1.msra.mxu0 %v934
    %2674 = vmatprep.subr.mxu0 %v939
    %2675 = vmatpush1.msra.mxu0 %v938
    %2676 = vmatprep.subr.mxu0 0.0
    %2677 = vmatpush1.msra.mxu0 0.0
    %2678 = vmatprep.subr.mxu0 0.0
    %2679 = vmatpush1.msra.mxu0 0.0
    %2680 = vmatprep.subr.mxu0 0.0
    %2681 = vmatpush1.msra.mxu0 0.0
    %2682 = vmatprep.subr.mxu0 0.0
    %2683 = vmatpush1.msra.mxu0 0.0
    %2684 = vmatprep.subr.mxu0 0.0
    %2685 = vmatpush1.msra.mxu0 0.0
    %2686 = vmatprep.subr.mxu0 0.0
    %2687 = vmatpush1.msra.mxu0 0.0
    %2688 = vmatprep.subr.mxu0 0.0
    %2689 = vmatpush1.msra.mxu0 0.0
    %2690 = vmatprep.subr.mxu0 0.0
    %2691 = vmatpush1.msra.mxu0 0.0
    %2692 = vmatprep.subr.mxu0 0.0
    %2693 = vmatpush1.msra.mxu0 0.0
    %2694 = vmatprep.subr.mxu0 0.0
    %2695 = vmatpush1.msra.mxu0 0.0
    %2696 = vmatprep.subr.mxu0 0.0
    %2697 = vmatpush1.msra.mxu0 0.0
    %2698 = vmatprep.subr.mxu0 0.0
    %2699 = vmatpush1.msra.mxu0 0.0
    %2700 = vmatprep.subr.mxu0 0.0
    %2701 = vmatpush1.msra.mxu0 0.0
    %2702 = vmatprep.subr.mxu0 0.0
    %2703 = vmatpush1.msra.mxu0 0.0
    %2704 = vmatprep.subr.mxu0 0.0
    %2705 = vmatpush1.msra.mxu0 0.0
    %2706 = vmatprep.subr.mxu0 0.0
    %2707 = vmatpush1.msra.mxu0 0.0
    %2708 = vmatprep.mubr.f32.mxu0 0.0
    %2709 = vmatmul.mubr.f32.gmra.mrb[0].mxu0 %v2547
    %v2710 = vpop.f32.mrb[0].mxu0
    %v2711 = vadd.f32 %v2636, %v2710
    %v2712 = vpop.f32.mrb[0].mxu0
    %v2713 = vadd.f32 %v2638, %v2712
    %2714 = vdwg.mxu0
    %2715 = vmatprep.subr.mxu0 %v881
    %2716 = vmatpush1.msra.mxu0 %v880
    %2717 = vmatprep.subr.mxu0 %v885
    %2718 = vmatpush1.msra.mxu0 %v884
    %2719 = vmatprep.subr.mxu0 %v889
    %2720 = vmatpush1.msra.mxu0 %v888
    %2721 = vmatprep.subr.mxu0 %v893
    %2722 = vmatpush1.msra.mxu0 %v892
    %2723 = vmatprep.subr.mxu0 %v897
    %2724 = vmatpush1.msra.mxu0 %v896
    %2725 = vmatprep.subr.mxu0 %v901
    %2726 = vmatpush1.msra.mxu0 %v900
    %2727 = vmatprep.subr.mxu0 %v905
    %2728 = vmatpush1.msra.mxu0 %v904
    %2729 = vmatprep.subr.mxu0 %v909
    %2730 = vmatpush1.msra.mxu0 %v908
    %2731 = vmatprep.subr.mxu0 %v913
    %2732 = vmatpush1.msra.mxu0 %v912
    %2733 = vmatprep.subr.mxu0 %v917
    %2734 = vmatpush1.msra.mxu0 %v916
    %2735 = vmatprep.subr.mxu0 %v921
    %2736 = vmatpush1.msra.mxu0 %v920
    %2737 = vmatprep.subr.mxu0 %v925
    %2738 = vmatpush1.msra.mxu0 %v924
    %2739 = vmatprep.subr.mxu0 %v929
    %2740 = vmatpush1.msra.mxu0 %v928
    %2741 = vmatprep.subr.mxu0 %v933
    %2742 = vmatpush1.msra.mxu0 %v932
    %2743 = vmatprep.subr.mxu0 %v937
    %2744 = vmatpush1.msra.mxu0 %v936
    %2745 = vmatprep.subr.mxu0 %v941
    %2746 = vmatpush1.msra.mxu0 %v940
    %2747 = vmatprep.subr.mxu0 0.0
    %2748 = vmatpush1.msra.mxu0 0.0
    %2749 = vmatprep.subr.mxu0 0.0
    %2750 = vmatpush1.msra.mxu0 0.0
    %2751 = vmatprep.subr.mxu0 0.0
    %2752 = vmatpush1.msra.mxu0 0.0
    %2753 = vmatprep.subr.mxu0 0.0
    %2754 = vmatpush1.msra.mxu0 0.0
    %2755 = vmatprep.subr.mxu0 0.0
    %2756 = vmatpush1.msra.mxu0 0.0
    %2757 = vmatprep.subr.mxu0 0.0
    %2758 = vmatpush1.msra.mxu0 0.0
    %2759 = vmatprep.subr.mxu0 0.0
    %2760 = vmatpush1.msra.mxu0 0.0
    %2761 = vmatprep.subr.mxu0 0.0
    %2762 = vmatpush1.msra.mxu0 0.0
    %2763 = vmatprep.subr.mxu0 0.0
    %2764 = vmatpush1.msra.mxu0 0.0
    %2765 = vmatprep.subr.mxu0 0.0
    %2766 = vmatpush1.msra.mxu0 0.0
    %2767 = vmatprep.subr.mxu0 0.0
    %2768 = vmatpush1.msra.mxu0 0.0
    %2769 = vmatprep.subr.mxu0 0.0
    %2770 = vmatpush1.msra.mxu0 0.0
    %2771 = vmatprep.subr.mxu0 0.0
    %2772 = vmatpush1.msra.mxu0 0.0
    %2773 = vmatprep.subr.mxu0 0.0
    %2774 = vmatpush1.msra.mxu0 0.0
    %2775 = vmatprep.subr.mxu0 0.0
    %2776 = vmatpush1.msra.mxu0 0.0
    %2777 = vmatprep.subr.mxu0 0.0
    %2778 = vmatpush1.msra.mxu0 0.0
    %2779 = vmatprep.mubr.f32.mxu0 0.0
    %2780 = vmatmul.mubr.f32.gmra.mrb[0].mxu0 %v2547
    %v2781 = vpop.f32.mrb[0].mxu0
    %v2782 = vadd.f32 %v2637, %v2781
    %v2783 = vpop.f32.mrb[0].mxu0
    %v2784 = vadd.f32 %v2639, %v2783
    %2785 = vdwg.mxu0
    %v2786 = vxor.u32 %v2711, 2147483648
    %v2787 = vxor.u32 %v2713, 2147483648
    %v2788 = vxor.u32 %v2782, 2147483648
    %v2789 = vmul.f32 %v2786, 1.442695
    %v2790 = vpow.pop %v2789
    %v2791 = vmul.f32 %v2787, 1.442695
    %v2792 = vpow.pop %v2791
    %v2793 = vmul.f32 %v2788, 1.442695
    %v2794 = vpow.pop %v2793
    %v2795 = vadd.f32 %v2790, 1.0
    %v2796 = vadd.f32 %v2792, 1.0
    %v2797 = vadd.f32 %v2794, 1.0
    %v2798 = vrcp.pop %v2795
    %v2799 = vmul.f32 1.0, %v2798
    %v2800 = vrcp.pop %v2796
    %v2801 = vmul.f32 1.0, %v2800
    %v2802 = vrcp.pop %v2797
    %v2803 = vmul.f32 1.0, %v2802
    %v2804 = vtanh.pop %v2784
    %v2805 = vmul.f32 %v2801, %v2545
    %v2806 = vmul.f32 %v2799, %v2804
    %v2807 = vadd.f32 %v2805, %v2806
    %v2808 = vtanh.pop %v2807
    %v2809 = vmul.f32 %v2803, %v2808
    %s2810 = scalar_lea.vmem [#allocation2], 7
    %v2811 = vld [vmem:[%s2810] ss:$8 sm:$0xf]
    %s2812 = scalar_lea.vmem [#allocation2], 39
    %v2813 = vld [vmem:[%s2812] ss:$8 sm:$0xf]
    %s2814 = scalar_lea.vmem [#allocation2], 71
    %v2815 = vld [vmem:[%s2814] ss:$8 sm:$0xf]
    %s2816 = scalar_lea.vmem [#allocation2], 103
    %v2817 = vld [vmem:[%s2816] ss:$8 sm:$0xf]
    %s2818 = scalar_lea.vmem [#allocation2], 135
    %v2819 = vld [vmem:[%s2818] ss:$8 sm:$0xf]
    %s2820 = scalar_lea.vmem [#allocation2], 167
    %v2821 = vld [vmem:[%s2820] ss:$8 sm:$0xf]
    %s2822 = scalar_lea.vmem [#allocation2], 199
    %v2823 = vld [vmem:[%s2822] ss:$8 sm:$0xf]
    %s2824 = scalar_lea.vmem [#allocation2], 231
    %v2825 = vld [vmem:[%s2824] ss:$8 sm:$0xf]
    %v2834 = vcombine.low %v2811, %v2813
    %v2835 = vcombine.low %v2815, %v2817
    %v2836 = vcombine.low %v2819, %v2821
    %v2837 = vcombine.low %v2823, %v2825
    %v2839 = vunpack.c.l.s4 1966171168
    %v2840 = vunpack.c.0.s8 %v2839
    %v2841 = vlaneseq
    %v2842 = vshrl.u32 %v2841, 7
    %v2843 = vsub.s32 %v2840, %v2842
    %v2844 = vrot.slane %v2834, %v2843
    %v2846 = vunpack.c.l.s4 1966171168
    %v2847 = vunpack.c.0.s8 %v2846
    %v2848 = vlaneseq
    %v2849 = vshrl.u32 %v2848, 7
    %v2850 = vsub.s32 %v2847, %v2849
    %v2851 = vrot.slane %v2835, %v2850
    %v2853 = vunpack.c.l.s4 1966171168
    %v2854 = vunpack.c.0.s8 %v2853
    %v2855 = vlaneseq
    %v2856 = vshrl.u32 %v2855, 7
    %v2857 = vsub.s32 %v2854, %v2856
    %v2858 = vrot.slane %v2836, %v2857
    %v2860 = vunpack.c.l.s4 1966171168
    %v2861 = vunpack.c.0.s8 %v2860
    %v2862 = vlaneseq
    %v2863 = vshrl.u32 %v2862, 7
    %v2864 = vsub.s32 %v2861, %v2863
    %v2865 = vrot.slane %v2837, %v2864
    %v2866 = vcombine.low %v2844, %v2851
    %v2867 = vcombine.high %v2844, %v2851
    %v2868 = vcombine.low %v2858, %v2865
    %v2869 = vcombine.high %v2858, %v2865
    %v2871 = vunpack.c.l.s4 1966171168
    %v2872 = vunpack.c.0.s8 %v2871
    %v2873 = vlaneseq
    %v2874 = vshrl.u32 %v2873, 7
    %v2875 = vsub.s32 %v2872, %v2874
    %v2876 = vrot.slane %v2866, %v2875
    %v2878 = vunpack.c.l.s4 1966171168
    %v2879 = vunpack.c.0.s8 %v2878
    %v2880 = vlaneseq
    %v2881 = vshrl.u32 %v2880, 7
    %v2882 = vsub.s32 %v2879, %v2881
    %v2883 = vrot.slane %v2867, %v2882
    %v2885 = vunpack.c.l.s4 1966171168
    %v2886 = vunpack.c.0.s8 %v2885
    %v2887 = vlaneseq
    %v2888 = vshrl.u32 %v2887, 7
    %v2889 = vsub.s32 %v2886, %v2888
    %v2890 = vrot.slane %v2868, %v2889
    %v2892 = vunpack.c.l.s4 1966171168
    %v2893 = vunpack.c.0.s8 %v2892
    %v2894 = vlaneseq
    %v2895 = vshrl.u32 %v2894, 7
    %v2896 = vsub.s32 %v2893, %v2895
    %v2897 = vrot.slane %v2869, %v2896
    %v2898 = vcombine.low %v2876, %v2890
    %v2899 = vcombine.high %v2876, %v2890
    %v2900 = vcombine.low %v2883, %v2897
    %v2901 = vcombine.high %v2883, %v2897
    %2906 = vmatprep.subr.mxu0 %v879
    %2907 = vmatpush1.msra.mxu0 %v878
    %2908 = vmatprep.subr.mxu0 %v883
    %2909 = vmatpush1.msra.mxu0 %v882
    %2910 = vmatprep.subr.mxu0 %v887
    %2911 = vmatpush1.msra.mxu0 %v886
    %2912 = vmatprep.subr.mxu0 %v891
    %2913 = vmatpush1.msra.mxu0 %v890
    %2914 = vmatprep.subr.mxu0 %v895
    %2915 = vmatpush1.msra.mxu0 %v894
    %2916 = vmatprep.subr.mxu0 %v899
    %2917 = vmatpush1.msra.mxu0 %v898
    %2918 = vmatprep.subr.mxu0 %v903
    %2919 = vmatpush1.msra.mxu0 %v902
    %2920 = vmatprep.subr.mxu0 %v907
    %2921 = vmatpush1.msra.mxu0 %v906
    %2922 = vmatprep.subr.mxu0 %v911
    %2923 = vmatpush1.msra.mxu0 %v910
    %2924 = vmatprep.subr.mxu0 %v915
    %2925 = vmatpush1.msra.mxu0 %v914
    %2926 = vmatprep.subr.mxu0 %v919
    %2927 = vmatpush1.msra.mxu0 %v918
    %2928 = vmatprep.subr.mxu0 %v923
    %2929 = vmatpush1.msra.mxu0 %v922
    %2930 = vmatprep.subr.mxu0 %v927
    %2931 = vmatpush1.msra.mxu0 %v926
    %2932 = vmatprep.subr.mxu0 %v931
    %2933 = vmatpush1.msra.mxu0 %v930
    %2934 = vmatprep.subr.mxu0 %v935
    %2935 = vmatpush1.msra.mxu0 %v934
    %2936 = vmatprep.subr.mxu0 %v939
    %2937 = vmatpush1.msra.mxu0 %v938
    %2938 = vmatprep.subr.mxu0 0.0
    %2939 = vmatpush1.msra.mxu0 0.0
    %2940 = vmatprep.subr.mxu0 0.0
    %2941 = vmatpush1.msra.mxu0 0.0
    %2942 = vmatprep.subr.mxu0 0.0
    %2943 = vmatpush1.msra.mxu0 0.0
    %2944 = vmatprep.subr.mxu0 0.0
    %2945 = vmatpush1.msra.mxu0 0.0
    %2946 = vmatprep.subr.mxu0 0.0
    %2947 = vmatpush1.msra.mxu0 0.0
    %2948 = vmatprep.subr.mxu0 0.0
    %2949 = vmatpush1.msra.mxu0 0.0
    %2950 = vmatprep.subr.mxu0 0.0
    %2951 = vmatpush1.msra.mxu0 0.0
    %2952 = vmatprep.subr.mxu0 0.0
    %2953 = vmatpush1.msra.mxu0 0.0
    %2954 = vmatprep.subr.mxu0 0.0
    %2955 = vmatpush1.msra.mxu0 0.0
    %2956 = vmatprep.subr.mxu0 0.0
    %2957 = vmatpush1.msra.mxu0 0.0
    %2958 = vmatprep.subr.mxu0 0.0
    %2959 = vmatpush1.msra.mxu0 0.0
    %2960 = vmatprep.subr.mxu0 0.0
    %2961 = vmatpush1.msra.mxu0 0.0
    %2962 = vmatprep.subr.mxu0 0.0
    %2963 = vmatpush1.msra.mxu0 0.0
    %2964 = vmatprep.subr.mxu0 0.0
    %2965 = vmatpush1.msra.mxu0 0.0
    %2966 = vmatprep.subr.mxu0 0.0
    %2967 = vmatpush1.msra.mxu0 0.0
    %2968 = vmatprep.subr.mxu0 0.0
    %2969 = vmatpush1.msra.mxu0 0.0
    %2970 = vmatprep.mubr.f32.mxu0 0.0
    %2971 = vmatmul.mubr.f32.gmra.mrb[0].mxu0 %v2809
    %v2972 = vpop.f32.mrb[0].mxu0
    %v2973 = vadd.f32 %v2898, %v2972
    %v2974 = vpop.f32.mrb[0].mxu0
    %v2975 = vadd.f32 %v2900, %v2974
    %2976 = vdwg.mxu0
    %2977 = vmatprep.subr.mxu0 %v881
    %2978 = vmatpush1.msra.mxu0 %v880
    %2979 = vmatprep.subr.mxu0 %v885
    %2980 = vmatpush1.msra.mxu0 %v884
    %2981 = vmatprep.subr.mxu0 %v889
    %2982 = vmatpush1.msra.mxu0 %v888
    %2983 = vmatprep.subr.mxu0 %v893
    %2984 = vmatpush1.msra.mxu0 %v892
    %2985 = vmatprep.subr.mxu0 %v897
    %2986 = vmatpush1.msra.mxu0 %v896
    %2987 = vmatprep.subr.mxu0 %v901
    %2988 = vmatpush1.msra.mxu0 %v900
    %2989 = vmatprep.subr.mxu0 %v905
    %2990 = vmatpush1.msra.mxu0 %v904
    %2991 = vmatprep.subr.mxu0 %v909
    %2992 = vmatpush1.msra.mxu0 %v908
    %2993 = vmatprep.subr.mxu0 %v913
    %2994 = vmatpush1.msra.mxu0 %v912
    %2995 = vmatprep.subr.mxu0 %v917
    %2996 = vmatpush1.msra.mxu0 %v916
    %2997 = vmatprep.subr.mxu0 %v921
    %2998 = vmatpush1.msra.mxu0 %v920
    %2999 = vmatprep.subr.mxu0 %v925
    %3000 = vmatpush1.msra.mxu0 %v924
    %3001 = vmatprep.subr.mxu0 %v929
    %3002 = vmatpush1.msra.mxu0 %v928
    %3003 = vmatprep.subr.mxu0 %v933
    %3004 = vmatpush1.msra.mxu0 %v932
    %3005 = vmatprep.subr.mxu0 %v937
    %3006 = vmatpush1.msra.mxu0 %v936
    %3007 = vmatprep.subr.mxu0 %v941
    %3008 = vmatpush1.msra.mxu0 %v940
    %3009 = vmatprep.subr.mxu0 0.0
    %3010 = vmatpush1.msra.mxu0 0.0
    %3011 = vmatprep.subr.mxu0 0.0
    %3012 = vmatpush1.msra.mxu0 0.0
    %3013 = vmatprep.subr.mxu0 0.0
    %3014 = vmatpush1.msra.mxu0 0.0
    %3015 = vmatprep.subr.mxu0 0.0
    %3016 = vmatpush1.msra.mxu0 0.0
    %3017 = vmatprep.subr.mxu0 0.0
    %3018 = vmatpush1.msra.mxu0 0.0
    %3019 = vmatprep.subr.mxu0 0.0
    %3020 = vmatpush1.msra.mxu0 0.0
    %3021 = vmatprep.subr.mxu0 0.0
    %3022 = vmatpush1.msra.mxu0 0.0
    %3023 = vmatprep.subr.mxu0 0.0
    %3024 = vmatpush1.msra.mxu0 0.0
    %3025 = vmatprep.subr.mxu0 0.0
    %3026 = vmatpush1.msra.mxu0 0.0
    %3027 = vmatprep.subr.mxu0 0.0
    %3028 = vmatpush1.msra.mxu0 0.0
    %3029 = vmatprep.subr.mxu0 0.0
    %3030 = vmatpush1.msra.mxu0 0.0
    %3031 = vmatprep.subr.mxu0 0.0
    %3032 = vmatpush1.msra.mxu0 0.0
    %3033 = vmatprep.subr.mxu0 0.0
    %3034 = vmatpush1.msra.mxu0 0.0
    %3035 = vmatprep.subr.mxu0 0.0
    %3036 = vmatpush1.msra.mxu0 0.0
    %3037 = vmatprep.subr.mxu0 0.0
    %3038 = vmatpush1.msra.mxu0 0.0
    %3039 = vmatprep.subr.mxu0 0.0
    %3040 = vmatpush1.msra.mxu0 0.0
    %3041 = vmatprep.mubr.f32.mxu0 0.0
    %3042 = vmatmul.mubr.f32.gmra.mrb[0].mxu0 %v2809
    %v3043 = vpop.f32.mrb[0].mxu0
    %v3044 = vadd.f32 %v2899, %v3043
    %v3045 = vpop.f32.mrb[0].mxu0
    %v3046 = vadd.f32 %v2901, %v3045
    %3047 = vdwg.mxu0
    %v3048 = vxor.u32 %v2973, 2147483648
    %v3049 = vxor.u32 %v2975, 2147483648
    %v3050 = vxor.u32 %v3044, 2147483648
    %v3051 = vmul.f32 %v3048, 1.442695
    %v3052 = vpow.pop %v3051
    %v3053 = vmul.f32 %v3049, 1.442695
    %v3054 = vpow.pop %v3053
    %v3055 = vmul.f32 %v3050, 1.442695
    %v3056 = vpow.pop %v3055
    %v3057 = vadd.f32 %v3052, 1.0
    %v3058 = vadd.f32 %v3054, 1.0
    %v3059 = vadd.f32 %v3056, 1.0
    %v3060 = vrcp.pop %v3057
    %v3061 = vmul.f32 1.0, %v3060
    %v3062 = vrcp.pop %v3058
    %v3063 = vmul.f32 1.0, %v3062
    %v3064 = vrcp.pop %v3059
    %v3065 = vmul.f32 1.0, %v3064
    %v3066 = vtanh.pop %v3046
    %v3067 = vmul.f32 %v3063, %v2807
    %v3068 = vmul.f32 %v3061, %v3066
    %v3069 = vadd.f32 %v3067, %v3068
    %v3070 = vtanh.pop %v3069
    %v3071 = vmul.f32 %v3065, %v3070
    %v3072 = vld [vmem:[%s2] sm:$0xf]
    %v3074 = vlaneseq
    %v3075 = vshrl.u32 %v3074, 7
    %v3076 = vsub.s32 0, %v3075
    %v3077 = vrot.slane %v3072, %v3076
    %v3078 = vlaneseq
    %v3079 = vshrl.u32 %v3078, 7
    %v3080 = vsub.s32 1, %v3079
    %v3081 = vrot.slane %v3072, %v3080
    %v3082 = vlaneseq
    %v3083 = vshrl.u32 %v3082, 7
    %v3084 = vsub.s32 2, %v3083
    %v3085 = vrot.slane %v3072, %v3084
    %v3086 = vlaneseq
    %v3087 = vshrl.u32 %v3086, 7
    %v3088 = vsub.s32 3, %v3087
    %v3089 = vrot.slane %v3072, %v3088
    %3094 = vmatprep.subr.mxu0 %v879
    %3095 = vmatpush1.msra.mxu0 %v878
    %3096 = vmatprep.subr.mxu0 %v883
    %3097 = vmatpush1.msra.mxu0 %v882
    %3098 = vmatprep.subr.mxu0 %v887
    %3099 = vmatpush1.msra.mxu0 %v886
    %3100 = vmatprep.subr.mxu0 %v891
    %3101 = vmatpush1.msra.mxu0 %v890
    %3102 = vmatprep.subr.mxu0 %v895
    %3103 = vmatpush1.msra.mxu0 %v894
    %3104 = vmatprep.subr.mxu0 %v899
    %3105 = vmatpush1.msra.mxu0 %v898
    %3106 = vmatprep.subr.mxu0 %v903
    %3107 = vmatpush1.msra.mxu0 %v902
    %3108 = vmatprep.subr.mxu0 %v907
    %3109 = vmatpush1.msra.mxu0 %v906
    %3110 = vmatprep.subr.mxu0 %v911
    %3111 = vmatpush1.msra.mxu0 %v910
    %3112 = vmatprep.subr.mxu0 %v915
    %3113 = vmatpush1.msra.mxu0 %v914
    %3114 = vmatprep.subr.mxu0 %v919
    %3115 = vmatpush1.msra.mxu0 %v918
    %3116 = vmatprep.subr.mxu0 %v923
    %3117 = vmatpush1.msra.mxu0 %v922
    %3118 = vmatprep.subr.mxu0 %v927
    %3119 = vmatpush1.msra.mxu0 %v926
    %3120 = vmatprep.subr.mxu0 %v931
    %3121 = vmatpush1.msra.mxu0 %v930
    %3122 = vmatprep.subr.mxu0 %v935
    %3123 = vmatpush1.msra.mxu0 %v934
    %3124 = vmatprep.subr.mxu0 %v939
    %3125 = vmatpush1.msra.mxu0 %v938
    %3126 = vmatprep.subr.mxu0 0.0
    %3127 = vmatpush1.msra.mxu0 0.0
    %3128 = vmatprep.subr.mxu0 0.0
    %3129 = vmatpush1.msra.mxu0 0.0
    %3130 = vmatprep.subr.mxu0 0.0
    %3131 = vmatpush1.msra.mxu0 0.0
    %3132 = vmatprep.subr.mxu0 0.0
    %3133 = vmatpush1.msra.mxu0 0.0
    %3134 = vmatprep.subr.mxu0 0.0
    %3135 = vmatpush1.msra.mxu0 0.0
    %3136 = vmatprep.subr.mxu0 0.0
    %3137 = vmatpush1.msra.mxu0 0.0
    %3138 = vmatprep.subr.mxu0 0.0
    %3139 = vmatpush1.msra.mxu0 0.0
    %3140 = vmatprep.subr.mxu0 0.0
    %3141 = vmatpush1.msra.mxu0 0.0
    %3142 = vmatprep.subr.mxu0 0.0
    %3143 = vmatpush1.msra.mxu0 0.0
    %3144 = vmatprep.subr.mxu0 0.0
    %3145 = vmatpush1.msra.mxu0 0.0
    %3146 = vmatprep.subr.mxu0 0.0
    %3147 = vmatpush1.msra.mxu0 0.0
    %3148 = vmatprep.subr.mxu0 0.0
    %3149 = vmatpush1.msra.mxu0 0.0
    %3150 = vmatprep.subr.mxu0 0.0
    %3151 = vmatpush1.msra.mxu0 0.0
    %3152 = vmatprep.subr.mxu0 0.0
    %3153 = vmatpush1.msra.mxu0 0.0
    %3154 = vmatprep.subr.mxu0 0.0
    %3155 = vmatpush1.msra.mxu0 0.0
    %3156 = vmatprep.subr.mxu0 0.0
    %3157 = vmatpush1.msra.mxu0 0.0
    %3158 = vmatprep.mubr.f32.mxu0 0.0
    %3159 = vmatmul.mubr.f32.gmra.mrb[0].mxu0 %v3071
    %v3160 = vpop.f32.mrb[0].mxu0
    %v3161 = vadd.f32 %v3077, %v3160
    %v3162 = vpop.f32.mrb[0].mxu0
    %v3163 = vadd.f32 %v3081, %v3162
    %3164 = vdwg.mxu0
    %3165 = vmatprep.subr.mxu0 %v881
    %3166 = vmatpush1.msra.mxu0 %v880
    %3167 = vmatprep.subr.mxu0 %v885
    %3168 = vmatpush1.msra.mxu0 %v884
    %3169 = vmatprep.subr.mxu0 %v889
    %3170 = vmatpush1.msra.mxu0 %v888
    %3171 = vmatprep.subr.mxu0 %v893
    %3172 = vmatpush1.msra.mxu0 %v892
    %3173 = vmatprep.subr.mxu0 %v897
    %3174 = vmatpush1.msra.mxu0 %v896
    %3175 = vmatprep.subr.mxu0 %v901
    %3176 = vmatpush1.msra.mxu0 %v900
    %3177 = vmatprep.subr.mxu0 %v905
    %3178 = vmatpush1.msra.mxu0 %v904
    %3179 = vmatprep.subr.mxu0 %v909
    %3180 = vmatpush1.msra.mxu0 %v908
    %3181 = vmatprep.subr.mxu0 %v913
    %3182 = vmatpush1.msra.mxu0 %v912
    %3183 = vmatprep.subr.mxu0 %v917
    %3184 = vmatpush1.msra.mxu0 %v916
    %3185 = vmatprep.subr.mxu0 %v921
    %3186 = vmatpush1.msra.mxu0 %v920
    %3187 = vmatprep.subr.mxu0 %v925
    %3188 = vmatpush1.msra.mxu0 %v924
    %3189 = vmatprep.subr.mxu0 %v929
    %3190 = vmatpush1.msra.mxu0 %v928
    %3191 = vmatprep.subr.mxu0 %v933
    %3192 = vmatpush1.msra.mxu0 %v932
    %3193 = vmatprep.subr.mxu0 %v937
    %3194 = vmatpush1.msra.mxu0 %v936
    %3195 = vmatprep.subr.mxu0 %v941
    %3196 = vmatpush1.msra.mxu0 %v940
    %3197 = vmatprep.subr.mxu0 0.0
    %3198 = vmatpush1.msra.mxu0 0.0
    %3199 = vmatprep.subr.mxu0 0.0
    %3200 = vmatpush1.msra.mxu0 0.0
    %3201 = vmatprep.subr.mxu0 0.0
    %3202 = vmatpush1.msra.mxu0 0.0
    %3203 = vmatprep.subr.mxu0 0.0
    %3204 = vmatpush1.msra.mxu0 0.0
    %3205 = vmatprep.subr.mxu0 0.0
    %3206 = vmatpush1.msra.mxu0 0.0
    %3207 = vmatprep.subr.mxu0 0.0
    %3208 = vmatpush1.msra.mxu0 0.0
    %3209 = vmatprep.subr.mxu0 0.0
    %3210 = vmatpush1.msra.mxu0 0.0
    %3211 = vmatprep.subr.mxu0 0.0
    %3212 = vmatpush1.msra.mxu0 0.0
    %3213 = vmatprep.subr.mxu0 0.0
    %3214 = vmatpush1.msra.mxu0 0.0
    %3215 = vmatprep.subr.mxu0 0.0
    %3216 = vmatpush1.msra.mxu0 0.0
    %3217 = vmatprep.subr.mxu0 0.0
    %3218 = vmatpush1.msra.mxu0 0.0
    %3219 = vmatprep.subr.mxu0 0.0
    %3220 = vmatpush1.msra.mxu0 0.0
    %3221 = vmatprep.subr.mxu0 0.0
    %3222 = vmatpush1.msra.mxu0 0.0
    %3223 = vmatprep.subr.mxu0 0.0
    %3224 = vmatpush1.msra.mxu0 0.0
    %3225 = vmatprep.subr.mxu0 0.0
    %3226 = vmatpush1.msra.mxu0 0.0
    %3227 = vmatprep.subr.mxu0 0.0
    %3228 = vmatpush1.msra.mxu0 0.0
    %3229 = vmatprep.mubr.f32.mxu0 0.0
    %3230 = vmatmul.mubr.f32.gmra.mrb[0].mxu0 %v3071
    %v3231 = vpop.f32.mrb[0].mxu0
    %v3232 = vadd.f32 %v3085, %v3231
    %v3233 = vpop.f32.mrb[0].mxu0
    %v3234 = vadd.f32 %v3089, %v3233
    %3235 = vdwg.mxu0
    %v3236 = vxor.u32 %v3161, 2147483648
    %v3237 = vxor.u32 %v3163, 2147483648
    %v3238 = vxor.u32 %v3232, 2147483648
    %v3239 = vmul.f32 %v3236, 1.442695
    %v3240 = vpow.pop %v3239
    %v3241 = vmul.f32 %v3237, 1.442695
    %v3242 = vpow.pop %v3241
    %v3243 = vmul.f32 %v3238, 1.442695
    %v3244 = vpow.pop %v3243
    %v3245 = vadd.f32 %v3240, 1.0
    %v3246 = vadd.f32 %v3242, 1.0
    %v3247 = vadd.f32 %v3244, 1.0
    %v3248 = vrcp.pop %v3245
    %v3249 = vmul.f32 1.0, %v3248
    %v3250 = vrcp.pop %v3246
    %v3251 = vmul.f32 1.0, %v3250
    %v3252 = vrcp.pop %v3247
    %v3253 = vmul.f32 1.0, %v3252
    %v3254 = vtanh.pop %v3234
    %v3255 = vmul.f32 %v3251, %v3069
    %v3256 = vmul.f32 %v3249, %v3254
    %v3257 = vadd.f32 %v3255, %v3256
    %v3258 = vtanh.pop %v3257
    %v3259 = vmul.f32 %v3253, %v3258
    %v3260 = vld [vmem:[%s4] sm:$0xff]
    %v3261 = vld [vmem:[%s4 + $0x8] sm:$0xff]
    %v3262 = vld [vmem:[%s4 + $0x10] sm:$0xff]
    %v3263 = vld [vmem:[%s4 + $0x18] sm:$0xff]
    %v3264 = vld [vmem:[%s4 + $0x20] sm:$0xff]
    %v3265 = vld [vmem:[%s4 + $0x28] sm:$0xff]
    %v3266 = vld [vmem:[%s4 + $0x30] sm:$0xff]
    %v3267 = vld [vmem:[%s4 + $0x38] sm:$0xff]
    %v3268 = vld [vmem:[#allocation3] sm:$0x1]
    %v3270 = vlaneseq
    %v3271 = vshrl.u32 %v3270, 7
    %v3272 = vsub.s32 0, %v3271
    %v3273 = vrot.slane %v3268, %v3272
    %3276 = vrot.lane.b32.xlu0 %v3259, 64
    %v3277 = vpop.permute.xlu0 %3276
    %vm3278 = vcmask 523264
    %v3279 = vsel %vm3278, %v3277, 0
    %3281 = vmatprep.subr.mxu0 0.0
    %3282 = vmatpush1.msra.mxu0 %v3260
    %3283 = vmatprep.subr.mxu0 0.0
    %3284 = vmatpush1.msra.mxu0 %v3261
    %3285 = vmatprep.subr.mxu0 0.0
    %3286 = vmatpush1.msra.mxu0 %v3262
    %3287 = vmatprep.subr.mxu0 0.0
    %3288 = vmatpush1.msra.mxu0 %v3263
    %3289 = vmatprep.subr.mxu0 0.0
    %3290 = vmatpush1.msra.mxu0 %v3264
    %3291 = vmatprep.subr.mxu0 0.0
    %3292 = vmatpush1.msra.mxu0 %v3265
    %3293 = vmatprep.subr.mxu0 0.0
    %3294 = vmatpush1.msra.mxu0 %v3266
    %3295 = vmatprep.subr.mxu0 0.0
    %3296 = vmatpush1.msra.mxu0 %v3267
    %3297 = vmatprep.subr.mxu0 0.0
    %3298 = vmatpush1.msra.mxu0 0.0
    %3299 = vmatprep.subr.mxu0 0.0
    %3300 = vmatpush1.msra.mxu0 0.0
    %3301 = vmatprep.subr.mxu0 0.0
    %3302 = vmatpush1.msra.mxu0 0.0
    %3303 = vmatprep.subr.mxu0 0.0
    %3304 = vmatpush1.msra.mxu0 0.0
    %3305 = vmatprep.subr.mxu0 0.0
    %3306 = vmatpush1.msra.mxu0 0.0
    %3307 = vmatprep.subr.mxu0 0.0
    %3308 = vmatpush1.msra.mxu0 0.0
    %3309 = vmatprep.subr.mxu0 0.0
    %3310 = vmatpush1.msra.mxu0 0.0
    %3311 = vmatprep.subr.mxu0 0.0
    %3312 = vmatpush1.msra.mxu0 0.0
    %3313 = vmatprep.subr.mxu0 0.0
    %3314 = vmatpush1.msra.mxu0 0.0
    %3315 = vmatprep.subr.mxu0 0.0
    %3316 = vmatpush1.msra.mxu0 0.0
    %3317 = vmatprep.subr.mxu0 0.0
    %3318 = vmatpush1.msra.mxu0 0.0
    %3319 = vmatprep.subr.mxu0 0.0
    %3320 = vmatpush1.msra.mxu0 0.0
    %3321 = vmatprep.subr.mxu0 0.0
    %3322 = vmatpush1.msra.mxu0 0.0
    %3323 = vmatprep.subr.mxu0 0.0
    %3324 = vmatpush1.msra.mxu0 0.0
    %3325 = vmatprep.subr.mxu0 0.0
    %3326 = vmatpush1.msra.mxu0 0.0
    %3327 = vmatprep.subr.mxu0 0.0
    %3328 = vmatpush1.msra.mxu0 0.0
    %3329 = vmatprep.subr.mxu0 0.0
    %3330 = vmatpush1.msra.mxu0 0.0
    %3331 = vmatprep.subr.mxu0 0.0
    %3332 = vmatpush1.msra.mxu0 0.0
    %3333 = vmatprep.subr.mxu0 0.0
    %3334 = vmatpush1.msra.mxu0 0.0
    %3335 = vmatprep.subr.mxu0 0.0
    %3336 = vmatpush1.msra.mxu0 0.0
    %3337 = vmatprep.subr.mxu0 0.0
    %3338 = vmatpush1.msra.mxu0 0.0
    %3339 = vmatprep.subr.mxu0 0.0
    %3340 = vmatpush1.msra.mxu0 0.0
    %3341 = vmatprep.subr.mxu0 0.0
    %3342 = vmatpush1.msra.mxu0 0.0
    %3343 = vmatprep.subr.mxu0 0.0
    %3344 = vmatpush1.msra.mxu0 0.0
    %3345 = vmatprep.mubr.f32.mxu0 0.0
    %3346 = vmatmul.mubr.f32.gmra.mrb[0].mxu0 %v3279
    %v3347 = vpop.f32.mrb[0].mxu0
    %v3348 = vadd.f32 %v3273, %v3347
    %v3349 = vpop.f32.mrb[0].mxu0
    %3350 = vdwg.mxu0
    %vm3351 = vcmask 7168
    %3352 = vst.msk [vmem:[%s6] sm:$0xff] %vm3351, %v3348
    // Predicated region
    $region38: #{tpu_custom_call.1} parent=1 // pred_check
      _
    $region39: #{tpu_custom_call.1} parent=1 // pred_check_branch
      %3354 = sbr.rel (0) target = $region41
    $region40: #{tpu_custom_call.1} parent=1 // pred_region
      _
    $region41: #{tpu_custom_call.1} parent=1 // pred_fallthru
      _
    // Predicated region
    $region42: #{tpu_custom_call.1} parent=1 // pred_check
      _
    $region43: #{tpu_custom_call.1} parent=1 // pred_check_branch
      %3356 = sbr.rel (0) target = $region45
    $region44: #{tpu_custom_call.1} parent=1 // pred_region
      _
    $region45: #{tpu_custom_call.1} parent=1 // pred_fallthru
      _
    %3357 = vsyncpa [#allocation5], 1
    %3358 = vsyncpa [#allocation7], 1

</llo_original>
